<compile_context>
chip_gen: v7x
topology: tpu7x:2x2x1
jax: 0.10.0
libtpu: 0.0.40
codegen_flags: <defaults>
</compile_context>

<pallas_src>
import functools
import numpy as np
import jax
import jax.numpy as jnp
from jax import lax
from jax.experimental import pallas as pl
from jax.experimental.pallas import tpu as pltpu

LANE = 128


def _round_up(x, m):
    return (x + m - 1) // m * m


# --------------------------------- kernel ---------------------------------
def bottleneck_kernel(x_ref, wcat_ref, b1_ref, w2_ref, b2_ref, w3_ref, bout_ref,
                      out_ref, pad_ref, *, W, R0):
    HW = x_ref.shape[1]          # H * W (flattened spatial)
    WID = b1_ref.shape[-1]       # padded width of the middle channels
    T = pad_ref.shape[0]
    KW = pad_ref.shape[1]        # 3 * WID

    # Zero the halo strips plus the single edge row of each shifted copy that
    # its store does not cover (row R0 of the dw=0 block, row R0+HW-1 of the
    # dw=2 block).  Re-zeroed every step so the kernel stays correct when the
    # (parallel) batch axis is split across TensorCores; all interior rows that
    # matter are rewritten by the stores below (stores happen after this).
    pad_ref[0:R0 + 1, :] = jnp.zeros((R0 + 1, KW), jnp.bfloat16)
    pad_ref[R0 + HW - 1:T, :] = jnp.zeros((T - R0 - HW + 1, KW), jnp.bfloat16)

    xf = x_ref[0]                                            # (HW, CIN_P) bf16

    # ---- fused conv1 + downsample (both 1x1, BN scale folded into weights) --
    h = jnp.dot(xf, wcat_ref[...], preferred_element_type=jnp.float32)
    out_ref[0] = h[:, WID:]        # park the identity path in VMEM (not vregs)
    h1 = jnp.maximum(h[:, :WID] + b1_ref[...], 0.0).astype(jnp.bfloat16)

    # ---- conv2 3x3 (stride 1, pad 1), im2col over a (T, 3*WID) bf16 scratch -
    # Column block dw holds copy_dw[q] = h1[q + dw - 1] with the left/right
    # wrap masked at store time, so the three reads below are plain +/-W row
    # windows (16-row aligned for bf16 when W % 16 == 0).
    col = lax.broadcasted_iota(jnp.int32, (HW, 1), 0) % W
    pad_ref[R0 + 1:R0 + HW + 1, 0:WID] = jnp.where(col != (W - 1), h1, 0)
    pad_ref[R0:R0 + HW, WID:2 * WID] = h1
    pad_ref[R0 - 1:R0 + HW - 1, 2 * WID:3 * WID] = jnp.where(col != 0, h1, 0)

    acc = jnp.dot(pad_ref[R0 - W:R0 - W + HW, :], w2_ref[0],
                  preferred_element_type=jnp.float32)
    acc = acc + jnp.dot(pad_ref[R0:R0 + HW, :], w2_ref[1],
                        preferred_element_type=jnp.float32)
    acc = acc + jnp.dot(pad_ref[R0 + W:R0 + W + HW, :], w2_ref[2],
                        preferred_element_type=jnp.float32)
    h2 = jnp.maximum(acc + b2_ref[...], 0.0).astype(jnp.bfloat16)   # bn2+relu

    # ---- conv3 1x1 + bn3 + residual + relu (bias = b3 + bd) ----------------
    h3 = jnp.dot(h2, w3_ref[...], preferred_element_type=jnp.float32)
    out_ref[0] = jnp.maximum(h3 + out_ref[0] + bout_ref[...], 0.0)


# ------------------------ host-side weight preparation --------------------
def _fold_and_pack(params, cin, width, cout):
    (w1, s1, b1, w2, s2, b2, w3, s3, b3, wd, sd, bd) = params
    cin_p = _round_up(cin, LANE)
    wid_p = _round_up(width, LANE)
    out_p = _round_up(cout, LANE)

    # fold BN scale into the conv weights (eval-mode BN)
    w1f = w1 * s1                    # (cin, width)
    wdf = wd * sd                    # (cin, cout)
    w2f = w2 * s2                    # (3, 3, width, width)
    w3f = w3 * s3                    # (width, cout)

    w1p = jnp.zeros((cin_p, wid_p), jnp.float32).at[:cin, :width].set(w1f)
    wdp = jnp.zeros((cin_p, out_p), jnp.float32).at[:cin, :cout].set(wdf)
    wcat = jnp.concatenate([w1p, wdp], axis=1).astype(jnp.bfloat16)

    # conv2 weights packed for the im2col kernel: for each kernel row dh the
    # contraction axis is [dw=0 | dw=1 | dw=2] x cin  -> (3, 3*wid_p, wid_p),
    # matching the scratch column-block order.
    w2p = (jnp.zeros((3, 3, wid_p, wid_p), jnp.float32)
           .at[:, :, :width, :width].set(w2f))
    w2cat = w2p.reshape(3, 3 * wid_p, wid_p).astype(jnp.bfloat16)

    w3p = (jnp.zeros((wid_p, out_p), jnp.float32)
           .at[:width, :cout].set(w3f).astype(jnp.bfloat16))

    b1p = jnp.zeros((1, wid_p), jnp.float32).at[:, :width].set(b1)
    b2p = jnp.zeros((1, wid_p), jnp.float32).at[:, :width].set(b2)
    bop = jnp.zeros((1, out_p), jnp.float32).at[:, :cout].set(b3 + bd)
    return wcat, b1p, w2cat, b2p, w3p, bop, cin_p, wid_p, out_p


# --------------------------------- wrapper --------------------------------
def bottleneck_pallas(x_nchw, params):
    """x_nchw: (N, Cin, H, W) float32. Returns (N, Cout, H, W) float32."""
    N, CIN, H, W = x_nchw.shape
    WIDTH = params[0].shape[1]
    COUT = params[6].shape[1]
    (wcat, b1p, w2cat, b2p, w3p, bop,
     cin_p, wid_p, out_p) = _fold_and_pack(params, CIN, WIDTH, COUT)

    # NCHW -> lane-dense flattened NHWC: (N, H*W, cin_p) bf16
    x = jnp.transpose(x_nchw, (0, 2, 3, 1))
    x = jnp.pad(x, ((0, 0), (0, 0), (0, 0), (0, cin_p - CIN)))
    x = x.reshape(N, H * W, cin_p).astype(jnp.bfloat16)

    HW = H * W
    R0 = _round_up(max(W, 1), 16)   # halo rows (>= W, 16-aligned for bf16 packing)
    T = R0 + HW + R0                # flat scratch rows (top + interior + bottom)

    full = lambda shape: pl.BlockSpec(shape, lambda n: (0,) * len(shape))
    grid_spec = pltpu.PrefetchScalarGridSpec(
        num_scalar_prefetch=0,
        grid=(N,),
        in_specs=[
            pl.BlockSpec((1, HW, cin_p), lambda n: (n, 0, 0)),
            full((cin_p, wid_p + out_p)),
            full((1, wid_p)),
            full((3, 3 * wid_p, wid_p)),
            full((1, wid_p)),
            full((wid_p, out_p)),
            full((1, out_p)),
        ],
        out_specs=pl.BlockSpec((1, HW, out_p), lambda n: (n, 0, 0)),
        scratch_shapes=[pltpu.VMEM((T, 3 * wid_p), jnp.bfloat16)],
    )
    kernel = functools.partial(bottleneck_kernel, W=W, R0=R0)
    out = pl.pallas_call(
        kernel,
        out_shape=jax.ShapeDtypeStruct((N, HW, out_p), jnp.float32),
        grid_spec=grid_spec,
        compiler_params=pltpu.CompilerParams(
            dimension_semantics=("parallel",),
            vmem_limit_bytes=32 * 1024 * 1024),
    )(x, wcat, b1p, w2cat, b2p, w3p, bop)

    out = out.reshape(N, H, W, out_p)[..., :COUT]
    return jnp.transpose(out, (0, 3, 1, 2))       # back to NCHW


# ------------------------- parameter construction -------------------------
def fold_bn(key, c, eps=1e-5):
    k1, k2, k3, k4 = jax.random.split(key, 4)
    gamma = 1.0 + 0.1 * jax.random.normal(k1, (c,), jnp.float32)
    beta = 0.1 * jax.random.normal(k2, (c,), jnp.float32)
    mean = 0.1 * jax.random.normal(k3, (c,), jnp.float32)
    var = 1.0 + 0.5 * jax.random.uniform(k4, (c,), jnp.float32)
    scale = gamma / jnp.sqrt(var + eps)
    bias = beta - mean * scale
    return scale.reshape(1, c), bias.reshape(1, c)


def make_params(key, inplanes, planes):
    width = planes          # base_width=64, groups=1
    cout = planes           # expansion = 1
    ks = jax.random.split(key, 8)
    # conv weights stored in "input-major" layout for NHWC matmuls:
    #   1x1: (Cin, Cout)        (== PyTorch OIHW weight[:, :, 0, 0].T)
    #   3x3: (3, 3, Cin, Cout)  (== PyTorch OIHW transposed to HWIO)
    w1 = 0.1 * jax.random.normal(ks[0], (inplanes, width), jnp.float32)
    w2 = 0.1 * jax.random.normal(ks[1], (3, 3, width, width), jnp.float32)
    w3 = 0.1 * jax.random.normal(ks[2], (width, cout), jnp.float32)
    wd = 0.1 * jax.random.normal(ks[3], (inplanes, cout), jnp.float32)
    s1, b1 = fold_bn(ks[4], width)
    s2, b2 = fold_bn(ks[5], width)
    s3, b3 = fold_bn(ks[6], cout)
    sd, bd = fold_bn(ks[7], cout)
    return (w1, s1, b1, w2, s2, b2, w3, s3, b3, wd, sd, bd)


# ------------------------- pure-JAX reference (f32) ------------------------
def bottleneck_ref(x_nchw, params):
    (w1, s1, b1, w2, s2, b2, w3, s3, b3, wd, sd, bd) = params
    x = jnp.transpose(x_nchw, (0, 2, 3, 1))
    h = jnp.einsum('nhwc,co->nhwo', x, w1) * s1 + b1
    h = jnp.maximum(h, 0.0)
    h = lax.conv_general_dilated(h, w2, window_strides=(1, 1), padding='SAME',
                                 dimension_numbers=('NHWC', 'HWIO', 'NHWC'))
    h = jnp.maximum(h * s2 + b2, 0.0)
    h = jnp.einsum('nhwc,co->nhwo', h, w3) * s3 + b3
    idn = jnp.einsum('nhwc,co->nhwo', x, wd) * sd + bd
    out = jnp.maximum(h + idn, 0.0)
    return jnp.transpose(out, (0, 3, 1, 2))


if __name__ == "__main__":
    N, INPLANES, PLANES, H, W = 2, 32, 32, 16, 16

    key = jax.random.PRNGKey(0)
    kx, kp = jax.random.split(key)
    x = jax.random.normal(kx, (N, INPLANES, H, W), jnp.float32)
    params = make_params(kp, INPLANES, PLANES)

    out = bottleneck_pallas(x, params)
    out = jax.block_until_ready(out)

    ref = jax.block_until_ready(bottleneck_ref(x, params))
    # bf16 matmul inputs (f32 accumulation) vs the f32 reference -> looser tol.
    np.testing.assert_allclose(np.asarray(out), np.asarray(ref),
                               rtol=5e-2, atol=5e-2)
    print("KERNEL_OK")
</pallas_src>

<mosaic_0001>
module attributes {stable_mosaic.version = 11 : i64} {
  func.func @bottleneck_kernel(%arg0: i32, %arg1: memref<1x256x128xbf16, #tpu.memory_space<vmem>>, %arg2: memref<128x256xbf16, #tpu.memory_space<vmem>>, %arg3: memref<1x128xf32, #tpu.memory_space<vmem>>, %arg4: memref<3x384x128xbf16, #tpu.memory_space<vmem>>, %arg5: memref<1x128xf32, #tpu.memory_space<vmem>>, %arg6: memref<128x128xbf16, #tpu.memory_space<vmem>>, %arg7: memref<1x128xf32, #tpu.memory_space<vmem>>, %arg8: memref<1x256x128xf32, #tpu.memory_space<vmem>>, %arg9: memref<288x384xbf16, #tpu.memory_space<vmem>>) attributes {dimension_semantics = [#tpu.dimension_semantics<parallel>], iteration_bounds = array<i64: 2>, scalar_prefetch = 0 : i64, scratch_operands = 1 : i64, tpu.core_type = #tpu.core_type<tc>, window_params = [{transform_indices = @transform_0, window_bounds = array<i64: 1, 256, 128>}, {pipeline_mode = #tpu.pipeline_mode<synchronous>, transform_indices = @transform_1, window_bounds = array<i64: 128, 256>}, {pipeline_mode = #tpu.pipeline_mode<synchronous>, transform_indices = @transform_2, window_bounds = array<i64: 1, 128>}, {pipeline_mode = #tpu.pipeline_mode<synchronous>, transform_indices = @transform_3, window_bounds = array<i64: 3, 384, 128>}, {pipeline_mode = #tpu.pipeline_mode<synchronous>, transform_indices = @transform_4, window_bounds = array<i64: 1, 128>}, {pipeline_mode = #tpu.pipeline_mode<synchronous>, transform_indices = @transform_5, window_bounds = array<i64: 128, 128>}, {pipeline_mode = #tpu.pipeline_mode<synchronous>, transform_indices = @transform_6, window_bounds = array<i64: 1, 128>}, {transform_indices = @transform_7, window_bounds = array<i64: 1, 256, 128>}]} {
    %cst = arith.constant 0.000000e+00 : bf16
    %0 = vector.broadcast %cst : bf16 to vector<17x384xbf16>
    %c0 = arith.constant 0 : index
    %c0_0 = arith.constant 0 : index
    %1 = vector.load %arg9[%c0, %c0_0] : memref<288x384xbf16, #tpu.memory_space<vmem>>, vector<17x384xbf16>
    tpu.vector_store %arg9[%c0, %c0_0], %0 {strides = array<i32>} : memref<288x384xbf16, #tpu.memory_space<vmem>>, vector<17x384xbf16>,
    %cst_1 = arith.constant 0.000000e+00 : bf16
    %2 = vector.broadcast %cst_1 : bf16 to vector<17x384xbf16>
    %c271 = arith.constant 271 : index
    %c0_2 = arith.constant 0 : index
    %3 = vector.load %arg9[%c271, %c0_2] : memref<288x384xbf16, #tpu.memory_space<vmem>>, vector<17x384xbf16>
    tpu.vector_store %arg9[%c271, %c0_2], %2 {strides = array<i32>} : memref<288x384xbf16, #tpu.memory_space<vmem>>, vector<17x384xbf16>,
    %c0_3 = arith.constant 0 : index
    %c0_4 = arith.constant 0 : index
    %c0_5 = arith.constant 0 : index
    %4 = vector.load %arg1[%c0_3, %c0_4, %c0_5] : memref<1x256x128xbf16, #tpu.memory_space<vmem>>, vector<1x256x128xbf16>
    %5 = vector.shape_cast %4 : vector<1x256x128xbf16> to vector<256x128xbf16>
    %c0_6 = arith.constant 0 : index
    %c0_7 = arith.constant 0 : index
    %6 = vector.load %arg2[%c0_6, %c0_7] : memref<128x256xbf16, #tpu.memory_space<vmem>>, vector<128x256xbf16>
    %cst_8 = arith.constant dense<0.000000e+00> : vector<256x256xf32>
    %7 = tpu.matmul %5, %6, %cst_8 {dimension_numbers = #tpu.dot_dimension_numbers<[1], [0], [0], [1], [0, 0, 1, 1], [], []>} : vector<256x128xbf16>, vector<128x256xbf16>, vector<256x256xf32> -> vector<256x256xf32>
    %8 = vector.extract_strided_slice %7 {offsets = [0, 128], sizes = [256, 128], strides = [1, 1]} : vector<256x256xf32> to vector<256x128xf32>
    %c0_9 = arith.constant 0 : index
    %c0_10 = arith.constant 0 : index
    %c0_11 = arith.constant 0 : index
    %9 = vector.load %arg8[%c0_9, %c0_10, %c0_11] : memref<1x256x128xf32, #tpu.memory_space<vmem>>, vector<1x256x128xf32>
    %10 = vector.shape_cast %9 : vector<1x256x128xf32> to vector<256x128xf32>
    %11 = vector.shape_cast %8 : vector<256x128xf32> to vector<1x256x128xf32>
    tpu.vector_store %arg8[%c0_9, %c0_10, %c0_11], %11 {strides = array<i32>} : memref<1x256x128xf32, #tpu.memory_space<vmem>>, vector<1x256x128xf32>,
    %12 = vector.extract_strided_slice %7 {offsets = [0, 0], sizes = [256, 128], strides = [1, 1]} : vector<256x256xf32> to vector<256x128xf32>
    %c0_12 = arith.constant 0 : index
    %c0_13 = arith.constant 0 : index
    %13 = vector.load %arg3[%c0_12, %c0_13] : memref<1x128xf32, #tpu.memory_space<vmem>>, vector<1x128xf32>
    %14 = vector.broadcast %13 : vector<1x128xf32> to vector<256x128xf32>
    %15 = arith.addf %12, %14 : vector<256x128xf32>
    %cst_14 = arith.constant 0.000000e+00 : f32
    %16 = vector.broadcast %cst_14 : f32 to vector<256x128xf32>
    %17 = arith.maximumf %15, %16 : vector<256x128xf32>
    %18 = arith.truncf %17 : vector<256x128xf32> to vector<256x128xbf16>
    %19 = tpu.iota {dimensions = array<i32: 0>} : vector<256x1xi32>
    %c16_i32 = arith.constant 16 : i32
    %c0_i32 = arith.constant 0 : i32
    %20 = arith.cmpi eq, %c16_i32, %c0_i32 : i32
    %c1_i32 = arith.constant 1 : i32
    %21 = arith.select %20, %c1_i32, %c16_i32 : i32
    %22 = vector.broadcast %21 : i32 to vector<256x1xi32>
    %23 = arith.remsi %19, %22 : vector<256x1xi32>
    %c0_i32_15 = arith.constant 0 : i32
    %24 = vector.broadcast %c0_i32_15 : i32 to vector<256x1xi32>
    %25 = arith.cmpi ne, %23, %24 : vector<256x1xi32>
    %c0_i32_16 = arith.constant 0 : i32
    %26 = vector.broadcast %c0_i32_16 : i32 to vector<256x1xi32>
    %27 = arith.cmpi slt, %23, %26 : vector<256x1xi32>
    %c0_i32_17 = arith.constant 0 : i32
    %28 = arith.cmpi slt, %21, %c0_i32_17 : i32
    %29 = vector.broadcast %28 : i1 to vector<256x1xi1>
    %30 = vector.broadcast %29 : vector<256x1xi1> to vector<256x1xi1>
    %31 = arith.xori %27, %30 : vector<256x1xi1>
    %32 = arith.andi %31, %25 : vector<256x1xi1>
    %33 = vector.broadcast %21 : i32 to vector<256x1xi32>
    %34 = arith.addi %23, %33 : vector<256x1xi32>
    %35 = arith.select %32, %34, %23 : vector<256x1xi1>, vector<256x1xi32>
    %c15_i32 = arith.constant 15 : i32
    %36 = vector.broadcast %c15_i32 : i32 to vector<256x1xi32>
    %37 = arith.cmpi ne, %35, %36 : vector<256x1xi32>
    %c0_i32_18 = arith.constant 0 : i32
    %38 = arith.sitofp %c0_i32_18 : i32 to bf16
    %39 = vector.shape_cast %37 : vector<256x1xi1> to vector<256x1xi1>
    %40 = vector.broadcast %39 : vector<256x1xi1> to vector<256x128xi1>
    %41 = vector.broadcast %38 : bf16 to vector<256x128xbf16>
    %42 = arith.select %40, %18, %41 : vector<256x128xi1>, vector<256x128xbf16>
    %c17 = arith.constant 17 : index
    %c0_19 = arith.constant 0 : index
    %43 = vector.load %arg9[%c17, %c0_19] : memref<288x384xbf16, #tpu.memory_space<vmem>>, vector<256x128xbf16>
    tpu.vector_store %arg9[%c17, %c0_19], %42 {strides = array<i32>} : memref<288x384xbf16, #tpu.memory_space<vmem>>, vector<256x128xbf16>,
    %c16 = arith.constant 16 : index
    %c128 = arith.constant 128 : index
    %44 = vector.load %arg9[%c16, %c128] : memref<288x384xbf16, #tpu.memory_space<vmem>>, vector<256x128xbf16>
    tpu.vector_store %arg9[%c16, %c128], %18 {strides = array<i32>} : memref<288x384xbf16, #tpu.memory_space<vmem>>, vector<256x128xbf16>,
    %c0_i32_20 = arith.constant 0 : i32
    %45 = vector.broadcast %c0_i32_20 : i32 to vector<256x1xi32>
    %46 = arith.cmpi ne, %35, %45 : vector<256x1xi32>
    %c0_i32_21 = arith.constant 0 : i32
    %47 = arith.sitofp %c0_i32_21 : i32 to bf16
    %48 = vector.shape_cast %46 : vector<256x1xi1> to vector<256x1xi1>
    %49 = vector.broadcast %48 : vector<256x1xi1> to vector<256x128xi1>
    %50 = vector.broadcast %47 : bf16 to vector<256x128xbf16>
    %51 = arith.select %49, %18, %50 : vector<256x128xi1>, vector<256x128xbf16>
    %c15 = arith.constant 15 : index
    %c256 = arith.constant 256 : index
    %52 = vector.load %arg9[%c15, %c256] : memref<288x384xbf16, #tpu.memory_space<vmem>>, vector<256x128xbf16>
    tpu.vector_store %arg9[%c15, %c256], %51 {strides = array<i32>} : memref<288x384xbf16, #tpu.memory_space<vmem>>, vector<256x128xbf16>,
    %c0_22 = arith.constant 0 : index
    %c0_23 = arith.constant 0 : index
    %53 = vector.load %arg9[%c0_22, %c0_23] : memref<288x384xbf16, #tpu.memory_space<vmem>>, vector<256x384xbf16>
    %c0_24 = arith.constant 0 : index
    %c0_25 = arith.constant 0 : index
    %c0_26 = arith.constant 0 : index
    %54 = vector.load %arg4[%c0_24, %c0_25, %c0_26] : memref<3x384x128xbf16, #tpu.memory_space<vmem>>, vector<1x384x128xbf16>
    %55 = vector.shape_cast %54 : vector<1x384x128xbf16> to vector<384x128xbf16>
    %cst_27 = arith.constant dense<0.000000e+00> : vector<256x128xf32>
    %56 = tpu.matmul %53, %55, %cst_27 {dimension_numbers = #tpu.dot_dimension_numbers<[1], [0], [0], [1], [0, 0, 1, 1], [], []>} : vector<256x384xbf16>, vector<384x128xbf16>, vector<256x128xf32> -> vector<256x128xf32>
    %c16_28 = arith.constant 16 : index
    %c0_29 = arith.constant 0 : index
    %57 = vector.load %arg9[%c16_28, %c0_29] : memref<288x384xbf16, #tpu.memory_space<vmem>>, vector<256x384xbf16>
    %c1 = arith.constant 1 : index
    %c0_30 = arith.constant 0 : index
    %c0_31 = arith.constant 0 : index
    %58 = vector.load %arg4[%c1, %c0_30, %c0_31] : memref<3x384x128xbf16, #tpu.memory_space<vmem>>, vector<1x384x128xbf16>
    %59 = vector.shape_cast %58 : vector<1x384x128xbf16> to vector<384x128xbf16>
    %cst_32 = arith.constant dense<0.000000e+00> : vector<256x128xf32>
    %60 = tpu.matmul %57, %59, %cst_32 {dimension_numbers = #tpu.dot_dimension_numbers<[1], [0], [0], [1], [0, 0, 1, 1], [], []>} : vector<256x384xbf16>, vector<384x128xbf16>, vector<256x128xf32> -> vector<256x128xf32>
    %61 = arith.addf %56, %60 : vector<256x128xf32>
    %c32 = arith.constant 32 : index
    %c0_33 = arith.constant 0 : index
    %62 = vector.load %arg9[%c32, %c0_33] : memref<288x384xbf16, #tpu.memory_space<vmem>>, vector<256x384xbf16>
    %c2 = arith.constant 2 : index
    %c0_34 = arith.constant 0 : index
    %c0_35 = arith.constant 0 : index
    %63 = vector.load %arg4[%c2, %c0_34, %c0_35] : memref<3x384x128xbf16, #tpu.memory_space<vmem>>, vector<1x384x128xbf16>
    %64 = vector.shape_cast %63 : vector<1x384x128xbf16> to vector<384x128xbf16>
    %cst_36 = arith.constant dense<0.000000e+00> : vector<256x128xf32>
    %65 = tpu.matmul %62, %64, %cst_36 {dimension_numbers = #tpu.dot_dimension_numbers<[1], [0], [0], [1], [0, 0, 1, 1], [], []>} : vector<256x384xbf16>, vector<384x128xbf16>, vector<256x128xf32> -> vector<256x128xf32>
    %66 = arith.addf %61, %65 : vector<256x128xf32>
    %c0_37 = arith.constant 0 : index
    %c0_38 = arith.constant 0 : index
    %67 = vector.load %arg5[%c0_37, %c0_38] : memref<1x128xf32, #tpu.memory_space<vmem>>, vector<1x128xf32>
    %68 = vector.broadcast %67 : vector<1x128xf32> to vector<256x128xf32>
    %69 = arith.addf %66, %68 : vector<256x128xf32>
    %cst_39 = arith.constant 0.000000e+00 : f32
    %70 = vector.broadcast %cst_39 : f32 to vector<256x128xf32>
    %71 = arith.maximumf %69, %70 : vector<256x128xf32>
    %72 = arith.truncf %71 : vector<256x128xf32> to vector<256x128xbf16>
    %c0_40 = arith.constant 0 : index
    %c0_41 = arith.constant 0 : index
    %73 = vector.load %arg6[%c0_40, %c0_41] : memref<128x128xbf16, #tpu.memory_space<vmem>>, vector<128x128xbf16>
    %cst_42 = arith.constant dense<0.000000e+00> : vector<256x128xf32>
    %74 = tpu.matmul %72, %73, %cst_42 {dimension_numbers = #tpu.dot_dimension_numbers<[1], [0], [0], [1], [0, 0, 1, 1], [], []>} : vector<256x128xbf16>, vector<128x128xbf16>, vector<256x128xf32> -> vector<256x128xf32>
    %c0_43 = arith.constant 0 : index
    %c0_44 = arith.constant 0 : index
    %c0_45 = arith.constant 0 : index
    %75 = vector.load %arg8[%c0_43, %c0_44, %c0_45] : memref<1x256x128xf32, #tpu.memory_space<vmem>>, vector<1x256x128xf32>
    %76 = vector.shape_cast %75 : vector<1x256x128xf32> to vector<256x128xf32>
    %77 = arith.addf %74, %76 : vector<256x128xf32>
    %c0_46 = arith.constant 0 : index
    %c0_47 = arith.constant 0 : index
    %78 = vector.load %arg7[%c0_46, %c0_47] : memref<1x128xf32, #tpu.memory_space<vmem>>, vector<1x128xf32>
    %79 = vector.broadcast %78 : vector<1x128xf32> to vector<256x128xf32>
    %80 = arith.addf %77, %79 : vector<256x128xf32>
    %cst_48 = arith.constant 0.000000e+00 : f32
    %81 = vector.broadcast %cst_48 : f32 to vector<256x128xf32>
    %82 = arith.maximumf %80, %81 : vector<256x128xf32>
    %c0_49 = arith.constant 0 : index
    %c0_50 = arith.constant 0 : index
    %c0_51 = arith.constant 0 : index
    %83 = vector.load %arg8[%c0_49, %c0_50, %c0_51] : memref<1x256x128xf32, #tpu.memory_space<vmem>>, vector<1x256x128xf32>
    %84 = vector.shape_cast %83 : vector<1x256x128xf32> to vector<256x128xf32>
    %85 = vector.shape_cast %82 : vector<256x128xf32> to vector<1x256x128xf32>
    tpu.vector_store %arg8[%c0_49, %c0_50, %c0_51], %85 {strides = array<i32>} : memref<1x256x128xf32, #tpu.memory_space<vmem>>, vector<1x256x128xf32>,
    return
  }
  func.func @transform_0(%arg0: i32) -> (i32, i32, i32) {
    %c0_i32 = arith.constant 0 : i32
    %c0_i32_0 = arith.constant 0 : i32
    %c0_i32_1 = arith.constant 0 : i32
    return %arg0, %c0_i32, %c0_i32_0 : i32, i32, i32
  }
  func.func @transform_1(%arg0: i32) -> (i32, i32) {
    %c0_i32 = arith.constant 0 : i32
    %c0_i32_0 = arith.constant 0 : i32
    %c0_i32_1 = arith.constant 0 : i32
    return %c0_i32, %c0_i32_0 : i32, i32
  }
  func.func @transform_2(%arg0: i32) -> (i32, i32) {
    %c0_i32 = arith.constant 0 : i32
    %c0_i32_0 = arith.constant 0 : i32
    %c0_i32_1 = arith.constant 0 : i32
    return %c0_i32, %c0_i32_0 : i32, i32
  }
  func.func @transform_3(%arg0: i32) -> (i32, i32, i32) {
    %c0_i32 = arith.constant 0 : i32
    %c0_i32_0 = arith.constant 0 : i32
    %c0_i32_1 = arith.constant 0 : i32
    %c0_i32_2 = arith.constant 0 : i32
    return %c0_i32, %c0_i32_0, %c0_i32_1 : i32, i32, i32
  }
  func.func @transform_4(%arg0: i32) -> (i32, i32) {
    %c0_i32 = arith.constant 0 : i32
    %c0_i32_0 = arith.constant 0 : i32
    %c0_i32_1 = arith.constant 0 : i32
    return %c0_i32, %c0_i32_0 : i32, i32
  }
  func.func @transform_5(%arg0: i32) -> (i32, i32) {
    %c0_i32 = arith.constant 0 : i32
    %c0_i32_0 = arith.constant 0 : i32
    %c0_i32_1 = arith.constant 0 : i32
    return %c0_i32, %c0_i32_0 : i32, i32
  }
  func.func @transform_6(%arg0: i32) -> (i32, i32) {
    %c0_i32 = arith.constant 0 : i32
    %c0_i32_0 = arith.constant 0 : i32
    %c0_i32_1 = arith.constant 0 : i32
    return %c0_i32, %c0_i32_0 : i32, i32
  }
  func.func @transform_7(%arg0: i32) -> (i32, i32, i32) {
    %c0_i32 = arith.constant 0 : i32
    %c0_i32_0 = arith.constant 0 : i32
    %c0_i32_1 = arith.constant 0 : i32
    return %arg0, %c0_i32, %c0_i32_0 : i32, i32, i32
  }
}

</mosaic_0001>

<llo_original>
// kernel: tpu_custom_call.1
$region0: #{tpu_custom_call.1}
  #allocation0 [shape = 'u32[]', space=smem, size = 0x4, offset = 0x4, fixed_abs, tag = 'smem constant byte address 0x4 - core index']
  #allocation1 [shape = 'u32[144,128]{1,0:T(1,128)}', space=vmem, size = 0x12000, scoped, tag = 'internal scratch']
  #allocation2 [shape = 'bf16[288,384]{1,0:T(16,128)(2,1)}', space=vmem, size = 0x36000, scoped, tag = 'scratch operand']
  %s0 = inlined_call_operand.hbm [shape: bf16[2,256,128], index: 0, kind: input, shape index: {}]
  %s1 = inlined_call_operand.hbm [shape: bf16[128,256], index: 1, kind: input, shape index: {}]
  %s2 = inlined_call_operand.vmem [shape: f32[1,128], index: 2, kind: input, shape index: {}]
  %s3 = inlined_call_operand.hbm [shape: bf16[3,384,128], index: 3, kind: input, shape index: {}]
  %s4 = inlined_call_operand.vmem [shape: f32[1,128], index: 4, kind: input, shape index: {}]
  %s5 = inlined_call_operand.hbm [shape: bf16[128,128], index: 5, kind: input, shape index: {}]
  %s6 = inlined_call_operand.vmem [shape: f32[1,128], index: 6, kind: input, shape index: {}]
  %s7 = inlined_call_operand.hbm [shape: f32[2,256,128], index: 7, kind: output, shape index: {}]
  %s8 = sld [smem:[#allocation0]]
  $region77: #{tpu_custom_call.1} parent=0
    _
  %s10 = ssub.s32 1, %s8
  %s11 = scalar_select 0, %s10, %s8
  $region1: #{tpu_custom_call.1} parent=0
    #allocation3 [shape = 'u8[131072]{0}', space=vmem, size = 0x20000, scoped, tag = 'input window, operand 0']
    #allocation4 [shape = 's32[2]{0}', space=sflag, size = 0x8, scoped, tag = 'scoped memory for tpu_custom_call.1']
    #allocation5 [shape = 's32[2]{0}', space=sflag, size = 0x8, scoped, tag = 'scoped memory for tpu_custom_call.1']
    #allocation6 [shape = 'u8[65536]{0}', space=vmem, size = 0x10000, scoped, tag = 'input window, operand 1, single buffered']
    #allocation7 [shape = 's32[1]{0}', space=sflag, size = 0x4, scoped, tag = 'scoped memory for tpu_custom_call.1']
    #allocation8 [shape = 'u8[294912]{0}', space=vmem, size = 0x48000, scoped, tag = 'input window, operand 3, single buffered']
    #allocation9 [shape = 'u8[32768]{0}', space=vmem, size = 0x8000, scoped, tag = 'input window, operand 5, single buffered']
    #allocation10 [shape = 's32[1]{0}', space=sflag, size = 0x4, scoped, tag = 'scoped memory for tpu_custom_call.1']
    #allocation11 [shape = 'u8[262144]{0}', space=vmem, size = 0x40000, scoped, tag = 'output window, operand 0']
    %12 = vsyncpa [#allocation4], 0
    %s13 = scalar_lea.sflag [#allocation4], 1
    %14 = vsyncpa %s13, 0
    %15 = vsyncpa [#allocation7], 0
    %16 = vsyncpa [#allocation10], 0
    %17 = vsyncpa [#allocation5], 0
    %s18 = scalar_lea.sflag [#allocation5], 1
    %19 = vsyncpa %s18, 0
    loop: start=0, step=1, limit=4
    $region2: #{tpu_custom_call.1} parent=1 // loop_pre_header
      _
    $region3: #{tpu_custom_call.1} parent=1 // loop_header
      %s21 = sphi 0, %s25
      %p22 = scmp.ge.s32.totalorder %s21, 4
      %s31 = sphi 0, %s33
      %s34 = sphi 0, %s31
      %s35 = sphi 0, %s34
      %s51 = sphi 0, %s35
      %s55 = sphi 0, %s55
      %s57 = sphi 0, %s55
      %s58 = sphi 0, %s57
      %s72 = sphi 0, %s58
      %s76 = sphi 0, %s76
      %s78 = sphi 0, %s76
      %s79 = sphi 0, %s78
      %s93 = sphi 0, %s79
      %s97 = sphi 0, %s97
      %s99 = sphi 0, %s97
      %s100 = sphi 0, %s99
      %s114 = sphi 0, %s100
      %s118 = sphi 0, %s118
      %s120 = sphi 0, %s118
      %s121 = sphi 0, %s120
      %s135 = sphi 0, %s121
      %s139 = sphi 0, %s139
      %s141 = sphi 0, %s139
      %s142 = sphi 0, %s141
      %s156 = sphi 0, %s142
      %s160 = sphi 0, %s160
      %s162 = sphi 0, %s160
      %s163 = sphi 0, %s162
      %s177 = sphi 0, %s163
      %s183 = sphi 0, %s185
      %s186 = sphi 0, %s183
      %s187 = sphi 0, %s186
      %s203 = sphi 0, %s187
    $region4: #{tpu_custom_call.1} parent=1 // loop_header_branch
      %24 = sbr.rel (%p22) target = $region8
    $region5: #{tpu_custom_call.1} parent=1 // loop_body
      %s26 = ssub.s32 %s21, 1
      %s27 = ssub.s32 %s21, 2
      %s28 = sadd.s32 %s21, 1
      %s29 = ssub.s32 %s21, %s28
      %p30 = scmp.eq.s32.totalorder %s29, 0
      %s32 = sadd.s32 %s31, 1
      %s33 = scalar_select %p30, %s31, %s32
      %p36 = pneg %p30
      %p37 = scmp.eq.s32.totalorder %s21, 1
      %p38 = por %p36, %p37
      %p39 = scmp.ne.s32.totalorder %s31, %s34
      %p40 = scmp.eq.s32.totalorder %s21, 0
      %p41 = por %p39, %p40
      %p42 = scmp.ne.s32.totalorder %s31, %s34
      %p43 = scmp.eq.s32.totalorder %s26, 1
      %p44 = por %p42, %p43
      %p45 = scmp.ne.s32.totalorder %s34, %s35
      %p46 = scmp.eq.s32.totalorder %s26, 0
      %p47 = por %p45, %p46
      %p48 = scmp.ne.s32.totalorder %s34, %s35
      %p49 = scmp.eq.s32.totalorder %s27, 1
      %p50 = por %p48, %p49
      %p52 = scmp.ne.s32.totalorder %s35, %s51
      %p53 = scmp.eq.s32.totalorder %s27, 0
      %p54 = por %p52, %p53
      %s56 = sadd.s32 %s55, 1
      %p59 = scmp.eq.s32.totalorder %s21, 1
      %p60 = scmp.ne.s32.totalorder %s55, %s57
      %p61 = scmp.eq.s32.totalorder %s21, 0
      %p62 = por %p60, %p61
      %p63 = scmp.ne.s32.totalorder %s55, %s57
      %p64 = scmp.eq.s32.totalorder %s26, 1
      %p65 = por %p63, %p64
      %p66 = scmp.ne.s32.totalorder %s57, %s58
      %p67 = scmp.eq.s32.totalorder %s26, 0
      %p68 = por %p66, %p67
      %p69 = scmp.ne.s32.totalorder %s57, %s58
      %p70 = scmp.eq.s32.totalorder %s27, 1
      %p71 = por %p69, %p70
      %p73 = scmp.ne.s32.totalorder %s58, %s72
      %p74 = scmp.eq.s32.totalorder %s27, 0
      %p75 = por %p73, %p74
      %s77 = sadd.s32 %s76, 1
      %p80 = scmp.eq.s32.totalorder %s21, 1
      %p81 = scmp.ne.s32.totalorder %s76, %s78
      %p82 = scmp.eq.s32.totalorder %s21, 0
      %p83 = por %p81, %p82
      %p84 = scmp.ne.s32.totalorder %s76, %s78
      %p85 = scmp.eq.s32.totalorder %s26, 1
      %p86 = por %p84, %p85
      %p87 = scmp.ne.s32.totalorder %s78, %s79
      %p88 = scmp.eq.s32.totalorder %s26, 0
      %p89 = por %p87, %p88
      %p90 = scmp.ne.s32.totalorder %s78, %s79
      %p91 = scmp.eq.s32.totalorder %s27, 1
      %p92 = por %p90, %p91
      %p94 = scmp.ne.s32.totalorder %s79, %s93
      %p95 = scmp.eq.s32.totalorder %s27, 0
      %p96 = por %p94, %p95
      %s98 = sadd.s32 %s97, 1
      %p101 = scmp.eq.s32.totalorder %s21, 1
      %p102 = scmp.ne.s32.totalorder %s97, %s99
      %p103 = scmp.eq.s32.totalorder %s21, 0
      %p104 = por %p102, %p103
      %p105 = scmp.ne.s32.totalorder %s97, %s99
      %p106 = scmp.eq.s32.totalorder %s26, 1
      %p107 = por %p105, %p106
      %p108 = scmp.ne.s32.totalorder %s99, %s100
      %p109 = scmp.eq.s32.totalorder %s26, 0
      %p110 = por %p108, %p109
      %p111 = scmp.ne.s32.totalorder %s99, %s100
      %p112 = scmp.eq.s32.totalorder %s27, 1
      %p113 = por %p111, %p112
      %p115 = scmp.ne.s32.totalorder %s100, %s114
      %p116 = scmp.eq.s32.totalorder %s27, 0
      %p117 = por %p115, %p116
      %s119 = sadd.s32 %s118, 1
      %p122 = scmp.eq.s32.totalorder %s21, 1
      %p123 = scmp.ne.s32.totalorder %s118, %s120
      %p124 = scmp.eq.s32.totalorder %s21, 0
      %p125 = por %p123, %p124
      %p126 = scmp.ne.s32.totalorder %s118, %s120
      %p127 = scmp.eq.s32.totalorder %s26, 1
      %p128 = por %p126, %p127
      %p129 = scmp.ne.s32.totalorder %s120, %s121
      %p130 = scmp.eq.s32.totalorder %s26, 0
      %p131 = por %p129, %p130
      %p132 = scmp.ne.s32.totalorder %s120, %s121
      %p133 = scmp.eq.s32.totalorder %s27, 1
      %p134 = por %p132, %p133
      %p136 = scmp.ne.s32.totalorder %s121, %s135
      %p137 = scmp.eq.s32.totalorder %s27, 0
      %p138 = por %p136, %p137
      %s140 = sadd.s32 %s139, 1
      %p143 = scmp.eq.s32.totalorder %s21, 1
      %p144 = scmp.ne.s32.totalorder %s139, %s141
      %p145 = scmp.eq.s32.totalorder %s21, 0
      %p146 = por %p144, %p145
      %p147 = scmp.ne.s32.totalorder %s139, %s141
      %p148 = scmp.eq.s32.totalorder %s26, 1
      %p149 = por %p147, %p148
      %p150 = scmp.ne.s32.totalorder %s141, %s142
      %p151 = scmp.eq.s32.totalorder %s26, 0
      %p152 = por %p150, %p151
      %p153 = scmp.ne.s32.totalorder %s141, %s142
      %p154 = scmp.eq.s32.totalorder %s27, 1
      %p155 = por %p153, %p154
      %p157 = scmp.ne.s32.totalorder %s142, %s156
      %p158 = scmp.eq.s32.totalorder %s27, 0
      %p159 = por %p157, %p158
      %s161 = sadd.s32 %s160, 1
      %p164 = scmp.eq.s32.totalorder %s21, 1
      %p165 = scmp.ne.s32.totalorder %s160, %s162
      %p166 = scmp.eq.s32.totalorder %s21, 0
      %p167 = por %p165, %p166
      %p168 = scmp.ne.s32.totalorder %s160, %s162
      %p169 = scmp.eq.s32.totalorder %s26, 1
      %p170 = por %p168, %p169
      %p171 = scmp.ne.s32.totalorder %s162, %s163
      %p172 = scmp.eq.s32.totalorder %s26, 0
      %p173 = por %p171, %p172
      %p174 = scmp.ne.s32.totalorder %s162, %s163
      %p175 = scmp.eq.s32.totalorder %s27, 1
      %p176 = por %p174, %p175
      %p178 = scmp.ne.s32.totalorder %s163, %s177
      %p179 = scmp.eq.s32.totalorder %s27, 0
      %p180 = por %p178, %p179
      %s181 = ssub.s32 %s21, %s28
      %p182 = scmp.eq.s32.totalorder %s181, 0
      %s184 = sadd.s32 %s183, 1
      %s185 = scalar_select %p182, %s183, %s184
      %p188 = pneg %p182
      %p189 = scmp.eq.s32.totalorder %s21, 1
      %p190 = por %p188, %p189
      %p191 = scmp.ne.s32.totalorder %s183, %s186
      %p192 = scmp.eq.s32.totalorder %s21, 0
      %p193 = por %p191, %p192
      %p194 = scmp.ne.s32.totalorder %s183, %s186
      %p195 = scmp.eq.s32.totalorder %s26, 1
      %p196 = por %p194, %p195
      %p197 = scmp.ne.s32.totalorder %s186, %s187
      %p198 = scmp.eq.s32.totalorder %s26, 0
      %p199 = por %p197, %p198
      %p200 = scmp.ne.s32.totalorder %s186, %s187
      %p201 = scmp.eq.s32.totalorder %s27, 1
      %p202 = por %p200, %p201
      %p204 = scmp.ne.s32.totalorder %s187, %s203
      %p205 = scmp.eq.s32.totalorder %s27, 0
      %p206 = por %p204, %p205
      %p207 = scmp.le.s32.totalorder 1, %s21
      %p208 = scmp.lt.s32.totalorder %s21, 3
      %p209 = pnand %p207, %p208
      %p210 = pneg %p209
      // Predicated region
      $region9: #{tpu_custom_call.1} parent=5 // pred_check
        _
      $region10: #{tpu_custom_call.1} parent=5 // pred_check_branch
        %212 = sbr.rel (%p209) target = $region12
      $region11: #{tpu_custom_call.1} parent=5 // pred_region
        %s213 = ssub.s32 %s21, 1
        // Predicated region
        $region13: #{tpu_custom_call.1} parent=11 // pred_check
          %p214 = pneg %p68
        $region14: #{tpu_custom_call.1} parent=11 // pred_check_branch
          %216 = sbr.rel (%p214) target = $region16
        $region15: #{tpu_custom_call.1} parent=11 // pred_region
          %s218 = ssub.s32 2048, 2048
          %219 = vsyncadd [#allocation7], %s218
          %s220 = sshll.u32 [#allocation6], 4
          %s221 = int_to_ptr.vmem [resolvable:$true] %s220
          %226 = dma.hbm_to_vmem [thread:$0]  %s1, 2048, %s221, [#allocation7], 128, 128, 8
        $region16: #{tpu_custom_call.1} parent=11 // pred_fallthru
          _
        // Predicated region
        $region17: #{tpu_custom_call.1} parent=11 // pred_check
          %p227 = pneg %p89
        $region18: #{tpu_custom_call.1} parent=11 // pred_check_branch
          %229 = sbr.rel (%p227) target = $region20
        $region19: #{tpu_custom_call.1} parent=11 // pred_region
          _
        $region20: #{tpu_custom_call.1} parent=11 // pred_fallthru
          _
        // Predicated region
        $region21: #{tpu_custom_call.1} parent=11 // pred_check
          %p230 = pneg %p110
        $region22: #{tpu_custom_call.1} parent=11 // pred_check_branch
          %232 = sbr.rel (%p230) target = $region24
        $region23: #{tpu_custom_call.1} parent=11 // pred_region
          %s234 = ssub.s32 9216, 9216
          %235 = vsyncadd [#allocation7], %s234
          %s236 = sshll.u32 [#allocation8], 4
          %s237 = int_to_ptr.vmem [resolvable:$true] %s236
          %242 = dma.hbm_to_vmem [thread:$0]  %s3, 9216, %s237, [#allocation7], 64, 64, 4
        $region24: #{tpu_custom_call.1} parent=11 // pred_fallthru
          _
        // Predicated region
        $region25: #{tpu_custom_call.1} parent=11 // pred_check
          %p243 = pneg %p131
        $region26: #{tpu_custom_call.1} parent=11 // pred_check_branch
          %245 = sbr.rel (%p243) target = $region28
        $region27: #{tpu_custom_call.1} parent=11 // pred_region
          _
        $region28: #{tpu_custom_call.1} parent=11 // pred_fallthru
          _
        // Predicated region
        $region29: #{tpu_custom_call.1} parent=11 // pred_check
          %p246 = pneg %p152
        $region30: #{tpu_custom_call.1} parent=11 // pred_check_branch
          %248 = sbr.rel (%p246) target = $region32
        $region31: #{tpu_custom_call.1} parent=11 // pred_region
          %s250 = ssub.s32 1024, 1024
          %251 = vsyncadd [#allocation10], %s250
          %s252 = sshll.u32 [#allocation9], 4
          %s253 = int_to_ptr.vmem [resolvable:$true] %s252
          %258 = dma.hbm_to_vmem [thread:$0]  %s5, 1024, %s253, [#allocation10], 64, 64, 4
        $region32: #{tpu_custom_call.1} parent=11 // pred_fallthru
          _
        // Predicated region
        $region33: #{tpu_custom_call.1} parent=11 // pred_check
          %p259 = pneg %p173
        $region34: #{tpu_custom_call.1} parent=11 // pred_check_branch
          %261 = sbr.rel (%p259) target = $region36
        $region35: #{tpu_custom_call.1} parent=11 // pred_region
          _
        $region36: #{tpu_custom_call.1} parent=11 // pred_fallthru
          _
      $region12: #{tpu_custom_call.1} parent=5 // pred_fallthru
        _
      %p262 = scmp.lt.s32.totalorder %s21, 2
      // Predicated region
      $region37: #{tpu_custom_call.1} parent=5 // pred_check
        %p263 = pneg %p262
      $region38: #{tpu_custom_call.1} parent=5 // pred_check_branch
        %265 = sbr.rel (%p263) target = $region40
      $region39: #{tpu_custom_call.1} parent=5 // pred_region
        // Predicated region
        $region41: #{tpu_custom_call.1} parent=39 // pred_check
          %p266 = pneg %p41
        $region42: #{tpu_custom_call.1} parent=39 // pred_check_branch
          %268 = sbr.rel (%p266) target = $region44
        $region43: #{tpu_custom_call.1} parent=39 // pred_region
          %s269 = sand.u32 %s31, 1
          %s270 = scalar_lea.sflag [#allocation4], %s269
          %s271 = sand.u32 %s31, 1
          %s272 = smul.addr %s271, 128
          %s273 = scalar_lea.vmem [#allocation3], %s272
          %s275 = ssub.s32 2048, 2048
          %276 = vsyncadd %s270, %s275
          %s277 = smul.addr %s21, 32
          %s278 = smul.addr %s277, 64
          %s279 = scalar_lea.hbm %s0, %s278
          %s280 = sshll.u32 %s273, 4
          %s281 = int_to_ptr.vmem [resolvable:$true] %s280
          %286 = dma.hbm_to_vmem [thread:$0]  %s279, 2048, %s281, %s270, 64, 64, 4
        $region44: #{tpu_custom_call.1} parent=39 // pred_fallthru
          _
      $region40: #{tpu_custom_call.1} parent=5 // pred_fallthru
        _
      %p287 = scmp.le.s32.totalorder 1, %s21
      %p288 = scmp.lt.s32.totalorder %s21, 3
      %p289 = pnand %p287, %p288
      %p290 = pneg %p289
      // Predicated region
      $region45: #{tpu_custom_call.1} parent=5 // pred_check
        _
      $region46: #{tpu_custom_call.1} parent=5 // pred_check_branch
        %292 = sbr.rel (%p289) target = $region48
      $region47: #{tpu_custom_call.1} parent=5 // pred_region
        %s293 = ssub.s32 %s21, 1
        %s294 = sand.u32 %s34, 1
        %s295 = scalar_lea.sflag [#allocation4], %s294
        %s296 = sand.u32 %s34, 1
        %s297 = smul.addr %s296, 128
        %s298 = scalar_lea.vmem [#allocation3], %s297
        // Predicated region
        $region49: #{tpu_custom_call.1} parent=47 // pred_check
          %p299 = pneg %p47
        $region50: #{tpu_custom_call.1} parent=47 // pred_check_branch
          %301 = sbr.rel (%p299) target = $region52
        $region51: #{tpu_custom_call.1} parent=47 // pred_region
          %302 = dma.done %s295, 2048
        $region52: #{tpu_custom_call.1} parent=47 // pred_fallthru
          _
        // Predicated region
        $region53: #{tpu_custom_call.1} parent=47 // pred_check
          %p303 = pneg %p68
        $region54: #{tpu_custom_call.1} parent=47 // pred_check_branch
          %305 = sbr.rel (%p303) target = $region56
        $region55: #{tpu_custom_call.1} parent=47 // pred_region
          %306 = dma.done [#allocation7], 2048
        $region56: #{tpu_custom_call.1} parent=47 // pred_fallthru
          _
        // Predicated region
        $region57: #{tpu_custom_call.1} parent=47 // pred_check
          %p307 = pneg %p110
        $region58: #{tpu_custom_call.1} parent=47 // pred_check_branch
          %309 = sbr.rel (%p307) target = $region60
        $region59: #{tpu_custom_call.1} parent=47 // pred_region
          %310 = dma.done [#allocation7], 9216
        $region60: #{tpu_custom_call.1} parent=47 // pred_fallthru
          _
        // Predicated region
        $region61: #{tpu_custom_call.1} parent=47 // pred_check
          %p311 = pneg %p152
        $region62: #{tpu_custom_call.1} parent=47 // pred_check_branch
          %313 = sbr.rel (%p311) target = $region64
        $region63: #{tpu_custom_call.1} parent=47 // pred_region
          %314 = dma.done [#allocation10], 1024
        $region64: #{tpu_custom_call.1} parent=47 // pred_fallthru
          _
        %s315 = sand.u32 %s34, 1
        %s316 = scalar_lea.sflag [#allocation4], %s315
        %s317 = sand.u32 %s34, 1
        %s318 = smul.addr %s317, 128
        %s319 = scalar_lea.vmem [#allocation3], %s318
        %p320 = pneg %p47
        %p321 = pneg %p44
        %p322 = pneg %p68
        %p323 = pneg %p65
        %p324 = pneg %p89
        %p325 = pneg %p86
        %p326 = pneg %p110
        %p327 = pneg %p107
        %p328 = pneg %p131
        %p329 = pneg %p128
        %p330 = pneg %p152
        %p331 = pneg %p149
        %p332 = pneg %p173
        %p333 = pneg %p170
        %p334 = pneg %p199
        %p335 = pneg %p196
        %s336 = sand.u32 %s186, 1
        %s337 = scalar_lea.sflag [#allocation5], %s336
        %s338 = sand.u32 %s186, 1
        %s339 = smul.addr %s338, 256
        %s340 = scalar_lea.vmem [#allocation11], %s339
        %344 = vst [vmem:[#allocation2] sm:$0xff] 0
        %345 = vst [vmem:[#allocation2 + $0x8] sm:$0xff] 0
        %346 = vst [vmem:[#allocation2 + $0x10] sm:$0xff] 0
        %vm347 = vcmask 1040384
        %vm348 = vsmask.f32 256
        %vm349 = vmand %vm347, %vm348
        %v350 = vld [vmem:[#allocation2 + $0x18] sm:$0x1]
        %v351 = vsel %vm349, 0, %v350
        %352 = vst [vmem:[#allocation2 + $0x18] sm:$0x1] %v351
        %v353 = vld [vmem:[#allocation2 + $0x20] sm:$0x1]
        %v354 = vsel %vm349, 0, %v353
        %355 = vst [vmem:[#allocation2 + $0x20] sm:$0x1] %v354
        %v356 = vld [vmem:[#allocation2 + $0x28] sm:$0x1]
        %v357 = vsel %vm349, 0, %v356
        %358 = vst [vmem:[#allocation2 + $0x28] sm:$0x1] %v357
        %vm359 = vcmask 1047559
        %vm360 = vsmask.f32 7966
        %vm361 = vmand %vm359, %vm360
        %v362 = vld [vmem:[#allocation2 + $0x180] sm:$0x80]
        %v363 = vsel %vm361, 0, %v362
        %364 = vst [vmem:[#allocation2 + $0x180] sm:$0x80] %v363
        %v365 = vld [vmem:[#allocation2 + $0x188] sm:$0x80]
        %v366 = vsel %vm361, 0, %v365
        %367 = vst [vmem:[#allocation2 + $0x188] sm:$0x80] %v366
        %v368 = vld [vmem:[#allocation2 + $0x190] sm:$0x80]
        %v369 = vsel %vm361, 0, %v368
        %370 = vst [vmem:[#allocation2 + $0x190] sm:$0x80] %v369
        %371 = vst [vmem:[#allocation2 + $0x198] sm:$0xff] 0
        %372 = vst [vmem:[#allocation2 + $0x1a0] sm:$0xff] 0
        %373 = vst [vmem:[#allocation2 + $0x1a8] sm:$0xff] 0
        %v374 = vld [vmem:[%s298] sm:$0xf]
        %v375 = vld [vmem:[%s298 + $0x4] sm:$0xf]
        %v376 = vld [vmem:[%s298 + $0x8] sm:$0xf]
        %v377 = vld [vmem:[%s298 + $0xc] sm:$0xf]
        %v378 = vld [vmem:[%s298 + $0x10] sm:$0xf]
        %v379 = vld [vmem:[%s298 + $0x14] sm:$0xf]
        %v380 = vld [vmem:[%s298 + $0x18] sm:$0xf]
        %v381 = vld [vmem:[%s298 + $0x1c] sm:$0xf]
        %v382 = vld [vmem:[%s298 + $0x20] sm:$0xf]
        %v383 = vld [vmem:[%s298 + $0x24] sm:$0xf]
        %v384 = vld [vmem:[%s298 + $0x28] sm:$0xf]
        %v385 = vld [vmem:[%s298 + $0x2c] sm:$0xf]
        %v386 = vld [vmem:[%s298 + $0x30] sm:$0xf]
        %v387 = vld [vmem:[%s298 + $0x34] sm:$0xf]
        %v388 = vld [vmem:[%s298 + $0x38] sm:$0xf]
        %v389 = vld [vmem:[%s298 + $0x3c] sm:$0xf]
        %v390 = vld [vmem:[%s298 + $0x40] sm:$0xf]
        %v391 = vld [vmem:[%s298 + $0x44] sm:$0xf]
        %v392 = vld [vmem:[%s298 + $0x48] sm:$0xf]
        %v393 = vld [vmem:[%s298 + $0x4c] sm:$0xf]
        %v394 = vld [vmem:[%s298 + $0x50] sm:$0xf]
        %v395 = vld [vmem:[%s298 + $0x54] sm:$0xf]
        %v396 = vld [vmem:[%s298 + $0x58] sm:$0xf]
        %v397 = vld [vmem:[%s298 + $0x5c] sm:$0xf]
        %v398 = vld [vmem:[%s298 + $0x60] sm:$0xf]
        %v399 = vld [vmem:[%s298 + $0x64] sm:$0xf]
        %v400 = vld [vmem:[%s298 + $0x68] sm:$0xf]
        %v401 = vld [vmem:[%s298 + $0x6c] sm:$0xf]
        %v402 = vld [vmem:[%s298 + $0x70] sm:$0xf]
        %v403 = vld [vmem:[%s298 + $0x74] sm:$0xf]
        %v404 = vld [vmem:[%s298 + $0x78] sm:$0xf]
        %v405 = vld [vmem:[%s298 + $0x7c] sm:$0xf]
        %v406 = vld [vmem:[#allocation6] sm:$0xff]
        %v407 = vld [vmem:[#allocation6 + $0x8] sm:$0xff]
        %v408 = vld [vmem:[#allocation6 + $0x10] sm:$0xff]
        %v409 = vld [vmem:[#allocation6 + $0x18] sm:$0xff]
        %v410 = vld [vmem:[#allocation6 + $0x20] sm:$0xff]
        %v411 = vld [vmem:[#allocation6 + $0x28] sm:$0xff]
        %v412 = vld [vmem:[#allocation6 + $0x30] sm:$0xff]
        %v413 = vld [vmem:[#allocation6 + $0x38] sm:$0xff]
        %v414 = vld [vmem:[#allocation6 + $0x40] sm:$0xff]
        %v415 = vld [vmem:[#allocation6 + $0x48] sm:$0xff]
        %v416 = vld [vmem:[#allocation6 + $0x50] sm:$0xff]
        %v417 = vld [vmem:[#allocation6 + $0x58] sm:$0xff]
        %v418 = vld [vmem:[#allocation6 + $0x60] sm:$0xff]
        %v419 = vld [vmem:[#allocation6 + $0x68] sm:$0xff]
        %v420 = vld [vmem:[#allocation6 + $0x70] sm:$0xff]
        %v421 = vld [vmem:[#allocation6 + $0x78] sm:$0xff]
        %v454 = vunpack.c.l.b16 %v374
        %v455 = vunpack.c.l.b16 %v375
        %v456 = vunpack.c.l.b16 %v376
        %v457 = vunpack.c.l.b16 %v377
        %v458 = vunpack.c.l.b16 %v378
        %v459 = vunpack.c.l.b16 %v379
        %v460 = vunpack.c.l.b16 %v380
        %v461 = vunpack.c.l.b16 %v381
        %v462 = vunpack.c.l.b16 %v382
        %v463 = vunpack.c.l.b16 %v383
        %v464 = vunpack.c.l.b16 %v384
        %v465 = vunpack.c.l.b16 %v385
        %v466 = vunpack.c.l.b16 %v386
        %v467 = vunpack.c.l.b16 %v387
        %v468 = vunpack.c.l.b16 %v388
        %v469 = vunpack.c.l.b16 %v389
        %v470 = vunpack.c.l.b16 %v390
        %v471 = vunpack.c.l.b16 %v391
        %v472 = vunpack.c.l.b16 %v392
        %v473 = vunpack.c.l.b16 %v393
        %v474 = vunpack.c.l.b16 %v394
        %v475 = vunpack.c.l.b16 %v395
        %v476 = vunpack.c.l.b16 %v396
        %v477 = vunpack.c.l.b16 %v397
        %v478 = vunpack.c.l.b16 %v398
        %v479 = vunpack.c.l.b16 %v399
        %v480 = vunpack.c.l.b16 %v400
        %v481 = vunpack.c.l.b16 %v401
        %v482 = vunpack.c.l.b16 %v402
        %v483 = vunpack.c.l.b16 %v403
        %v484 = vunpack.c.l.b16 %v404
        %v485 = vunpack.c.l.b16 %v405
        %v486 = vpack.c.b16 %v455, %v454
        %v487 = vpack.c.b16 %v457, %v456
        %v488 = vpack.c.b16 %v459, %v458
        %v489 = vpack.c.b16 %v461, %v460
        %v490 = vpack.c.b16 %v463, %v462
        %v491 = vpack.c.b16 %v465, %v464
        %v492 = vpack.c.b16 %v467, %v466
        %v493 = vpack.c.b16 %v469, %v468
        %v494 = vpack.c.b16 %v471, %v470
        %v495 = vpack.c.b16 %v473, %v472
        %v496 = vpack.c.b16 %v475, %v474
        %v497 = vpack.c.b16 %v477, %v476
        %v498 = vpack.c.b16 %v479, %v478
        %v499 = vpack.c.b16 %v481, %v480
        %v500 = vpack.c.b16 %v483, %v482
        %v501 = vpack.c.b16 %v485, %v484
        %v534 = vunpack.c.l.b16 %v406
        %v535 = vunpack.c.h.b16 %v406
        %v536 = vunpack.c.l.b16 %v407
        %v537 = vunpack.c.h.b16 %v407
        %v538 = vunpack.c.l.b16 %v408
        %v539 = vunpack.c.h.b16 %v408
        %v540 = vunpack.c.l.b16 %v409
        %v541 = vunpack.c.h.b16 %v409
        %v542 = vunpack.c.l.b16 %v410
        %v543 = vunpack.c.h.b16 %v410
        %v544 = vunpack.c.l.b16 %v411
        %v545 = vunpack.c.h.b16 %v411
        %v546 = vunpack.c.l.b16 %v412
        %v547 = vunpack.c.h.b16 %v412
        %v548 = vunpack.c.l.b16 %v413
        %v549 = vunpack.c.h.b16 %v413
        %v550 = vunpack.c.l.b16 %v414
        %v551 = vunpack.c.h.b16 %v414
        %v552 = vunpack.c.l.b16 %v415
        %v553 = vunpack.c.h.b16 %v415
        %v554 = vunpack.c.l.b16 %v416
        %v555 = vunpack.c.h.b16 %v416
        %v556 = vunpack.c.l.b16 %v417
        %v557 = vunpack.c.h.b16 %v417
        %v558 = vunpack.c.l.b16 %v418
        %v559 = vunpack.c.h.b16 %v418
        %v560 = vunpack.c.l.b16 %v419
        %v561 = vunpack.c.h.b16 %v419
        %v562 = vunpack.c.l.b16 %v420
        %v563 = vunpack.c.h.b16 %v420
        %v564 = vunpack.c.l.b16 %v421
        %v565 = vunpack.c.h.b16 %v421
        %v566 = vpack.c.b16 %v536, %v534
        %v567 = vpack.c.b16 %v537, %v535
        %v568 = vpack.c.b16 %v540, %v538
        %v569 = vpack.c.b16 %v541, %v539
        %v570 = vpack.c.b16 %v544, %v542
        %v571 = vpack.c.b16 %v545, %v543
        %v572 = vpack.c.b16 %v548, %v546
        %v573 = vpack.c.b16 %v549, %v547
        %v574 = vpack.c.b16 %v552, %v550
        %v575 = vpack.c.b16 %v553, %v551
        %v576 = vpack.c.b16 %v556, %v554
        %v577 = vpack.c.b16 %v557, %v555
        %v578 = vpack.c.b16 %v560, %v558
        %v579 = vpack.c.b16 %v561, %v559
        %v580 = vpack.c.b16 %v564, %v562
        %v581 = vpack.c.b16 %v565, %v563
        %598 = vmatprep.subr.bf16.mxu0 %v567
        %599 = vmatpush1.bf16.msra.mxu0 %v566
        %600 = vmatprep.subr.bf16.mxu0 %v569
        %601 = vmatpush1.bf16.msra.mxu0 %v568
        %602 = vmatprep.subr.bf16.mxu0 %v571
        %603 = vmatpush1.bf16.msra.mxu0 %v570
        %604 = vmatprep.subr.bf16.mxu0 %v573
        %605 = vmatpush1.bf16.msra.mxu0 %v572
        %606 = vmatprep.subr.bf16.mxu0 %v575
        %607 = vmatpush1.bf16.msra.mxu0 %v574
        %608 = vmatprep.subr.bf16.mxu0 %v577
        %609 = vmatpush1.bf16.msra.mxu0 %v576
        %610 = vmatprep.subr.bf16.mxu0 %v579
        %611 = vmatpush1.bf16.msra.mxu0 %v578
        %612 = vmatprep.subr.bf16.mxu0 %v581
        %613 = vmatpush1.bf16.msra.mxu0 %v580
        %614 = vmatprep.subr.bf16.mxu0 0
        %615 = vmatpush1.bf16.msra.mxu0 0
        %616 = vmatprep.subr.bf16.mxu0 0
        %617 = vmatpush1.bf16.msra.mxu0 0
        %618 = vmatprep.subr.bf16.mxu0 0
        %619 = vmatpush1.bf16.msra.mxu0 0
        %620 = vmatprep.subr.bf16.mxu0 0
        %621 = vmatpush1.bf16.msra.mxu0 0
        %622 = vmatprep.subr.bf16.mxu0 0
        %623 = vmatpush1.bf16.msra.mxu0 0
        %624 = vmatprep.subr.bf16.mxu0 0
        %625 = vmatpush1.bf16.msra.mxu0 0
        %626 = vmatprep.subr.bf16.mxu0 0
        %627 = vmatpush1.bf16.msra.mxu0 0
        %628 = vmatprep.subr.bf16.mxu0 0
        %629 = vmatpush1.bf16.msra.mxu0 0
        %630 = vmatprep.mubr.bf16.mxu0 0
        %631 = vmatmul.mubr.bf16.gmra.mrb[0].mxu0 %v486
        %v632 = vpop.f32.mrb[0].mxu0
        %v633 = vadd.f32 0.0, %v632
        %v634 = vpop.f32.mrb[0].mxu0
        %v635 = vadd.f32 0.0, %v634
        %v636 = vpop.f32.mrb[0].mxu0
        %v637 = vadd.f32 0.0, %v636
        %v638 = vpop.f32.mrb[0].mxu0
        %v639 = vadd.f32 0.0, %v638
        %640 = vmatprep.mubr.bf16.mxu0 0
        %641 = vmatmul.mubr.bf16.gmra.mrb[0].mxu0 %v487
        %v642 = vpop.f32.mrb[0].mxu0
        %v643 = vadd.f32 0.0, %v642
        %v644 = vpop.f32.mrb[0].mxu0
        %v645 = vadd.f32 0.0, %v644
        %v646 = vpop.f32.mrb[0].mxu0
        %v647 = vadd.f32 0.0, %v646
        %v648 = vpop.f32.mrb[0].mxu0
        %v649 = vadd.f32 0.0, %v648
        %650 = vmatprep.mubr.bf16.mxu0 0
        %651 = vmatmul.mubr.bf16.gmra.mrb[0].mxu0 %v488
        %v652 = vpop.f32.mrb[0].mxu0
        %v653 = vadd.f32 0.0, %v652
        %v654 = vpop.f32.mrb[0].mxu0
        %v655 = vadd.f32 0.0, %v654
        %v656 = vpop.f32.mrb[0].mxu0
        %v657 = vadd.f32 0.0, %v656
        %v658 = vpop.f32.mrb[0].mxu0
        %v659 = vadd.f32 0.0, %v658
        %660 = vmatprep.mubr.bf16.mxu0 0
        %661 = vmatmul.mubr.bf16.gmra.mrb[0].mxu0 %v489
        %v662 = vpop.f32.mrb[0].mxu0
        %v663 = vadd.f32 0.0, %v662
        %v664 = vpop.f32.mrb[0].mxu0
        %v665 = vadd.f32 0.0, %v664
        %v666 = vpop.f32.mrb[0].mxu0
        %v667 = vadd.f32 0.0, %v666
        %v668 = vpop.f32.mrb[0].mxu0
        %v669 = vadd.f32 0.0, %v668
        %670 = vmatprep.mubr.bf16.mxu0 0
        %671 = vmatmul.mubr.bf16.gmra.mrb[0].mxu0 %v490
        %v672 = vpop.f32.mrb[0].mxu0
        %v673 = vadd.f32 0.0, %v672
        %v674 = vpop.f32.mrb[0].mxu0
        %v675 = vadd.f32 0.0, %v674
        %v676 = vpop.f32.mrb[0].mxu0
        %v677 = vadd.f32 0.0, %v676
        %v678 = vpop.f32.mrb[0].mxu0
        %v679 = vadd.f32 0.0, %v678
        %680 = vmatprep.mubr.bf16.mxu0 0
        %681 = vmatmul.mubr.bf16.gmra.mrb[0].mxu0 %v491
        %v682 = vpop.f32.mrb[0].mxu0
        %v683 = vadd.f32 0.0, %v682
        %v684 = vpop.f32.mrb[0].mxu0
        %v685 = vadd.f32 0.0, %v684
        %v686 = vpop.f32.mrb[0].mxu0
        %v687 = vadd.f32 0.0, %v686
        %v688 = vpop.f32.mrb[0].mxu0
        %v689 = vadd.f32 0.0, %v688
        %690 = vmatprep.mubr.bf16.mxu0 0
        %691 = vmatmul.mubr.bf16.gmra.mrb[0].mxu0 %v492
        %v692 = vpop.f32.mrb[0].mxu0
        %v693 = vadd.f32 0.0, %v692
        %v694 = vpop.f32.mrb[0].mxu0
        %v695 = vadd.f32 0.0, %v694
        %v696 = vpop.f32.mrb[0].mxu0
        %v697 = vadd.f32 0.0, %v696
        %v698 = vpop.f32.mrb[0].mxu0
        %v699 = vadd.f32 0.0, %v698
        %700 = vmatprep.mubr.bf16.mxu0 0
        %701 = vmatmul.mubr.bf16.gmra.mrb[0].mxu0 %v493
        %v702 = vpop.f32.mrb[0].mxu0
        %v703 = vadd.f32 0.0, %v702
        %v704 = vpop.f32.mrb[0].mxu0
        %v705 = vadd.f32 0.0, %v704
        %v706 = vpop.f32.mrb[0].mxu0
        %v707 = vadd.f32 0.0, %v706
        %v708 = vpop.f32.mrb[0].mxu0
        %v709 = vadd.f32 0.0, %v708
        %710 = vmatprep.mubr.bf16.mxu0 0
        %711 = vmatmul.mubr.bf16.gmra.mrb[0].mxu0 %v494
        %v712 = vpop.f32.mrb[0].mxu0
        %v713 = vadd.f32 0.0, %v712
        %v714 = vpop.f32.mrb[0].mxu0
        %v715 = vadd.f32 0.0, %v714
        %v716 = vpop.f32.mrb[0].mxu0
        %v717 = vadd.f32 0.0, %v716
        %v718 = vpop.f32.mrb[0].mxu0
        %v719 = vadd.f32 0.0, %v718
        %720 = vmatprep.mubr.bf16.mxu0 0
        %721 = vmatmul.mubr.bf16.gmra.mrb[0].mxu0 %v495
        %v722 = vpop.f32.mrb[0].mxu0
        %v723 = vadd.f32 0.0, %v722
        %v724 = vpop.f32.mrb[0].mxu0
        %v725 = vadd.f32 0.0, %v724
        %v726 = vpop.f32.mrb[0].mxu0
        %v727 = vadd.f32 0.0, %v726
        %v728 = vpop.f32.mrb[0].mxu0
        %v729 = vadd.f32 0.0, %v728
        %730 = vmatprep.mubr.bf16.mxu0 0
        %731 = vmatmul.mubr.bf16.gmra.mrb[0].mxu0 %v496
        %v732 = vpop.f32.mrb[0].mxu0
        %v733 = vadd.f32 0.0, %v732
        %v734 = vpop.f32.mrb[0].mxu0
        %v735 = vadd.f32 0.0, %v734
        %v736 = vpop.f32.mrb[0].mxu0
        %v737 = vadd.f32 0.0, %v736
        %v738 = vpop.f32.mrb[0].mxu0
        %v739 = vadd.f32 0.0, %v738
        %740 = vmatprep.mubr.bf16.mxu0 0
        %741 = vmatmul.mubr.bf16.gmra.mrb[0].mxu0 %v497
        %v742 = vpop.f32.mrb[0].mxu0
        %v743 = vadd.f32 0.0, %v742
        %v744 = vpop.f32.mrb[0].mxu0
        %v745 = vadd.f32 0.0, %v744
        %v746 = vpop.f32.mrb[0].mxu0
        %v747 = vadd.f32 0.0, %v746
        %v748 = vpop.f32.mrb[0].mxu0
        %v749 = vadd.f32 0.0, %v748
        %750 = vmatprep.mubr.bf16.mxu0 0
        %751 = vmatmul.mubr.bf16.gmra.mrb[0].mxu0 %v498
        %v752 = vpop.f32.mrb[0].mxu0
        %v753 = vadd.f32 0.0, %v752
        %v754 = vpop.f32.mrb[0].mxu0
        %v755 = vadd.f32 0.0, %v754
        %v756 = vpop.f32.mrb[0].mxu0
        %v757 = vadd.f32 0.0, %v756
        %v758 = vpop.f32.mrb[0].mxu0
        %v759 = vadd.f32 0.0, %v758
        %760 = vmatprep.mubr.bf16.mxu0 0
        %761 = vmatmul.mubr.bf16.gmra.mrb[0].mxu0 %v499
        %v762 = vpop.f32.mrb[0].mxu0
        %v763 = vadd.f32 0.0, %v762
        %v764 = vpop.f32.mrb[0].mxu0
        %v765 = vadd.f32 0.0, %v764
        %v766 = vpop.f32.mrb[0].mxu0
        %v767 = vadd.f32 0.0, %v766
        %v768 = vpop.f32.mrb[0].mxu0
        %v769 = vadd.f32 0.0, %v768
        %770 = vmatprep.mubr.bf16.mxu0 0
        %771 = vmatmul.mubr.bf16.gmra.mrb[0].mxu0 %v500
        %v772 = vpop.f32.mrb[0].mxu0
        %v773 = vadd.f32 0.0, %v772
        %v774 = vpop.f32.mrb[0].mxu0
        %v775 = vadd.f32 0.0, %v774
        %v776 = vpop.f32.mrb[0].mxu0
        %v777 = vadd.f32 0.0, %v776
        %v778 = vpop.f32.mrb[0].mxu0
        %v779 = vadd.f32 0.0, %v778
        %780 = vmatprep.mubr.bf16.mxu0 0
        %781 = vmatmul.mubr.bf16.gmra.mrb[0].mxu0 %v501
        %v782 = vpop.f32.mrb[0].mxu0
        %v783 = vadd.f32 0.0, %v782
        %v784 = vpop.f32.mrb[0].mxu0
        %v785 = vadd.f32 0.0, %v784
        %v786 = vpop.f32.mrb[0].mxu0
        %v787 = vadd.f32 0.0, %v786
        %v788 = vpop.f32.mrb[0].mxu0
        %v789 = vadd.f32 0.0, %v788
        %790 = vdwg.mxu0
        %791 = vst [vmem:[%s340] sm:$0xff] %v635
        %792 = vst [vmem:[%s340 + $0x8] sm:$0xff] %v639
        %793 = vst [vmem:[%s340 + $0x10] sm:$0xff] %v645
        %794 = vst [vmem:[%s340 + $0x18] sm:$0xff] %v649
        %795 = vst [vmem:[%s340 + $0x20] sm:$0xff] %v655
        %796 = vst [vmem:[%s340 + $0x28] sm:$0xff] %v659
        %797 = vst [vmem:[%s340 + $0x30] sm:$0xff] %v665
        %798 = vst [vmem:[%s340 + $0x38] sm:$0xff] %v669
        %799 = vst [vmem:[%s340 + $0x40] sm:$0xff] %v675
        %800 = vst [vmem:[%s340 + $0x48] sm:$0xff] %v679
        %801 = vst [vmem:[%s340 + $0x50] sm:$0xff] %v685
        %802 = vst [vmem:[%s340 + $0x58] sm:$0xff] %v689
        %803 = vst [vmem:[%s340 + $0x60] sm:$0xff] %v695
        %804 = vst [vmem:[%s340 + $0x68] sm:$0xff] %v699
        %805 = vst [vmem:[%s340 + $0x70] sm:$0xff] %v705
        %806 = vst [vmem:[%s340 + $0x78] sm:$0xff] %v709
        %807 = vst [vmem:[%s340 + $0x80] sm:$0xff] %v715
        %808 = vst [vmem:[%s340 + $0x88] sm:$0xff] %v719
        %809 = vst [vmem:[%s340 + $0x90] sm:$0xff] %v725
        %810 = vst [vmem:[%s340 + $0x98] sm:$0xff] %v729
        %811 = vst [vmem:[%s340 + $0xa0] sm:$0xff] %v735
        %812 = vst [vmem:[%s340 + $0xa8] sm:$0xff] %v739
        %813 = vst [vmem:[%s340 + $0xb0] sm:$0xff] %v745
        %814 = vst [vmem:[%s340 + $0xb8] sm:$0xff] %v749
        %815 = vst [vmem:[%s340 + $0xc0] sm:$0xff] %v755
        %816 = vst [vmem:[%s340 + $0xc8] sm:$0xff] %v759
        %817 = vst [vmem:[%s340 + $0xd0] sm:$0xff] %v765
        %818 = vst [vmem:[%s340 + $0xd8] sm:$0xff] %v769
        %819 = vst [vmem:[%s340 + $0xe0] sm:$0xff] %v775
        %820 = vst [vmem:[%s340 + $0xe8] sm:$0xff] %v779
        %821 = vst [vmem:[%s340 + $0xf0] sm:$0xff] %v785
        %822 = vst [vmem:[%s340 + $0xf8] sm:$0xff] %v789
        %v823 = vld [vmem:[%s2] sm:$0x1]
        %v825 = vlaneseq
        %v826 = vshrl.u32 %v825, 7
        %v827 = vsub.s32 0, %v826
        %v828 = vrot.slane %v823, %v827
        %v830 = vadd.f32 %v633, %v828
        %v831 = vadd.f32 %v637, %v828
        %v832 = vadd.f32 %v643, %v828
        %v833 = vadd.f32 %v647, %v828
        %v834 = vadd.f32 %v653, %v828
        %v835 = vadd.f32 %v657, %v828
        %v836 = vadd.f32 %v663, %v828
        %v837 = vadd.f32 %v667, %v828
        %v838 = vadd.f32 %v673, %v828
        %v839 = vadd.f32 %v677, %v828
        %v840 = vadd.f32 %v683, %v828
        %v841 = vadd.f32 %v687, %v828
        %v842 = vadd.f32 %v693, %v828
        %v843 = vadd.f32 %v697, %v828
        %v844 = vadd.f32 %v703, %v828
        %v845 = vadd.f32 %v707, %v828
        %v846 = vadd.f32 %v713, %v828
        %v847 = vadd.f32 %v717, %v828
        %v848 = vadd.f32 %v723, %v828
        %v849 = vadd.f32 %v727, %v828
        %v850 = vadd.f32 %v733, %v828
        %v851 = vadd.f32 %v737, %v828
        %v852 = vadd.f32 %v743, %v828
        %v853 = vadd.f32 %v747, %v828
        %v854 = vadd.f32 %v753, %v828
        %v855 = vadd.f32 %v757, %v828
        %v856 = vadd.f32 %v763, %v828
        %v857 = vadd.f32 %v767, %v828
        %v858 = vadd.f32 %v773, %v828
        %v859 = vadd.f32 %v777, %v828
        %v860 = vadd.f32 %v783, %v828
        %v861 = vadd.f32 %v787, %v828
        %v862 = vmax.f32 %v830, 0.0
        %v863 = vmax.f32 %v831, 0.0
        %v864 = vmax.f32 %v832, 0.0
        %v865 = vmax.f32 %v833, 0.0
        %v866 = vmax.f32 %v834, 0.0
        %v867 = vmax.f32 %v835, 0.0
        %v868 = vmax.f32 %v836, 0.0
        %v869 = vmax.f32 %v837, 0.0
        %v870 = vmax.f32 %v838, 0.0
        %v871 = vmax.f32 %v839, 0.0
        %v872 = vmax.f32 %v840, 0.0
        %v873 = vmax.f32 %v841, 0.0
        %v874 = vmax.f32 %v842, 0.0
        %v875 = vmax.f32 %v843, 0.0
        %v876 = vmax.f32 %v844, 0.0
        %v877 = vmax.f32 %v845, 0.0
        %v878 = vmax.f32 %v846, 0.0
        %v879 = vmax.f32 %v847, 0.0
        %v880 = vmax.f32 %v848, 0.0
        %v881 = vmax.f32 %v849, 0.0
        %v882 = vmax.f32 %v850, 0.0
        %v883 = vmax.f32 %v851, 0.0
        %v884 = vmax.f32 %v852, 0.0
        %v885 = vmax.f32 %v853, 0.0
        %v886 = vmax.f32 %v854, 0.0
        %v887 = vmax.f32 %v855, 0.0
        %v888 = vmax.f32 %v856, 0.0
        %v889 = vmax.f32 %v857, 0.0
        %v890 = vmax.f32 %v858, 0.0
        %v891 = vmax.f32 %v859, 0.0
        %v892 = vmax.f32 %v860, 0.0
        %v893 = vmax.f32 %v861, 0.0
        %v894 = vpack.c.bf16 %v863, %v862
        %v895 = vpack.c.bf16 %v865, %v864
        %v896 = vpack.c.bf16 %v867, %v866
        %v897 = vpack.c.bf16 %v869, %v868
        %v898 = vpack.c.bf16 %v871, %v870
        %v899 = vpack.c.bf16 %v873, %v872
        %v900 = vpack.c.bf16 %v875, %v874
        %v901 = vpack.c.bf16 %v877, %v876
        %v902 = vpack.c.bf16 %v879, %v878
        %v903 = vpack.c.bf16 %v881, %v880
        %v904 = vpack.c.bf16 %v883, %v882
        %v905 = vpack.c.bf16 %v885, %v884
        %v906 = vpack.c.bf16 %v887, %v886
        %v907 = vpack.c.bf16 %v889, %v888
        %v908 = vpack.c.bf16 %v891, %v890
        %v909 = vpack.c.bf16 %v893, %v892
        %v910 = vlaneseq
        %v911 = vshrl.u32 %v910, 7
        %v912 = vadd.s32 %v911, 8
        %v913 = vadd.s32 %v911, 16
        %v914 = vadd.s32 %v911, 24
        %v915 = vadd.s32 %v911, 32
        %v916 = vadd.s32 %v911, 40
        %v917 = vadd.s32 %v911, 48
        %v918 = vadd.s32 %v911, 56
        %v919 = vadd.s32 %v911, 64
        %v920 = vadd.s32 %v911, 72
        %v921 = vadd.s32 %v911, 80
        %v922 = vadd.s32 %v911, 88
        %v923 = vadd.s32 %v911, 96
        %v924 = vadd.s32 %v911, 104
        %v925 = vadd.s32 %v911, 112
        %v926 = vadd.s32 %v911, 120
        %v927 = vadd.s32 %v911, 128
        %v928 = vadd.s32 %v911, 136
        %v929 = vadd.s32 %v911, 144
        %v930 = vadd.s32 %v911, 152
        %v931 = vadd.s32 %v911, 160
        %v932 = vadd.s32 %v911, 168
        %v933 = vadd.s32 %v911, 176
        %v934 = vadd.s32 %v911, 184
        %v935 = vadd.s32 %v911, 192
        %v936 = vadd.s32 %v911, 200
        %v937 = vadd.s32 %v911, 208
        %v938 = vadd.s32 %v911, 216
        %v939 = vadd.s32 %v911, 224
        %v940 = vadd.s32 %v911, 232
        %v941 = vadd.s32 %v911, 240
        %v942 = vadd.s32 %v911, 248
        %vm943 = vcmp.lt.s32.totalorder %v911, 0
        %v944 = vsub.s32 0, %v911
        %v945 = vsel %vm943, %v944, %v911
        %v946 = vshrl.u32 %v945, 4
        %v947 = vand.u32 %v945, 15
        %v948 = vsub.s32 0, %v947
        %v949 = vsel %vm943, %v948, %v947
        %vm950 = vcmp.lt.s32.totalorder %v912, 0
        %v951 = vsub.s32 0, %v912
        %v952 = vsel %vm950, %v951, %v912
        %v953 = vshrl.u32 %v952, 4
        %v954 = vand.u32 %v952, 15
        %v955 = vsub.s32 0, %v954
        %v956 = vsel %vm950, %v955, %v954
        %vm957 = vcmp.lt.s32.totalorder %v913, 0
        %v958 = vsub.s32 0, %v913
        %v959 = vsel %vm957, %v958, %v913
        %v960 = vshrl.u32 %v959, 4
        %v961 = vand.u32 %v959, 15
        %v962 = vsub.s32 0, %v961
        %v963 = vsel %vm957, %v962, %v961
        %vm964 = vcmp.lt.s32.totalorder %v914, 0
        %v965 = vsub.s32 0, %v914
        %v966 = vsel %vm964, %v965, %v914
        %v967 = vshrl.u32 %v966, 4
        %v968 = vand.u32 %v966, 15
        %v969 = vsub.s32 0, %v968
        %v970 = vsel %vm964, %v969, %v968
        %vm971 = vcmp.lt.s32.totalorder %v915, 0
        %v972 = vsub.s32 0, %v915
        %v973 = vsel %vm971, %v972, %v915
        %v974 = vshrl.u32 %v973, 4
        %v975 = vand.u32 %v973, 15
        %v976 = vsub.s32 0, %v975
        %v977 = vsel %vm971, %v976, %v975
        %vm978 = vcmp.lt.s32.totalorder %v916, 0
        %v979 = vsub.s32 0, %v916
        %v980 = vsel %vm978, %v979, %v916
        %v981 = vshrl.u32 %v980, 4
        %v982 = vand.u32 %v980, 15
        %v983 = vsub.s32 0, %v982
        %v984 = vsel %vm978, %v983, %v982
        %vm985 = vcmp.lt.s32.totalorder %v917, 0
        %v986 = vsub.s32 0, %v917
        %v987 = vsel %vm985, %v986, %v917
        %v988 = vshrl.u32 %v987, 4
        %v989 = vand.u32 %v987, 15
        %v990 = vsub.s32 0, %v989
        %v991 = vsel %vm985, %v990, %v989
        %vm992 = vcmp.lt.s32.totalorder %v918, 0
        %v993 = vsub.s32 0, %v918
        %v994 = vsel %vm992, %v993, %v918
        %v995 = vshrl.u32 %v994, 4
        %v996 = vand.u32 %v994, 15
        %v997 = vsub.s32 0, %v996
        %v998 = vsel %vm992, %v997, %v996
        %vm999 = vcmp.lt.s32.totalorder %v919, 0
        %v1000 = vsub.s32 0, %v919
        %v1001 = vsel %vm999, %v1000, %v919
        %v1002 = vshrl.u32 %v1001, 4
        %v1003 = vand.u32 %v1001, 15
        %v1004 = vsub.s32 0, %v1003
        %v1005 = vsel %vm999, %v1004, %v1003
        %vm1006 = vcmp.lt.s32.totalorder %v920, 0
        %v1007 = vsub.s32 0, %v920
        %v1008 = vsel %vm1006, %v1007, %v920
        %v1009 = vshrl.u32 %v1008, 4
        %v1010 = vand.u32 %v1008, 15
        %v1011 = vsub.s32 0, %v1010
        %v1012 = vsel %vm1006, %v1011, %v1010
        %vm1013 = vcmp.lt.s32.totalorder %v921, 0
        %v1014 = vsub.s32 0, %v921
        %v1015 = vsel %vm1013, %v1014, %v921
        %v1016 = vshrl.u32 %v1015, 4
        %v1017 = vand.u32 %v1015, 15
        %v1018 = vsub.s32 0, %v1017
        %v1019 = vsel %vm1013, %v1018, %v1017
        %vm1020 = vcmp.lt.s32.totalorder %v922, 0
        %v1021 = vsub.s32 0, %v922
        %v1022 = vsel %vm1020, %v1021, %v922
        %v1023 = vshrl.u32 %v1022, 4
        %v1024 = vand.u32 %v1022, 15
        %v1025 = vsub.s32 0, %v1024
        %v1026 = vsel %vm1020, %v1025, %v1024
        %vm1027 = vcmp.lt.s32.totalorder %v923, 0
        %v1028 = vsub.s32 0, %v923
        %v1029 = vsel %vm1027, %v1028, %v923
        %v1030 = vshrl.u32 %v1029, 4
        %v1031 = vand.u32 %v1029, 15
        %v1032 = vsub.s32 0, %v1031
        %v1033 = vsel %vm1027, %v1032, %v1031
        %vm1034 = vcmp.lt.s32.totalorder %v924, 0
        %v1035 = vsub.s32 0, %v924
        %v1036 = vsel %vm1034, %v1035, %v924
        %v1037 = vshrl.u32 %v1036, 4
        %v1038 = vand.u32 %v1036, 15
        %v1039 = vsub.s32 0, %v1038
        %v1040 = vsel %vm1034, %v1039, %v1038
        %vm1041 = vcmp.lt.s32.totalorder %v925, 0
        %v1042 = vsub.s32 0, %v925
        %v1043 = vsel %vm1041, %v1042, %v925
        %v1044 = vshrl.u32 %v1043, 4
        %v1045 = vand.u32 %v1043, 15
        %v1046 = vsub.s32 0, %v1045
        %v1047 = vsel %vm1041, %v1046, %v1045
        %vm1048 = vcmp.lt.s32.totalorder %v926, 0
        %v1049 = vsub.s32 0, %v926
        %v1050 = vsel %vm1048, %v1049, %v926
        %v1051 = vshrl.u32 %v1050, 4
        %v1052 = vand.u32 %v1050, 15
        %v1053 = vsub.s32 0, %v1052
        %v1054 = vsel %vm1048, %v1053, %v1052
        %vm1055 = vcmp.lt.s32.totalorder %v927, 0
        %v1056 = vsub.s32 0, %v927
        %v1057 = vsel %vm1055, %v1056, %v927
        %v1058 = vshrl.u32 %v1057, 4
        %v1059 = vand.u32 %v1057, 15
        %v1060 = vsub.s32 0, %v1059
        %v1061 = vsel %vm1055, %v1060, %v1059
        %vm1062 = vcmp.lt.s32.totalorder %v928, 0
        %v1063 = vsub.s32 0, %v928
        %v1064 = vsel %vm1062, %v1063, %v928
        %v1065 = vshrl.u32 %v1064, 4
        %v1066 = vand.u32 %v1064, 15
        %v1067 = vsub.s32 0, %v1066
        %v1068 = vsel %vm1062, %v1067, %v1066
        %vm1069 = vcmp.lt.s32.totalorder %v929, 0
        %v1070 = vsub.s32 0, %v929
        %v1071 = vsel %vm1069, %v1070, %v929
        %v1072 = vshrl.u32 %v1071, 4
        %v1073 = vand.u32 %v1071, 15
        %v1074 = vsub.s32 0, %v1073
        %v1075 = vsel %vm1069, %v1074, %v1073
        %vm1076 = vcmp.lt.s32.totalorder %v930, 0
        %v1077 = vsub.s32 0, %v930
        %v1078 = vsel %vm1076, %v1077, %v930
        %v1079 = vshrl.u32 %v1078, 4
        %v1080 = vand.u32 %v1078, 15
        %v1081 = vsub.s32 0, %v1080
        %v1082 = vsel %vm1076, %v1081, %v1080
        %vm1083 = vcmp.lt.s32.totalorder %v931, 0
        %v1084 = vsub.s32 0, %v931
        %v1085 = vsel %vm1083, %v1084, %v931
        %v1086 = vshrl.u32 %v1085, 4
        %v1087 = vand.u32 %v1085, 15
        %v1088 = vsub.s32 0, %v1087
        %v1089 = vsel %vm1083, %v1088, %v1087
        %vm1090 = vcmp.lt.s32.totalorder %v932, 0
        %v1091 = vsub.s32 0, %v932
        %v1092 = vsel %vm1090, %v1091, %v932
        %v1093 = vshrl.u32 %v1092, 4
        %v1094 = vand.u32 %v1092, 15
        %v1095 = vsub.s32 0, %v1094
        %v1096 = vsel %vm1090, %v1095, %v1094
        %vm1097 = vcmp.lt.s32.totalorder %v933, 0
        %v1098 = vsub.s32 0, %v933
        %v1099 = vsel %vm1097, %v1098, %v933
        %v1100 = vshrl.u32 %v1099, 4
        %v1101 = vand.u32 %v1099, 15
        %v1102 = vsub.s32 0, %v1101
        %v1103 = vsel %vm1097, %v1102, %v1101
        %vm1104 = vcmp.lt.s32.totalorder %v934, 0
        %v1105 = vsub.s32 0, %v934
        %v1106 = vsel %vm1104, %v1105, %v934
        %v1107 = vshrl.u32 %v1106, 4
        %v1108 = vand.u32 %v1106, 15
        %v1109 = vsub.s32 0, %v1108
        %v1110 = vsel %vm1104, %v1109, %v1108
        %vm1111 = vcmp.lt.s32.totalorder %v935, 0
        %v1112 = vsub.s32 0, %v935
        %v1113 = vsel %vm1111, %v1112, %v935
        %v1114 = vshrl.u32 %v1113, 4
        %v1115 = vand.u32 %v1113, 15
        %v1116 = vsub.s32 0, %v1115
        %v1117 = vsel %vm1111, %v1116, %v1115
        %vm1118 = vcmp.lt.s32.totalorder %v936, 0
        %v1119 = vsub.s32 0, %v936
        %v1120 = vsel %vm1118, %v1119, %v936
        %v1121 = vshrl.u32 %v1120, 4
        %v1122 = vand.u32 %v1120, 15
        %v1123 = vsub.s32 0, %v1122
        %v1124 = vsel %vm1118, %v1123, %v1122
        %vm1125 = vcmp.lt.s32.totalorder %v937, 0
        %v1126 = vsub.s32 0, %v937
        %v1127 = vsel %vm1125, %v1126, %v937
        %v1128 = vshrl.u32 %v1127, 4
        %v1129 = vand.u32 %v1127, 15
        %v1130 = vsub.s32 0, %v1129
        %v1131 = vsel %vm1125, %v1130, %v1129
        %vm1132 = vcmp.lt.s32.totalorder %v938, 0
        %v1133 = vsub.s32 0, %v938
        %v1134 = vsel %vm1132, %v1133, %v938
        %v1135 = vshrl.u32 %v1134, 4
        %v1136 = vand.u32 %v1134, 15
        %v1137 = vsub.s32 0, %v1136
        %v1138 = vsel %vm1132, %v1137, %v1136
        %vm1139 = vcmp.lt.s32.totalorder %v939, 0
        %v1140 = vsub.s32 0, %v939
        %v1141 = vsel %vm1139, %v1140, %v939
        %v1142 = vshrl.u32 %v1141, 4
        %v1143 = vand.u32 %v1141, 15
        %v1144 = vsub.s32 0, %v1143
        %v1145 = vsel %vm1139, %v1144, %v1143
        %vm1146 = vcmp.lt.s32.totalorder %v940, 0
        %v1147 = vsub.s32 0, %v940
        %v1148 = vsel %vm1146, %v1147, %v940
        %v1149 = vshrl.u32 %v1148, 4
        %v1150 = vand.u32 %v1148, 15
        %v1151 = vsub.s32 0, %v1150
        %v1152 = vsel %vm1146, %v1151, %v1150
        %vm1153 = vcmp.lt.s32.totalorder %v941, 0
        %v1154 = vsub.s32 0, %v941
        %v1155 = vsel %vm1153, %v1154, %v941
        %v1156 = vshrl.u32 %v1155, 4
        %v1157 = vand.u32 %v1155, 15
        %v1158 = vsub.s32 0, %v1157
        %v1159 = vsel %vm1153, %v1158, %v1157
        %vm1160 = vcmp.lt.s32.totalorder %v942, 0
        %v1161 = vsub.s32 0, %v942
        %v1162 = vsel %vm1160, %v1161, %v942
        %v1163 = vshrl.u32 %v1162, 4
        %v1164 = vand.u32 %v1162, 15
        %v1165 = vsub.s32 0, %v1164
        %v1166 = vsel %vm1160, %v1165, %v1164
        %vm1167 = vcmp.ne.s32.totalorder %v949, 0
        %vm1168 = vcmp.ne.s32.totalorder %v956, 0
        %vm1169 = vcmp.ne.s32.totalorder %v963, 0
        %vm1170 = vcmp.ne.s32.totalorder %v970, 0
        %vm1171 = vcmp.ne.s32.totalorder %v977, 0
        %vm1172 = vcmp.ne.s32.totalorder %v984, 0
        %vm1173 = vcmp.ne.s32.totalorder %v991, 0
        %vm1174 = vcmp.ne.s32.totalorder %v998, 0
        %vm1175 = vcmp.ne.s32.totalorder %v1005, 0
        %vm1176 = vcmp.ne.s32.totalorder %v1012, 0
        %vm1177 = vcmp.ne.s32.totalorder %v1019, 0
        %vm1178 = vcmp.ne.s32.totalorder %v1026, 0
        %vm1179 = vcmp.ne.s32.totalorder %v1033, 0
        %vm1180 = vcmp.ne.s32.totalorder %v1040, 0
        %vm1181 = vcmp.ne.s32.totalorder %v1047, 0
        %vm1182 = vcmp.ne.s32.totalorder %v1054, 0
        %vm1183 = vcmp.ne.s32.totalorder %v1061, 0
        %vm1184 = vcmp.ne.s32.totalorder %v1068, 0
        %vm1185 = vcmp.ne.s32.totalorder %v1075, 0
        %vm1186 = vcmp.ne.s32.totalorder %v1082, 0
        %vm1187 = vcmp.ne.s32.totalorder %v1089, 0
        %vm1188 = vcmp.ne.s32.totalorder %v1096, 0
        %vm1189 = vcmp.ne.s32.totalorder %v1103, 0
        %vm1190 = vcmp.ne.s32.totalorder %v1110, 0
        %vm1191 = vcmp.ne.s32.totalorder %v1117, 0
        %vm1192 = vcmp.ne.s32.totalorder %v1124, 0
        %vm1193 = vcmp.ne.s32.totalorder %v1131, 0
        %vm1194 = vcmp.ne.s32.totalorder %v1138, 0
        %vm1195 = vcmp.ne.s32.totalorder %v1145, 0
        %vm1196 = vcmp.ne.s32.totalorder %v1152, 0
        %vm1197 = vcmp.ne.s32.totalorder %v1159, 0
        %vm1198 = vcmp.ne.s32.totalorder %v1166, 0
        %vm1199 = vcmp.lt.s32.totalorder %v949, 0
        %vm1200 = vcmp.lt.s32.totalorder %v956, 0
        %vm1201 = vcmp.lt.s32.totalorder %v963, 0
        %vm1202 = vcmp.lt.s32.totalorder %v970, 0
        %vm1203 = vcmp.lt.s32.totalorder %v977, 0
        %vm1204 = vcmp.lt.s32.totalorder %v984, 0
        %vm1205 = vcmp.lt.s32.totalorder %v991, 0
        %vm1206 = vcmp.lt.s32.totalorder %v998, 0
        %vm1207 = vcmp.lt.s32.totalorder %v1005, 0
        %vm1208 = vcmp.lt.s32.totalorder %v1012, 0
        %vm1209 = vcmp.lt.s32.totalorder %v1019, 0
        %vm1210 = vcmp.lt.s32.totalorder %v1026, 0
        %vm1211 = vcmp.lt.s32.totalorder %v1033, 0
        %vm1212 = vcmp.lt.s32.totalorder %v1040, 0
        %vm1213 = vcmp.lt.s32.totalorder %v1047, 0
        %vm1214 = vcmp.lt.s32.totalorder %v1054, 0
        %vm1215 = vcmp.lt.s32.totalorder %v1061, 0
        %vm1216 = vcmp.lt.s32.totalorder %v1068, 0
        %vm1217 = vcmp.lt.s32.totalorder %v1075, 0
        %vm1218 = vcmp.lt.s32.totalorder %v1082, 0
        %vm1219 = vcmp.lt.s32.totalorder %v1089, 0
        %vm1220 = vcmp.lt.s32.totalorder %v1096, 0
        %vm1221 = vcmp.lt.s32.totalorder %v1103, 0
        %vm1222 = vcmp.lt.s32.totalorder %v1110, 0
        %vm1223 = vcmp.lt.s32.totalorder %v1117, 0
        %vm1224 = vcmp.lt.s32.totalorder %v1124, 0
        %vm1225 = vcmp.lt.s32.totalorder %v1131, 0
        %vm1226 = vcmp.lt.s32.totalorder %v1138, 0
        %vm1227 = vcmp.lt.s32.totalorder %v1145, 0
        %vm1228 = vcmp.lt.s32.totalorder %v1152, 0
        %vm1229 = vcmp.lt.s32.totalorder %v1159, 0
        %vm1230 = vcmp.lt.s32.totalorder %v1166, 0
        %vm1231 = vmand %vm1199, %vm1167
        %vm1232 = vmand %vm1200, %vm1168
        %vm1233 = vmand %vm1201, %vm1169
        %vm1234 = vmand %vm1202, %vm1170
        %vm1235 = vmand %vm1203, %vm1171
        %vm1236 = vmand %vm1204, %vm1172
        %vm1237 = vmand %vm1205, %vm1173
        %vm1238 = vmand %vm1206, %vm1174
        %vm1239 = vmand %vm1207, %vm1175
        %vm1240 = vmand %vm1208, %vm1176
        %vm1241 = vmand %vm1209, %vm1177
        %vm1242 = vmand %vm1210, %vm1178
        %vm1243 = vmand %vm1211, %vm1179
        %vm1244 = vmand %vm1212, %vm1180
        %vm1245 = vmand %vm1213, %vm1181
        %vm1246 = vmand %vm1214, %vm1182
        %vm1247 = vmand %vm1215, %vm1183
        %vm1248 = vmand %vm1216, %vm1184
        %vm1249 = vmand %vm1217, %vm1185
        %vm1250 = vmand %vm1218, %vm1186
        %vm1251 = vmand %vm1219, %vm1187
        %vm1252 = vmand %vm1220, %vm1188
        %vm1253 = vmand %vm1221, %vm1189
        %vm1254 = vmand %vm1222, %vm1190
        %vm1255 = vmand %vm1223, %vm1191
        %vm1256 = vmand %vm1224, %vm1192
        %vm1257 = vmand %vm1225, %vm1193
        %vm1258 = vmand %vm1226, %vm1194
        %vm1259 = vmand %vm1227, %vm1195
        %vm1260 = vmand %vm1228, %vm1196
        %vm1261 = vmand %vm1229, %vm1197
        %vm1262 = vmand %vm1230, %vm1198
        %v1263 = vadd.s32 %v949, 16
        %v1264 = vadd.s32 %v956, 16
        %v1265 = vadd.s32 %v963, 16
        %v1266 = vadd.s32 %v970, 16
        %v1267 = vadd.s32 %v977, 16
        %v1268 = vadd.s32 %v984, 16
        %v1269 = vadd.s32 %v991, 16
        %v1270 = vadd.s32 %v998, 16
        %v1271 = vadd.s32 %v1005, 16
        %v1272 = vadd.s32 %v1012, 16
        %v1273 = vadd.s32 %v1019, 16
        %v1274 = vadd.s32 %v1026, 16
        %v1275 = vadd.s32 %v1033, 16
        %v1276 = vadd.s32 %v1040, 16
        %v1277 = vadd.s32 %v1047, 16
        %v1278 = vadd.s32 %v1054, 16
        %v1279 = vadd.s32 %v1061, 16
        %v1280 = vadd.s32 %v1068, 16
        %v1281 = vadd.s32 %v1075, 16
        %v1282 = vadd.s32 %v1082, 16
        %v1283 = vadd.s32 %v1089, 16
        %v1284 = vadd.s32 %v1096, 16
        %v1285 = vadd.s32 %v1103, 16
        %v1286 = vadd.s32 %v1110, 16
        %v1287 = vadd.s32 %v1117, 16
        %v1288 = vadd.s32 %v1124, 16
        %v1289 = vadd.s32 %v1131, 16
        %v1290 = vadd.s32 %v1138, 16
        %v1291 = vadd.s32 %v1145, 16
        %v1292 = vadd.s32 %v1152, 16
        %v1293 = vadd.s32 %v1159, 16
        %v1294 = vadd.s32 %v1166, 16
        %v1295 = vsel %vm1231, %v1263, %v949
        %v1296 = vsel %vm1232, %v1264, %v956
        %v1297 = vsel %vm1233, %v1265, %v963
        %v1298 = vsel %vm1234, %v1266, %v970
        %v1299 = vsel %vm1235, %v1267, %v977
        %v1300 = vsel %vm1236, %v1268, %v984
        %v1301 = vsel %vm1237, %v1269, %v991
        %v1302 = vsel %vm1238, %v1270, %v998
        %v1303 = vsel %vm1239, %v1271, %v1005
        %v1304 = vsel %vm1240, %v1272, %v1012
        %v1305 = vsel %vm1241, %v1273, %v1019
        %v1306 = vsel %vm1242, %v1274, %v1026
        %v1307 = vsel %vm1243, %v1275, %v1033
        %v1308 = vsel %vm1244, %v1276, %v1040
        %v1309 = vsel %vm1245, %v1277, %v1047
        %v1310 = vsel %vm1246, %v1278, %v1054
        %v1311 = vsel %vm1247, %v1279, %v1061
        %v1312 = vsel %vm1248, %v1280, %v1068
        %v1313 = vsel %vm1249, %v1281, %v1075
        %v1314 = vsel %vm1250, %v1282, %v1082
        %v1315 = vsel %vm1251, %v1283, %v1089
        %v1316 = vsel %vm1252, %v1284, %v1096
        %v1317 = vsel %vm1253, %v1285, %v1103
        %v1318 = vsel %vm1254, %v1286, %v1110
        %v1319 = vsel %vm1255, %v1287, %v1117
        %v1320 = vsel %vm1256, %v1288, %v1124
        %v1321 = vsel %vm1257, %v1289, %v1131
        %v1322 = vsel %vm1258, %v1290, %v1138
        %v1323 = vsel %vm1259, %v1291, %v1145
        %v1324 = vsel %vm1260, %v1292, %v1152
        %v1325 = vsel %vm1261, %v1293, %v1159
        %v1326 = vsel %vm1262, %v1294, %v1166
        %vm1327 = vcmp.ne.s32.totalorder %v1295, 15
        %vm1328 = vcmp.ne.s32.totalorder %v1296, 15
        %vm1329 = vcmp.ne.s32.totalorder %v1297, 15
        %vm1330 = vcmp.ne.s32.totalorder %v1298, 15
        %vm1331 = vcmp.ne.s32.totalorder %v1299, 15
        %vm1332 = vcmp.ne.s32.totalorder %v1300, 15
        %vm1333 = vcmp.ne.s32.totalorder %v1301, 15
        %vm1334 = vcmp.ne.s32.totalorder %v1302, 15
        %vm1335 = vcmp.ne.s32.totalorder %v1303, 15
        %vm1336 = vcmp.ne.s32.totalorder %v1304, 15
        %vm1337 = vcmp.ne.s32.totalorder %v1305, 15
        %vm1338 = vcmp.ne.s32.totalorder %v1306, 15
        %vm1339 = vcmp.ne.s32.totalorder %v1307, 15
        %vm1340 = vcmp.ne.s32.totalorder %v1308, 15
        %vm1341 = vcmp.ne.s32.totalorder %v1309, 15
        %vm1342 = vcmp.ne.s32.totalorder %v1310, 15
        %vm1343 = vcmp.ne.s32.totalorder %v1311, 15
        %vm1344 = vcmp.ne.s32.totalorder %v1312, 15
        %vm1345 = vcmp.ne.s32.totalorder %v1313, 15
        %vm1346 = vcmp.ne.s32.totalorder %v1314, 15
        %vm1347 = vcmp.ne.s32.totalorder %v1315, 15
        %vm1348 = vcmp.ne.s32.totalorder %v1316, 15
        %vm1349 = vcmp.ne.s32.totalorder %v1317, 15
        %vm1350 = vcmp.ne.s32.totalorder %v1318, 15
        %vm1351 = vcmp.ne.s32.totalorder %v1319, 15
        %vm1352 = vcmp.ne.s32.totalorder %v1320, 15
        %vm1353 = vcmp.ne.s32.totalorder %v1321, 15
        %vm1354 = vcmp.ne.s32.totalorder %v1322, 15
        %vm1355 = vcmp.ne.s32.totalorder %v1323, 15
        %vm1356 = vcmp.ne.s32.totalorder %v1324, 15
        %vm1357 = vcmp.ne.s32.totalorder %v1325, 15
        %vm1358 = vcmp.ne.s32.totalorder %v1326, 15
        %v1359 = vsel %vm1327, 1, 0
        %v1360 = vsel %vm1328, 1, 0
        %v1361 = vsel %vm1329, 1, 0
        %v1362 = vsel %vm1330, 1, 0
        %v1363 = vsel %vm1331, 1, 0
        %v1364 = vsel %vm1332, 1, 0
        %v1365 = vsel %vm1333, 1, 0
        %v1366 = vsel %vm1334, 1, 0
        %v1367 = vsel %vm1335, 1, 0
        %v1368 = vsel %vm1336, 1, 0
        %v1369 = vsel %vm1337, 1, 0
        %v1370 = vsel %vm1338, 1, 0
        %v1371 = vsel %vm1339, 1, 0
        %v1372 = vsel %vm1340, 1, 0
        %v1373 = vsel %vm1341, 1, 0
        %v1374 = vsel %vm1342, 1, 0
        %v1375 = vsel %vm1343, 1, 0
        %v1376 = vsel %vm1344, 1, 0
        %v1377 = vsel %vm1345, 1, 0
        %v1378 = vsel %vm1346, 1, 0
        %v1379 = vsel %vm1347, 1, 0
        %v1380 = vsel %vm1348, 1, 0
        %v1381 = vsel %vm1349, 1, 0
        %v1382 = vsel %vm1350, 1, 0
        %v1383 = vsel %vm1351, 1, 0
        %v1384 = vsel %vm1352, 1, 0
        %v1385 = vsel %vm1353, 1, 0
        %v1386 = vsel %vm1354, 1, 0
        %v1387 = vsel %vm1355, 1, 0
        %v1388 = vsel %vm1356, 1, 0
        %v1389 = vsel %vm1357, 1, 0
        %v1390 = vsel %vm1358, 1, 0
        %vm1391 = vcmp.eq.s32.totalorder %v1359, 1
        %vm1392 = vcmp.eq.s32.totalorder %v1360, 1
        %vm1393 = vcmp.eq.s32.totalorder %v1361, 1
        %vm1394 = vcmp.eq.s32.totalorder %v1362, 1
        %vm1395 = vcmp.eq.s32.totalorder %v1363, 1
        %vm1396 = vcmp.eq.s32.totalorder %v1364, 1
        %vm1397 = vcmp.eq.s32.totalorder %v1365, 1
        %vm1398 = vcmp.eq.s32.totalorder %v1366, 1
        %vm1399 = vcmp.eq.s32.totalorder %v1367, 1
        %vm1400 = vcmp.eq.s32.totalorder %v1368, 1
        %vm1401 = vcmp.eq.s32.totalorder %v1369, 1
        %vm1402 = vcmp.eq.s32.totalorder %v1370, 1
        %vm1403 = vcmp.eq.s32.totalorder %v1371, 1
        %vm1404 = vcmp.eq.s32.totalorder %v1372, 1
        %vm1405 = vcmp.eq.s32.totalorder %v1373, 1
        %vm1406 = vcmp.eq.s32.totalorder %v1374, 1
        %vm1407 = vcmp.eq.s32.totalorder %v1375, 1
        %vm1408 = vcmp.eq.s32.totalorder %v1376, 1
        %vm1409 = vcmp.eq.s32.totalorder %v1377, 1
        %vm1410 = vcmp.eq.s32.totalorder %v1378, 1
        %vm1411 = vcmp.eq.s32.totalorder %v1379, 1
        %vm1412 = vcmp.eq.s32.totalorder %v1380, 1
        %vm1413 = vcmp.eq.s32.totalorder %v1381, 1
        %vm1414 = vcmp.eq.s32.totalorder %v1382, 1
        %vm1415 = vcmp.eq.s32.totalorder %v1383, 1
        %vm1416 = vcmp.eq.s32.totalorder %v1384, 1
        %vm1417 = vcmp.eq.s32.totalorder %v1385, 1
        %vm1418 = vcmp.eq.s32.totalorder %v1386, 1
        %vm1419 = vcmp.eq.s32.totalorder %v1387, 1
        %vm1420 = vcmp.eq.s32.totalorder %v1388, 1
        %vm1421 = vcmp.eq.s32.totalorder %v1389, 1
        %vm1422 = vcmp.eq.s32.totalorder %v1390, 1
        %vm1423 = vmpackc.low %vm1391, %vm1391
        %vm1424 = vmpackc.low %vm1392, %vm1392
        %vm1425 = vmpackc.low %vm1393, %vm1393
        %vm1426 = vmpackc.low %vm1394, %vm1394
        %vm1427 = vmpackc.low %vm1395, %vm1395
        %vm1428 = vmpackc.low %vm1396, %vm1396
        %vm1429 = vmpackc.low %vm1397, %vm1397
        %vm1430 = vmpackc.low %vm1398, %vm1398
        %vm1431 = vmpackc.low %vm1399, %vm1399
        %vm1432 = vmpackc.low %vm1400, %vm1400
        %vm1433 = vmpackc.low %vm1401, %vm1401
        %vm1434 = vmpackc.low %vm1402, %vm1402
        %vm1435 = vmpackc.low %vm1403, %vm1403
        %vm1436 = vmpackc.low %vm1404, %vm1404
        %vm1437 = vmpackc.low %vm1405, %vm1405
        %vm1438 = vmpackc.low %vm1406, %vm1406
        %vm1439 = vmpackc.low %vm1407, %vm1407
        %vm1440 = vmpackc.low %vm1408, %vm1408
        %vm1441 = vmpackc.low %vm1409, %vm1409
        %vm1442 = vmpackc.low %vm1410, %vm1410
        %vm1443 = vmpackc.low %vm1411, %vm1411
        %vm1444 = vmpackc.low %vm1412, %vm1412
        %vm1445 = vmpackc.low %vm1413, %vm1413
        %vm1446 = vmpackc.low %vm1414, %vm1414
        %vm1447 = vmpackc.low %vm1415, %vm1415
        %vm1448 = vmpackc.low %vm1416, %vm1416
        %vm1449 = vmpackc.low %vm1417, %vm1417
        %vm1450 = vmpackc.low %vm1418, %vm1418
        %vm1451 = vmpackc.low %vm1419, %vm1419
        %vm1452 = vmpackc.low %vm1420, %vm1420
        %vm1453 = vmpackc.low %vm1421, %vm1421
        %vm1454 = vmpackc.low %vm1422, %vm1422
        %v1455 = vsel %vm1423, 65537, 0
        %v1456 = vsel %vm1424, 65537, 0
        %v1457 = vsel %vm1425, 65537, 0
        %v1458 = vsel %vm1426, 65537, 0
        %v1459 = vsel %vm1427, 65537, 0
        %v1460 = vsel %vm1428, 65537, 0
        %v1461 = vsel %vm1429, 65537, 0
        %v1462 = vsel %vm1430, 65537, 0
        %v1463 = vsel %vm1431, 65537, 0
        %v1464 = vsel %vm1432, 65537, 0
        %v1465 = vsel %vm1433, 65537, 0
        %v1466 = vsel %vm1434, 65537, 0
        %v1467 = vsel %vm1435, 65537, 0
        %v1468 = vsel %vm1436, 65537, 0
        %v1469 = vsel %vm1437, 65537, 0
        %v1470 = vsel %vm1438, 65537, 0
        %v1471 = vsel %vm1439, 65537, 0
        %v1472 = vsel %vm1440, 65537, 0
        %v1473 = vsel %vm1441, 65537, 0
        %v1474 = vsel %vm1442, 65537, 0
        %v1475 = vsel %vm1443, 65537, 0
        %v1476 = vsel %vm1444, 65537, 0
        %v1477 = vsel %vm1445, 65537, 0
        %v1478 = vsel %vm1446, 65537, 0
        %v1479 = vsel %vm1447, 65537, 0
        %v1480 = vsel %vm1448, 65537, 0
        %v1481 = vsel %vm1449, 65537, 0
        %v1482 = vsel %vm1450, 65537, 0
        %v1483 = vsel %vm1451, 65537, 0
        %v1484 = vsel %vm1452, 65537, 0
        %v1485 = vsel %vm1453, 65537, 0
        %v1486 = vsel %vm1454, 65537, 0
        %v1487 = vunpack.c.l.b16 %v1455
        %v1488 = vunpack.c.l.b16 %v1456
        %v1489 = vunpack.c.l.b16 %v1457
        %v1490 = vunpack.c.l.b16 %v1458
        %v1491 = vunpack.c.l.b16 %v1459
        %v1492 = vunpack.c.l.b16 %v1460
        %v1493 = vunpack.c.l.b16 %v1461
        %v1494 = vunpack.c.l.b16 %v1462
        %v1495 = vunpack.c.l.b16 %v1463
        %v1496 = vunpack.c.l.b16 %v1464
        %v1497 = vunpack.c.l.b16 %v1465
        %v1498 = vunpack.c.l.b16 %v1466
        %v1499 = vunpack.c.l.b16 %v1467
        %v1500 = vunpack.c.l.b16 %v1468
        %v1501 = vunpack.c.l.b16 %v1469
        %v1502 = vunpack.c.l.b16 %v1470
        %v1503 = vunpack.c.l.b16 %v1471
        %v1504 = vunpack.c.l.b16 %v1472
        %v1505 = vunpack.c.l.b16 %v1473
        %v1506 = vunpack.c.l.b16 %v1474
        %v1507 = vunpack.c.l.b16 %v1475
        %v1508 = vunpack.c.l.b16 %v1476
        %v1509 = vunpack.c.l.b16 %v1477
        %v1510 = vunpack.c.l.b16 %v1478
        %v1511 = vunpack.c.l.b16 %v1479
        %v1512 = vunpack.c.l.b16 %v1480
        %v1513 = vunpack.c.l.b16 %v1481
        %v1514 = vunpack.c.l.b16 %v1482
        %v1515 = vunpack.c.l.b16 %v1483
        %v1516 = vunpack.c.l.b16 %v1484
        %v1517 = vunpack.c.l.b16 %v1485
        %v1518 = vunpack.c.l.b16 %v1486
        %v1519 = vpack.c.b16 %v1488, %v1487
        %v1520 = vpack.c.b16 %v1490, %v1489
        %v1521 = vpack.c.b16 %v1492, %v1491
        %v1522 = vpack.c.b16 %v1494, %v1493
        %v1523 = vpack.c.b16 %v1496, %v1495
        %v1524 = vpack.c.b16 %v1498, %v1497
        %v1525 = vpack.c.b16 %v1500, %v1499
        %v1526 = vpack.c.b16 %v1502, %v1501
        %v1527 = vpack.c.b16 %v1504, %v1503
        %v1528 = vpack.c.b16 %v1506, %v1505
        %v1529 = vpack.c.b16 %v1508, %v1507
        %v1530 = vpack.c.b16 %v1510, %v1509
        %v1531 = vpack.c.b16 %v1512, %v1511
        %v1532 = vpack.c.b16 %v1514, %v1513
        %v1533 = vpack.c.b16 %v1516, %v1515
        %v1534 = vpack.c.b16 %v1518, %v1517
        %vm1535 = vcmp.ne.s16.totalorder %v1519, 0
        %vm1536 = vcmp.ne.s16.totalorder %v1520, 0
        %vm1537 = vcmp.ne.s16.totalorder %v1521, 0
        %vm1538 = vcmp.ne.s16.totalorder %v1522, 0
        %vm1539 = vcmp.ne.s16.totalorder %v1523, 0
        %vm1540 = vcmp.ne.s16.totalorder %v1524, 0
        %vm1541 = vcmp.ne.s16.totalorder %v1525, 0
        %vm1542 = vcmp.ne.s16.totalorder %v1526, 0
        %vm1543 = vcmp.ne.s16.totalorder %v1527, 0
        %vm1544 = vcmp.ne.s16.totalorder %v1528, 0
        %vm1545 = vcmp.ne.s16.totalorder %v1529, 0
        %vm1546 = vcmp.ne.s16.totalorder %v1530, 0
        %vm1547 = vcmp.ne.s16.totalorder %v1531, 0
        %vm1548 = vcmp.ne.s16.totalorder %v1532, 0
        %vm1549 = vcmp.ne.s16.totalorder %v1533, 0
        %vm1550 = vcmp.ne.s16.totalorder %v1534, 0
        %v1551 = vsel %vm1535, %v894, 0
        %v1552 = vsel %vm1536, %v895, 0
        %v1553 = vsel %vm1537, %v896, 0
        %v1554 = vsel %vm1538, %v897, 0
        %v1555 = vsel %vm1539, %v898, 0
        %v1556 = vsel %vm1540, %v899, 0
        %v1557 = vsel %vm1541, %v900, 0
        %v1558 = vsel %vm1542, %v901, 0
        %v1559 = vsel %vm1543, %v902, 0
        %v1560 = vsel %vm1544, %v903, 0
        %v1561 = vsel %vm1545, %v904, 0
        %v1562 = vsel %vm1546, %v905, 0
        %v1563 = vsel %vm1547, %v906, 0
        %v1564 = vsel %vm1548, %v907, 0
        %v1565 = vsel %vm1549, %v908, 0
        %v1566 = vsel %vm1550, %v909, 0
        %v1568 = vshrl.u32 %v1551, 16
        %v1570 = vrot.slane %v1568, 7
        %v1571 = vshll.u32 %v1551, 16
        %v1573 = vor.u32 %v1570, %v1571
        %v1575 = vshrl.u32 %v1552, 16
        %v1577 = vrot.slane %v1575, 7
        %v1578 = vshll.u32 %v1552, 16
        %v1580 = vor.u32 %v1577, %v1578
        %v1581 = vsel %vm348, %v1570, %v1580
        %v1583 = vshrl.u32 %v1553, 16
        %v1585 = vrot.slane %v1583, 7
        %v1586 = vshll.u32 %v1553, 16
        %v1588 = vor.u32 %v1585, %v1586
        %v1589 = vsel %vm348, %v1577, %v1588
        %v1591 = vshrl.u32 %v1554, 16
        %v1593 = vrot.slane %v1591, 7
        %v1594 = vshll.u32 %v1554, 16
        %v1596 = vor.u32 %v1593, %v1594
        %v1597 = vsel %vm348, %v1585, %v1596
        %v1599 = vshrl.u32 %v1555, 16
        %v1601 = vrot.slane %v1599, 7
        %v1602 = vshll.u32 %v1555, 16
        %v1604 = vor.u32 %v1601, %v1602
        %v1605 = vsel %vm348, %v1593, %v1604
        %v1607 = vshrl.u32 %v1556, 16
        %v1609 = vrot.slane %v1607, 7
        %v1610 = vshll.u32 %v1556, 16
        %v1612 = vor.u32 %v1609, %v1610
        %v1613 = vsel %vm348, %v1601, %v1612
        %v1615 = vshrl.u32 %v1557, 16
        %v1617 = vrot.slane %v1615, 7
        %v1618 = vshll.u32 %v1557, 16
        %v1620 = vor.u32 %v1617, %v1618
        %v1621 = vsel %vm348, %v1609, %v1620
        %v1623 = vshrl.u32 %v1558, 16
        %v1625 = vrot.slane %v1623, 7
        %v1626 = vshll.u32 %v1558, 16
        %v1628 = vor.u32 %v1625, %v1626
        %v1629 = vsel %vm348, %v1617, %v1628
        %v1631 = vshrl.u32 %v1559, 16
        %v1633 = vrot.slane %v1631, 7
        %v1634 = vshll.u32 %v1559, 16
        %v1636 = vor.u32 %v1633, %v1634
        %v1637 = vsel %vm348, %v1625, %v1636
        %v1639 = vshrl.u32 %v1560, 16
        %v1641 = vrot.slane %v1639, 7
        %v1642 = vshll.u32 %v1560, 16
        %v1644 = vor.u32 %v1641, %v1642
        %v1645 = vsel %vm348, %v1633, %v1644
        %v1647 = vshrl.u32 %v1561, 16
        %v1649 = vrot.slane %v1647, 7
        %v1650 = vshll.u32 %v1561, 16
        %v1652 = vor.u32 %v1649, %v1650
        %v1653 = vsel %vm348, %v1641, %v1652
        %v1655 = vshrl.u32 %v1562, 16
        %v1657 = vrot.slane %v1655, 7
        %v1658 = vshll.u32 %v1562, 16
        %v1660 = vor.u32 %v1657, %v1658
        %v1661 = vsel %vm348, %v1649, %v1660
        %v1663 = vshrl.u32 %v1563, 16
        %v1665 = vrot.slane %v1663, 7
        %v1666 = vshll.u32 %v1563, 16
        %v1668 = vor.u32 %v1665, %v1666
        %v1669 = vsel %vm348, %v1657, %v1668
        %v1671 = vshrl.u32 %v1564, 16
        %v1673 = vrot.slane %v1671, 7
        %v1674 = vshll.u32 %v1564, 16
        %v1676 = vor.u32 %v1673, %v1674
        %v1677 = vsel %vm348, %v1665, %v1676
        %v1679 = vshrl.u32 %v1565, 16
        %v1681 = vrot.slane %v1679, 7
        %v1682 = vshll.u32 %v1565, 16
        %v1684 = vor.u32 %v1681, %v1682
        %v1685 = vsel %vm348, %v1673, %v1684
        %v1687 = vshrl.u32 %v1566, 16
        %v1689 = vrot.slane %v1687, 7
        %v1690 = vshll.u32 %v1566, 16
        %v1692 = vor.u32 %v1689, %v1690
        %v1693 = vsel %vm348, %v1681, %v1692
        %vm1711 = vcmask 1047552
        %vm1712 = vsmask.f32 7938
        %vm1713 = vmand %vm1711, %vm1712
        %v1714 = vld [vmem:[#allocation2 + $0x18] sm:$0xff]
        %v1715 = vsel %vm1713, %v1573, %v1714
        %1716 = vst [vmem:[#allocation2 + $0x18] sm:$0xff] %v1715
        %1717 = vst [vmem:[#allocation2 + $0x30] sm:$0xff] %v1581
        %1718 = vst [vmem:[#allocation2 + $0x48] sm:$0xff] %v1589
        %1719 = vst [vmem:[#allocation2 + $0x60] sm:$0xff] %v1597
        %1720 = vst [vmem:[#allocation2 + $0x78] sm:$0xff] %v1605
        %1721 = vst [vmem:[#allocation2 + $0x90] sm:$0xff] %v1613
        %1722 = vst [vmem:[#allocation2 + $0xa8] sm:$0xff] %v1621
        %1723 = vst [vmem:[#allocation2 + $0xc0] sm:$0xff] %v1629
        %1724 = vst [vmem:[#allocation2 + $0xd8] sm:$0xff] %v1637
        %1725 = vst [vmem:[#allocation2 + $0xf0] sm:$0xff] %v1645
        %1726 = vst [vmem:[#allocation2 + $0x108] sm:$0xff] %v1653
        %1727 = vst [vmem:[#allocation2 + $0x120] sm:$0xff] %v1661
        %1728 = vst [vmem:[#allocation2 + $0x138] sm:$0xff] %v1669
        %1729 = vst [vmem:[#allocation2 + $0x150] sm:$0xff] %v1677
        %1730 = vst [vmem:[#allocation2 + $0x168] sm:$0xff] %v1685
        %1731 = vst [vmem:[#allocation2 + $0x180] sm:$0xff] %v1693
        %v1732 = vld [vmem:[#allocation2 + $0x198] sm:$0x1]
        %v1733 = vsel %vm349, %v1689, %v1732
        %1734 = vst [vmem:[#allocation2 + $0x198] sm:$0x1] %v1733
        %1735 = vst [vmem:[#allocation2 + $0x20] sm:$0xff] %v894
        %1736 = vst [vmem:[#allocation2 + $0x38] sm:$0xff] %v895
        %1737 = vst [vmem:[#allocation2 + $0x50] sm:$0xff] %v896
        %1738 = vst [vmem:[#allocation2 + $0x68] sm:$0xff] %v897
        %1739 = vst [vmem:[#allocation2 + $0x80] sm:$0xff] %v898
        %1740 = vst [vmem:[#allocation2 + $0x98] sm:$0xff] %v899
        %1741 = vst [vmem:[#allocation2 + $0xb0] sm:$0xff] %v900
        %1742 = vst [vmem:[#allocation2 + $0xc8] sm:$0xff] %v901
        %1743 = vst [vmem:[#allocation2 + $0xe0] sm:$0xff] %v902
        %1744 = vst [vmem:[#allocation2 + $0xf8] sm:$0xff] %v903
        %1745 = vst [vmem:[#allocation2 + $0x110] sm:$0xff] %v904
        %1746 = vst [vmem:[#allocation2 + $0x128] sm:$0xff] %v905
        %1747 = vst [vmem:[#allocation2 + $0x140] sm:$0xff] %v906
        %1748 = vst [vmem:[#allocation2 + $0x158] sm:$0xff] %v907
        %1749 = vst [vmem:[#allocation2 + $0x170] sm:$0xff] %v908
        %1750 = vst [vmem:[#allocation2 + $0x188] sm:$0xff] %v909
        %vm1751 = vcmp.ne.s32.totalorder %v1295, 0
        %vm1752 = vcmp.ne.s32.totalorder %v1296, 0
        %vm1753 = vcmp.ne.s32.totalorder %v1297, 0
        %vm1754 = vcmp.ne.s32.totalorder %v1298, 0
        %vm1755 = vcmp.ne.s32.totalorder %v1299, 0
        %vm1756 = vcmp.ne.s32.totalorder %v1300, 0
        %vm1757 = vcmp.ne.s32.totalorder %v1301, 0
        %vm1758 = vcmp.ne.s32.totalorder %v1302, 0
        %vm1759 = vcmp.ne.s32.totalorder %v1303, 0
        %vm1760 = vcmp.ne.s32.totalorder %v1304, 0
        %vm1761 = vcmp.ne.s32.totalorder %v1305, 0
        %vm1762 = vcmp.ne.s32.totalorder %v1306, 0
        %vm1763 = vcmp.ne.s32.totalorder %v1307, 0
        %vm1764 = vcmp.ne.s32.totalorder %v1308, 0
        %vm1765 = vcmp.ne.s32.totalorder %v1309, 0
        %vm1766 = vcmp.ne.s32.totalorder %v1310, 0
        %vm1767 = vcmp.ne.s32.totalorder %v1311, 0
        %vm1768 = vcmp.ne.s32.totalorder %v1312, 0
        %vm1769 = vcmp.ne.s32.totalorder %v1313, 0
        %vm1770 = vcmp.ne.s32.totalorder %v1314, 0
        %vm1771 = vcmp.ne.s32.totalorder %v1315, 0
        %vm1772 = vcmp.ne.s32.totalorder %v1316, 0
        %vm1773 = vcmp.ne.s32.totalorder %v1317, 0
        %vm1774 = vcmp.ne.s32.totalorder %v1318, 0
        %vm1775 = vcmp.ne.s32.totalorder %v1319, 0
        %vm1776 = vcmp.ne.s32.totalorder %v1320, 0
        %vm1777 = vcmp.ne.s32.totalorder %v1321, 0
        %vm1778 = vcmp.ne.s32.totalorder %v1322, 0
        %vm1779 = vcmp.ne.s32.totalorder %v1323, 0
        %vm1780 = vcmp.ne.s32.totalorder %v1324, 0
        %vm1781 = vcmp.ne.s32.totalorder %v1325, 0
        %vm1782 = vcmp.ne.s32.totalorder %v1326, 0
        %v1783 = vsel %vm1751, 1, 0
        %v1784 = vsel %vm1752, 1, 0
        %v1785 = vsel %vm1753, 1, 0
        %v1786 = vsel %vm1754, 1, 0
        %v1787 = vsel %vm1755, 1, 0
        %v1788 = vsel %vm1756, 1, 0
        %v1789 = vsel %vm1757, 1, 0
        %v1790 = vsel %vm1758, 1, 0
        %v1791 = vsel %vm1759, 1, 0
        %v1792 = vsel %vm1760, 1, 0
        %v1793 = vsel %vm1761, 1, 0
        %v1794 = vsel %vm1762, 1, 0
        %v1795 = vsel %vm1763, 1, 0
        %v1796 = vsel %vm1764, 1, 0
        %v1797 = vsel %vm1765, 1, 0
        %v1798 = vsel %vm1766, 1, 0
        %v1799 = vsel %vm1767, 1, 0
        %v1800 = vsel %vm1768, 1, 0
        %v1801 = vsel %vm1769, 1, 0
        %v1802 = vsel %vm1770, 1, 0
        %v1803 = vsel %vm1771, 1, 0
        %v1804 = vsel %vm1772, 1, 0
        %v1805 = vsel %vm1773, 1, 0
        %v1806 = vsel %vm1774, 1, 0
        %v1807 = vsel %vm1775, 1, 0
        %v1808 = vsel %vm1776, 1, 0
        %v1809 = vsel %vm1777, 1, 0
        %v1810 = vsel %vm1778, 1, 0
        %v1811 = vsel %vm1779, 1, 0
        %v1812 = vsel %vm1780, 1, 0
        %v1813 = vsel %vm1781, 1, 0
        %v1814 = vsel %vm1782, 1, 0
        %vm1815 = vcmp.eq.s32.totalorder %v1783, 1
        %vm1816 = vcmp.eq.s32.totalorder %v1784, 1
        %vm1817 = vcmp.eq.s32.totalorder %v1785, 1
        %vm1818 = vcmp.eq.s32.totalorder %v1786, 1
        %vm1819 = vcmp.eq.s32.totalorder %v1787, 1
        %vm1820 = vcmp.eq.s32.totalorder %v1788, 1
        %vm1821 = vcmp.eq.s32.totalorder %v1789, 1
        %vm1822 = vcmp.eq.s32.totalorder %v1790, 1
        %vm1823 = vcmp.eq.s32.totalorder %v1791, 1
        %vm1824 = vcmp.eq.s32.totalorder %v1792, 1
        %vm1825 = vcmp.eq.s32.totalorder %v1793, 1
        %vm1826 = vcmp.eq.s32.totalorder %v1794, 1
        %vm1827 = vcmp.eq.s32.totalorder %v1795, 1
        %vm1828 = vcmp.eq.s32.totalorder %v1796, 1
        %vm1829 = vcmp.eq.s32.totalorder %v1797, 1
        %vm1830 = vcmp.eq.s32.totalorder %v1798, 1
        %vm1831 = vcmp.eq.s32.totalorder %v1799, 1
        %vm1832 = vcmp.eq.s32.totalorder %v1800, 1
        %vm1833 = vcmp.eq.s32.totalorder %v1801, 1
        %vm1834 = vcmp.eq.s32.totalorder %v1802, 1
        %vm1835 = vcmp.eq.s32.totalorder %v1803, 1
        %vm1836 = vcmp.eq.s32.totalorder %v1804, 1
        %vm1837 = vcmp.eq.s32.totalorder %v1805, 1
        %vm1838 = vcmp.eq.s32.totalorder %v1806, 1
        %vm1839 = vcmp.eq.s32.totalorder %v1807, 1
        %vm1840 = vcmp.eq.s32.totalorder %v1808, 1
        %vm1841 = vcmp.eq.s32.totalorder %v1809, 1
        %vm1842 = vcmp.eq.s32.totalorder %v1810, 1
        %vm1843 = vcmp.eq.s32.totalorder %v1811, 1
        %vm1844 = vcmp.eq.s32.totalorder %v1812, 1
        %vm1845 = vcmp.eq.s32.totalorder %v1813, 1
        %vm1846 = vcmp.eq.s32.totalorder %v1814, 1
        %vm1847 = vmpackc.low %vm1815, %vm1815
        %vm1848 = vmpackc.low %vm1816, %vm1816
        %vm1849 = vmpackc.low %vm1817, %vm1817
        %vm1850 = vmpackc.low %vm1818, %vm1818
        %vm1851 = vmpackc.low %vm1819, %vm1819
        %vm1852 = vmpackc.low %vm1820, %vm1820
        %vm1853 = vmpackc.low %vm1821, %vm1821
        %vm1854 = vmpackc.low %vm1822, %vm1822
        %vm1855 = vmpackc.low %vm1823, %vm1823
        %vm1856 = vmpackc.low %vm1824, %vm1824
        %vm1857 = vmpackc.low %vm1825, %vm1825
        %vm1858 = vmpackc.low %vm1826, %vm1826
        %vm1859 = vmpackc.low %vm1827, %vm1827
        %vm1860 = vmpackc.low %vm1828, %vm1828
        %vm1861 = vmpackc.low %vm1829, %vm1829
        %vm1862 = vmpackc.low %vm1830, %vm1830
        %vm1863 = vmpackc.low %vm1831, %vm1831
        %vm1864 = vmpackc.low %vm1832, %vm1832
        %vm1865 = vmpackc.low %vm1833, %vm1833
        %vm1866 = vmpackc.low %vm1834, %vm1834
        %vm1867 = vmpackc.low %vm1835, %vm1835
        %vm1868 = vmpackc.low %vm1836, %vm1836
        %vm1869 = vmpackc.low %vm1837, %vm1837
        %vm1870 = vmpackc.low %vm1838, %vm1838
        %vm1871 = vmpackc.low %vm1839, %vm1839
        %vm1872 = vmpackc.low %vm1840, %vm1840
        %vm1873 = vmpackc.low %vm1841, %vm1841
        %vm1874 = vmpackc.low %vm1842, %vm1842
        %vm1875 = vmpackc.low %vm1843, %vm1843
        %vm1876 = vmpackc.low %vm1844, %vm1844
        %vm1877 = vmpackc.low %vm1845, %vm1845
        %vm1878 = vmpackc.low %vm1846, %vm1846
        %v1879 = vsel %vm1847, 65537, 0
        %v1880 = vsel %vm1848, 65537, 0
        %v1881 = vsel %vm1849, 65537, 0
        %v1882 = vsel %vm1850, 65537, 0
        %v1883 = vsel %vm1851, 65537, 0
        %v1884 = vsel %vm1852, 65537, 0
        %v1885 = vsel %vm1853, 65537, 0
        %v1886 = vsel %vm1854, 65537, 0
        %v1887 = vsel %vm1855, 65537, 0
        %v1888 = vsel %vm1856, 65537, 0
        %v1889 = vsel %vm1857, 65537, 0
        %v1890 = vsel %vm1858, 65537, 0
        %v1891 = vsel %vm1859, 65537, 0
        %v1892 = vsel %vm1860, 65537, 0
        %v1893 = vsel %vm1861, 65537, 0
        %v1894 = vsel %vm1862, 65537, 0
        %v1895 = vsel %vm1863, 65537, 0
        %v1896 = vsel %vm1864, 65537, 0
        %v1897 = vsel %vm1865, 65537, 0
        %v1898 = vsel %vm1866, 65537, 0
        %v1899 = vsel %vm1867, 65537, 0
        %v1900 = vsel %vm1868, 65537, 0
        %v1901 = vsel %vm1869, 65537, 0
        %v1902 = vsel %vm1870, 65537, 0
        %v1903 = vsel %vm1871, 65537, 0
        %v1904 = vsel %vm1872, 65537, 0
        %v1905 = vsel %vm1873, 65537, 0
        %v1906 = vsel %vm1874, 65537, 0
        %v1907 = vsel %vm1875, 65537, 0
        %v1908 = vsel %vm1876, 65537, 0
        %v1909 = vsel %vm1877, 65537, 0
        %v1910 = vsel %vm1878, 65537, 0
        %v1911 = vunpack.c.l.b16 %v1879
        %v1912 = vunpack.c.l.b16 %v1880
        %v1913 = vunpack.c.l.b16 %v1881
        %v1914 = vunpack.c.l.b16 %v1882
        %v1915 = vunpack.c.l.b16 %v1883
        %v1916 = vunpack.c.l.b16 %v1884
        %v1917 = vunpack.c.l.b16 %v1885
        %v1918 = vunpack.c.l.b16 %v1886
        %v1919 = vunpack.c.l.b16 %v1887
        %v1920 = vunpack.c.l.b16 %v1888
        %v1921 = vunpack.c.l.b16 %v1889
        %v1922 = vunpack.c.l.b16 %v1890
        %v1923 = vunpack.c.l.b16 %v1891
        %v1924 = vunpack.c.l.b16 %v1892
        %v1925 = vunpack.c.l.b16 %v1893
        %v1926 = vunpack.c.l.b16 %v1894
        %v1927 = vunpack.c.l.b16 %v1895
        %v1928 = vunpack.c.l.b16 %v1896
        %v1929 = vunpack.c.l.b16 %v1897
        %v1930 = vunpack.c.l.b16 %v1898
        %v1931 = vunpack.c.l.b16 %v1899
        %v1932 = vunpack.c.l.b16 %v1900
        %v1933 = vunpack.c.l.b16 %v1901
        %v1934 = vunpack.c.l.b16 %v1902
        %v1935 = vunpack.c.l.b16 %v1903
        %v1936 = vunpack.c.l.b16 %v1904
        %v1937 = vunpack.c.l.b16 %v1905
        %v1938 = vunpack.c.l.b16 %v1906
        %v1939 = vunpack.c.l.b16 %v1907
        %v1940 = vunpack.c.l.b16 %v1908
        %v1941 = vunpack.c.l.b16 %v1909
        %v1942 = vunpack.c.l.b16 %v1910
        %v1943 = vpack.c.b16 %v1912, %v1911
        %v1944 = vpack.c.b16 %v1914, %v1913
        %v1945 = vpack.c.b16 %v1916, %v1915
        %v1946 = vpack.c.b16 %v1918, %v1917
        %v1947 = vpack.c.b16 %v1920, %v1919
        %v1948 = vpack.c.b16 %v1922, %v1921
        %v1949 = vpack.c.b16 %v1924, %v1923
        %v1950 = vpack.c.b16 %v1926, %v1925
        %v1951 = vpack.c.b16 %v1928, %v1927
        %v1952 = vpack.c.b16 %v1930, %v1929
        %v1953 = vpack.c.b16 %v1932, %v1931
        %v1954 = vpack.c.b16 %v1934, %v1933
        %v1955 = vpack.c.b16 %v1936, %v1935
        %v1956 = vpack.c.b16 %v1938, %v1937
        %v1957 = vpack.c.b16 %v1940, %v1939
        %v1958 = vpack.c.b16 %v1942, %v1941
        %vm1959 = vcmp.ne.s16.totalorder %v1943, 0
        %vm1960 = vcmp.ne.s16.totalorder %v1944, 0
        %vm1961 = vcmp.ne.s16.totalorder %v1945, 0
        %vm1962 = vcmp.ne.s16.totalorder %v1946, 0
        %vm1963 = vcmp.ne.s16.totalorder %v1947, 0
        %vm1964 = vcmp.ne.s16.totalorder %v1948, 0
        %vm1965 = vcmp.ne.s16.totalorder %v1949, 0
        %vm1966 = vcmp.ne.s16.totalorder %v1950, 0
        %vm1967 = vcmp.ne.s16.totalorder %v1951, 0
        %vm1968 = vcmp.ne.s16.totalorder %v1952, 0
        %vm1969 = vcmp.ne.s16.totalorder %v1953, 0
        %vm1970 = vcmp.ne.s16.totalorder %v1954, 0
        %vm1971 = vcmp.ne.s16.totalorder %v1955, 0
        %vm1972 = vcmp.ne.s16.totalorder %v1956, 0
        %vm1973 = vcmp.ne.s16.totalorder %v1957, 0
        %vm1974 = vcmp.ne.s16.totalorder %v1958, 0
        %v1975 = vsel %vm1959, %v894, 0
        %v1976 = vsel %vm1960, %v895, 0
        %v1977 = vsel %vm1961, %v896, 0
        %v1978 = vsel %vm1962, %v897, 0
        %v1979 = vsel %vm1963, %v898, 0
        %v1980 = vsel %vm1964, %v899, 0
        %v1981 = vsel %vm1965, %v900, 0
        %v1982 = vsel %vm1966, %v901, 0
        %v1983 = vsel %vm1967, %v902, 0
        %v1984 = vsel %vm1968, %v903, 0
        %v1985 = vsel %vm1969, %v904, 0
        %v1986 = vsel %vm1970, %v905, 0
        %v1987 = vsel %vm1971, %v906, 0
        %v1988 = vsel %vm1972, %v907, 0
        %v1989 = vsel %vm1973, %v908, 0
        %v1990 = vsel %vm1974, %v909, 0
        %vm1991 = vsmask.f32 7424
        %v1993 = vshll.u32 %v1975, 16
        %v1995 = vrot.slane %v1993, 1
        %v1996 = vshrl.u32 %v1975, 16
        %v1998 = vor.u32 %v1996, %v1995
        %v2000 = vshll.u32 %v1976, 16
        %v2002 = vrot.slane %v2000, 1
        %v2003 = vsel %vm1991, %v1998, %v2002
        %v2004 = vshrl.u32 %v1976, 16
        %v2006 = vor.u32 %v2004, %v2002
        %v2008 = vshll.u32 %v1977, 16
        %v2010 = vrot.slane %v2008, 1
        %v2011 = vsel %vm1991, %v2006, %v2010
        %v2012 = vshrl.u32 %v1977, 16
        %v2014 = vor.u32 %v2012, %v2010
        %v2016 = vshll.u32 %v1978, 16
        %v2018 = vrot.slane %v2016, 1
        %v2019 = vsel %vm1991, %v2014, %v2018
        %v2020 = vshrl.u32 %v1978, 16
        %v2022 = vor.u32 %v2020, %v2018
        %v2024 = vshll.u32 %v1979, 16
        %v2026 = vrot.slane %v2024, 1
        %v2027 = vsel %vm1991, %v2022, %v2026
        %v2028 = vshrl.u32 %v1979, 16
        %v2030 = vor.u32 %v2028, %v2026
        %v2032 = vshll.u32 %v1980, 16
        %v2034 = vrot.slane %v2032, 1
        %v2035 = vsel %vm1991, %v2030, %v2034
        %v2036 = vshrl.u32 %v1980, 16
        %v2038 = vor.u32 %v2036, %v2034
        %v2040 = vshll.u32 %v1981, 16
        %v2042 = vrot.slane %v2040, 1
        %v2043 = vsel %vm1991, %v2038, %v2042
        %v2044 = vshrl.u32 %v1981, 16
        %v2046 = vor.u32 %v2044, %v2042
        %v2048 = vshll.u32 %v1982, 16
        %v2050 = vrot.slane %v2048, 1
        %v2051 = vsel %vm1991, %v2046, %v2050
        %v2052 = vshrl.u32 %v1982, 16
        %v2054 = vor.u32 %v2052, %v2050
        %v2056 = vshll.u32 %v1983, 16
        %v2058 = vrot.slane %v2056, 1
        %v2059 = vsel %vm1991, %v2054, %v2058
        %v2060 = vshrl.u32 %v1983, 16
        %v2062 = vor.u32 %v2060, %v2058
        %v2064 = vshll.u32 %v1984, 16
        %v2066 = vrot.slane %v2064, 1
        %v2067 = vsel %vm1991, %v2062, %v2066
        %v2068 = vshrl.u32 %v1984, 16
        %v2070 = vor.u32 %v2068, %v2066
        %v2072 = vshll.u32 %v1985, 16
        %v2074 = vrot.slane %v2072, 1
        %v2075 = vsel %vm1991, %v2070, %v2074
        %v2076 = vshrl.u32 %v1985, 16
        %v2078 = vor.u32 %v2076, %v2074
        %v2080 = vshll.u32 %v1986, 16
        %v2082 = vrot.slane %v2080, 1
        %v2083 = vsel %vm1991, %v2078, %v2082
        %v2084 = vshrl.u32 %v1986, 16
        %v2086 = vor.u32 %v2084, %v2082
        %v2088 = vshll.u32 %v1987, 16
        %v2090 = vrot.slane %v2088, 1
        %v2091 = vsel %vm1991, %v2086, %v2090
        %v2092 = vshrl.u32 %v1987, 16
        %v2094 = vor.u32 %v2092, %v2090
        %v2096 = vshll.u32 %v1988, 16
        %v2098 = vrot.slane %v2096, 1
        %v2099 = vsel %vm1991, %v2094, %v2098
        %v2100 = vshrl.u32 %v1988, 16
        %v2102 = vor.u32 %v2100, %v2098
        %v2104 = vshll.u32 %v1989, 16
        %v2106 = vrot.slane %v2104, 1
        %v2107 = vsel %vm1991, %v2102, %v2106
        %v2108 = vshrl.u32 %v1989, 16
        %v2110 = vor.u32 %v2108, %v2106
        %v2112 = vshll.u32 %v1990, 16
        %v2114 = vrot.slane %v2112, 1
        %v2115 = vsel %vm1991, %v2110, %v2114
        %v2116 = vshrl.u32 %v1990, 16
        %v2118 = vor.u32 %v2116, %v2114
        %v2136 = vld [vmem:[#allocation2 + $0x10] sm:$0x80]
        %v2137 = vsel %vm361, %v1995, %v2136
        %2138 = vst [vmem:[#allocation2 + $0x10] sm:$0x80] %v2137
        %2139 = vst [vmem:[#allocation2 + $0x28] sm:$0xff] %v2003
        %2140 = vst [vmem:[#allocation2 + $0x40] sm:$0xff] %v2011
        %2141 = vst [vmem:[#allocation2 + $0x58] sm:$0xff] %v2019
        %2142 = vst [vmem:[#allocation2 + $0x70] sm:$0xff] %v2027
        %2143 = vst [vmem:[#allocation2 + $0x88] sm:$0xff] %v2035
        %2144 = vst [vmem:[#allocation2 + $0xa0] sm:$0xff] %v2043
        %2145 = vst [vmem:[#allocation2 + $0xb8] sm:$0xff] %v2051
        %2146 = vst [vmem:[#allocation2 + $0xd0] sm:$0xff] %v2059
        %2147 = vst [vmem:[#allocation2 + $0xe8] sm:$0xff] %v2067
        %2148 = vst [vmem:[#allocation2 + $0x100] sm:$0xff] %v2075
        %2149 = vst [vmem:[#allocation2 + $0x118] sm:$0xff] %v2083
        %2150 = vst [vmem:[#allocation2 + $0x130] sm:$0xff] %v2091
        %2151 = vst [vmem:[#allocation2 + $0x148] sm:$0xff] %v2099
        %2152 = vst [vmem:[#allocation2 + $0x160] sm:$0xff] %v2107
        %2153 = vst [vmem:[#allocation2 + $0x178] sm:$0xff] %v2115
        %vm2154 = vmand %vm1711, %vm1991
        %v2155 = vld [vmem:[#allocation2 + $0x190] sm:$0xff]
        %v2156 = vsel %vm2154, %v2118, %v2155
        %2157 = vst [vmem:[#allocation2 + $0x190] sm:$0xff] %v2156
        %v2158 = vld [vmem:[#allocation2] sm:$0xff]
        %v2159 = vld [vmem:[#allocation2 + $0x8] sm:$0xff]
        %v2160 = vld [vmem:[#allocation2 + $0x10] sm:$0xff]
        %v2161 = vld [vmem:[#allocation2 + $0x18] sm:$0xff]
        %v2162 = vld [vmem:[#allocation2 + $0x20] sm:$0xff]
        %v2163 = vld [vmem:[#allocation2 + $0x28] sm:$0xff]
        %v2164 = vld [vmem:[#allocation2 + $0x30] sm:$0xff]
        %v2165 = vld [vmem:[#allocation2 + $0x38] sm:$0xff]
        %v2166 = vld [vmem:[#allocation2 + $0x40] sm:$0xff]
        %v2167 = vld [vmem:[#allocation2 + $0x48] sm:$0xff]
        %v2168 = vld [vmem:[#allocation2 + $0x50] sm:$0xff]
        %v2169 = vld [vmem:[#allocation2 + $0x58] sm:$0xff]
        %v2170 = vld [vmem:[#allocation2 + $0x60] sm:$0xff]
        %v2171 = vld [vmem:[#allocation2 + $0x68] sm:$0xff]
        %v2172 = vld [vmem:[#allocation2 + $0x70] sm:$0xff]
        %v2173 = vld [vmem:[#allocation2 + $0x78] sm:$0xff]
        %v2174 = vld [vmem:[#allocation2 + $0x80] sm:$0xff]
        %v2175 = vld [vmem:[#allocation2 + $0x88] sm:$0xff]
        %v2176 = vld [vmem:[#allocation2 + $0x90] sm:$0xff]
        %v2177 = vld [vmem:[#allocation2 + $0x98] sm:$0xff]
        %v2178 = vld [vmem:[#allocation2 + $0xa0] sm:$0xff]
        %v2179 = vld [vmem:[#allocation2 + $0xa8] sm:$0xff]
        %v2180 = vld [vmem:[#allocation2 + $0xb0] sm:$0xff]
        %v2181 = vld [vmem:[#allocation2 + $0xb8] sm:$0xff]
        %v2182 = vld [vmem:[#allocation2 + $0xc0] sm:$0xff]
        %v2183 = vld [vmem:[#allocation2 + $0xc8] sm:$0xff]
        %v2184 = vld [vmem:[#allocation2 + $0xd0] sm:$0xff]
        %v2185 = vld [vmem:[#allocation2 + $0xd8] sm:$0xff]
        %v2186 = vld [vmem:[#allocation2 + $0xe0] sm:$0xff]
        %v2187 = vld [vmem:[#allocation2 + $0xe8] sm:$0xff]
        %v2188 = vld [vmem:[#allocation2 + $0xf0] sm:$0xff]
        %v2189 = vld [vmem:[#allocation2 + $0xf8] sm:$0xff]
        %v2190 = vld [vmem:[#allocation2 + $0x100] sm:$0xff]
        %v2191 = vld [vmem:[#allocation2 + $0x108] sm:$0xff]
        %v2192 = vld [vmem:[#allocation2 + $0x110] sm:$0xff]
        %v2193 = vld [vmem:[#allocation2 + $0x118] sm:$0xff]
        %v2194 = vld [vmem:[#allocation2 + $0x120] sm:$0xff]
        %v2195 = vld [vmem:[#allocation2 + $0x128] sm:$0xff]
        %v2196 = vld [vmem:[#allocation2 + $0x130] sm:$0xff]
        %v2197 = vld [vmem:[#allocation2 + $0x138] sm:$0xff]
        %v2198 = vld [vmem:[#allocation2 + $0x140] sm:$0xff]
        %v2199 = vld [vmem:[#allocation2 + $0x148] sm:$0xff]
        %v2200 = vld [vmem:[#allocation2 + $0x150] sm:$0xff]
        %v2201 = vld [vmem:[#allocation2 + $0x158] sm:$0xff]
        %v2202 = vld [vmem:[#allocation2 + $0x160] sm:$0xff]
        %v2203 = vld [vmem:[#allocation2 + $0x168] sm:$0xff]
        %v2204 = vld [vmem:[#allocation2 + $0x170] sm:$0xff]
        %v2205 = vld [vmem:[#allocation2 + $0x178] sm:$0xff]
        %v2206 = vld [vmem:[#allocation8] sm:$0xf]
        %v2207 = vld [vmem:[#allocation8 + $0x4] sm:$0xf]
        %v2208 = vld [vmem:[#allocation8 + $0x8] sm:$0xf]
        %v2209 = vld [vmem:[#allocation8 + $0xc] sm:$0xf]
        %v2210 = vld [vmem:[#allocation8 + $0x10] sm:$0xf]
        %v2211 = vld [vmem:[#allocation8 + $0x14] sm:$0xf]
        %v2212 = vld [vmem:[#allocation8 + $0x18] sm:$0xf]
        %v2213 = vld [vmem:[#allocation8 + $0x1c] sm:$0xf]
        %v2214 = vld [vmem:[#allocation8 + $0x20] sm:$0xf]
        %v2215 = vld [vmem:[#allocation8 + $0x24] sm:$0xf]
        %v2216 = vld [vmem:[#allocation8 + $0x28] sm:$0xf]
        %v2217 = vld [vmem:[#allocation8 + $0x2c] sm:$0xf]
        %v2218 = vld [vmem:[#allocation8 + $0x30] sm:$0xf]
        %v2219 = vld [vmem:[#allocation8 + $0x34] sm:$0xf]
        %v2220 = vld [vmem:[#allocation8 + $0x38] sm:$0xf]
        %v2221 = vld [vmem:[#allocation8 + $0x3c] sm:$0xf]
        %v2222 = vld [vmem:[#allocation8 + $0x40] sm:$0xf]
        %v2223 = vld [vmem:[#allocation8 + $0x44] sm:$0xf]
        %v2224 = vld [vmem:[#allocation8 + $0x48] sm:$0xf]
        %v2225 = vld [vmem:[#allocation8 + $0x4c] sm:$0xf]
        %v2226 = vld [vmem:[#allocation8 + $0x50] sm:$0xf]
        %v2227 = vld [vmem:[#allocation8 + $0x54] sm:$0xf]
        %v2228 = vld [vmem:[#allocation8 + $0x58] sm:$0xf]
        %v2229 = vld [vmem:[#allocation8 + $0x5c] sm:$0xf]
        %v2230 = vld [vmem:[#allocation8 + $0x60] sm:$0xf]
        %v2231 = vld [vmem:[#allocation8 + $0x64] sm:$0xf]
        %v2232 = vld [vmem:[#allocation8 + $0x68] sm:$0xf]
        %v2233 = vld [vmem:[#allocation8 + $0x6c] sm:$0xf]
        %v2234 = vld [vmem:[#allocation8 + $0x70] sm:$0xf]
        %v2235 = vld [vmem:[#allocation8 + $0x74] sm:$0xf]
        %v2236 = vld [vmem:[#allocation8 + $0x78] sm:$0xf]
        %v2237 = vld [vmem:[#allocation8 + $0x7c] sm:$0xf]
        %v2238 = vld [vmem:[#allocation8 + $0x80] sm:$0xf]
        %v2239 = vld [vmem:[#allocation8 + $0x84] sm:$0xf]
        %v2240 = vld [vmem:[#allocation8 + $0x88] sm:$0xf]
        %v2241 = vld [vmem:[#allocation8 + $0x8c] sm:$0xf]
        %v2242 = vld [vmem:[#allocation8 + $0x90] sm:$0xf]
        %v2243 = vld [vmem:[#allocation8 + $0x94] sm:$0xf]
        %v2244 = vld [vmem:[#allocation8 + $0x98] sm:$0xf]
        %v2245 = vld [vmem:[#allocation8 + $0x9c] sm:$0xf]
        %v2246 = vld [vmem:[#allocation8 + $0xa0] sm:$0xf]
        %v2247 = vld [vmem:[#allocation8 + $0xa4] sm:$0xf]
        %v2248 = vld [vmem:[#allocation8 + $0xa8] sm:$0xf]
        %v2249 = vld [vmem:[#allocation8 + $0xac] sm:$0xf]
        %v2250 = vld [vmem:[#allocation8 + $0xb0] sm:$0xf]
        %v2251 = vld [vmem:[#allocation8 + $0xb4] sm:$0xf]
        %v2252 = vld [vmem:[#allocation8 + $0xb8] sm:$0xf]
        %v2253 = vld [vmem:[#allocation8 + $0xbc] sm:$0xf]
        %v2254 = vld [vmem:[#allocation2 + $0x180] sm:$0xff]
        %v2255 = vld [vmem:[#allocation2 + $0x188] sm:$0xff]
        %v2256 = vld [vmem:[#allocation2 + $0x190] sm:$0xff]
        %s2257 = scalar_lea.vmem [#allocation8], 192
        %v2258 = vld [vmem:[%s2257] sm:$0xf]
        %v2259 = vld [vmem:[%s2257 + $0x4] sm:$0xf]
        %v2260 = vld [vmem:[%s2257 + $0x8] sm:$0xf]
        %v2261 = vld [vmem:[%s2257 + $0xc] sm:$0xf]
        %v2262 = vld [vmem:[%s2257 + $0x10] sm:$0xf]
        %v2263 = vld [vmem:[%s2257 + $0x14] sm:$0xf]
        %v2264 = vld [vmem:[%s2257 + $0x18] sm:$0xf]
        %v2265 = vld [vmem:[%s2257 + $0x1c] sm:$0xf]
        %v2266 = vld [vmem:[%s2257 + $0x20] sm:$0xf]
        %v2267 = vld [vmem:[%s2257 + $0x24] sm:$0xf]
        %v2268 = vld [vmem:[%s2257 + $0x28] sm:$0xf]
        %v2269 = vld [vmem:[%s2257 + $0x2c] sm:$0xf]
        %v2270 = vld [vmem:[%s2257 + $0x30] sm:$0xf]
        %v2271 = vld [vmem:[%s2257 + $0x34] sm:$0xf]
        %v2272 = vld [vmem:[%s2257 + $0x38] sm:$0xf]
        %v2273 = vld [vmem:[%s2257 + $0x3c] sm:$0xf]
        %v2274 = vld [vmem:[%s2257 + $0x40] sm:$0xf]
        %v2275 = vld [vmem:[%s2257 + $0x44] sm:$0xf]
        %v2276 = vld [vmem:[%s2257 + $0x48] sm:$0xf]
        %v2277 = vld [vmem:[%s2257 + $0x4c] sm:$0xf]
        %v2278 = vld [vmem:[%s2257 + $0x50] sm:$0xf]
        %v2279 = vld [vmem:[%s2257 + $0x54] sm:$0xf]
        %v2280 = vld [vmem:[%s2257 + $0x58] sm:$0xf]
        %v2281 = vld [vmem:[%s2257 + $0x5c] sm:$0xf]
        %v2282 = vld [vmem:[%s2257 + $0x60] sm:$0xf]
        %v2283 = vld [vmem:[%s2257 + $0x64] sm:$0xf]
        %v2284 = vld [vmem:[%s2257 + $0x68] sm:$0xf]
        %v2285 = vld [vmem:[%s2257 + $0x6c] sm:$0xf]
        %v2286 = vld [vmem:[%s2257 + $0x70] sm:$0xf]
        %v2287 = vld [vmem:[%s2257 + $0x74] sm:$0xf]
        %v2288 = vld [vmem:[%s2257 + $0x78] sm:$0xf]
        %v2289 = vld [vmem:[%s2257 + $0x7c] sm:$0xf]
        %v2290 = vld [vmem:[%s2257 + $0x80] sm:$0xf]
        %v2291 = vld [vmem:[%s2257 + $0x84] sm:$0xf]
        %v2292 = vld [vmem:[%s2257 + $0x88] sm:$0xf]
        %v2293 = vld [vmem:[%s2257 + $0x8c] sm:$0xf]
        %v2294 = vld [vmem:[%s2257 + $0x90] sm:$0xf]
        %v2295 = vld [vmem:[%s2257 + $0x94] sm:$0xf]
        %v2296 = vld [vmem:[%s2257 + $0x98] sm:$0xf]
        %v2297 = vld [vmem:[%s2257 + $0x9c] sm:$0xf]
        %v2298 = vld [vmem:[%s2257 + $0xa0] sm:$0xf]
        %v2299 = vld [vmem:[%s2257 + $0xa4] sm:$0xf]
        %v2300 = vld [vmem:[%s2257 + $0xa8] sm:$0xf]
        %v2301 = vld [vmem:[%s2257 + $0xac] sm:$0xf]
        %v2302 = vld [vmem:[%s2257 + $0xb0] sm:$0xf]
        %v2303 = vld [vmem:[%s2257 + $0xb4] sm:$0xf]
        %v2304 = vld [vmem:[%s2257 + $0xb8] sm:$0xf]
        %v2305 = vld [vmem:[%s2257 + $0xbc] sm:$0xf]
        %v2354 = vunpack.c.l.b16 %v2258
        %v2355 = vunpack.c.l.b16 %v2259
        %v2356 = vunpack.c.l.b16 %v2260
        %v2357 = vunpack.c.l.b16 %v2261
        %v2358 = vunpack.c.l.b16 %v2262
        %v2359 = vunpack.c.l.b16 %v2263
        %v2360 = vunpack.c.l.b16 %v2264
        %v2361 = vunpack.c.l.b16 %v2265
        %v2362 = vunpack.c.l.b16 %v2266
        %v2363 = vunpack.c.l.b16 %v2267
        %v2364 = vunpack.c.l.b16 %v2268
        %v2365 = vunpack.c.l.b16 %v2269
        %v2366 = vunpack.c.l.b16 %v2270
        %v2367 = vunpack.c.l.b16 %v2271
        %v2368 = vunpack.c.l.b16 %v2272
        %v2369 = vunpack.c.l.b16 %v2273
        %v2370 = vunpack.c.l.b16 %v2274
        %v2371 = vunpack.c.l.b16 %v2275
        %v2372 = vunpack.c.l.b16 %v2276
        %v2373 = vunpack.c.l.b16 %v2277
        %v2374 = vunpack.c.l.b16 %v2278
        %v2375 = vunpack.c.l.b16 %v2279
        %v2376 = vunpack.c.l.b16 %v2280
        %v2377 = vunpack.c.l.b16 %v2281
        %v2378 = vunpack.c.l.b16 %v2282
        %v2379 = vunpack.c.l.b16 %v2283
        %v2380 = vunpack.c.l.b16 %v2284
        %v2381 = vunpack.c.l.b16 %v2285
        %v2382 = vunpack.c.l.b16 %v2286
        %v2383 = vunpack.c.l.b16 %v2287
        %v2384 = vunpack.c.l.b16 %v2288
        %v2385 = vunpack.c.l.b16 %v2289
        %v2386 = vunpack.c.l.b16 %v2290
        %v2387 = vunpack.c.l.b16 %v2291
        %v2388 = vunpack.c.l.b16 %v2292
        %v2389 = vunpack.c.l.b16 %v2293
        %v2390 = vunpack.c.l.b16 %v2294
        %v2391 = vunpack.c.l.b16 %v2295
        %v2392 = vunpack.c.l.b16 %v2296
        %v2393 = vunpack.c.l.b16 %v2297
        %v2394 = vunpack.c.l.b16 %v2298
        %v2395 = vunpack.c.l.b16 %v2299
        %v2396 = vunpack.c.l.b16 %v2300
        %v2397 = vunpack.c.l.b16 %v2301
        %v2398 = vunpack.c.l.b16 %v2302
        %v2399 = vunpack.c.l.b16 %v2303
        %v2400 = vunpack.c.l.b16 %v2304
        %v2401 = vunpack.c.l.b16 %v2305
        %v2402 = vpack.c.b16 %v2355, %v2354
        %v2403 = vpack.c.b16 %v2357, %v2356
        %v2404 = vpack.c.b16 %v2359, %v2358
        %v2405 = vpack.c.b16 %v2361, %v2360
        %v2406 = vpack.c.b16 %v2363, %v2362
        %v2407 = vpack.c.b16 %v2365, %v2364
        %v2408 = vpack.c.b16 %v2367, %v2366
        %v2409 = vpack.c.b16 %v2369, %v2368
        %v2410 = vpack.c.b16 %v2371, %v2370
        %v2411 = vpack.c.b16 %v2373, %v2372
        %v2412 = vpack.c.b16 %v2375, %v2374
        %v2413 = vpack.c.b16 %v2377, %v2376
        %v2414 = vpack.c.b16 %v2379, %v2378
        %v2415 = vpack.c.b16 %v2381, %v2380
        %v2416 = vpack.c.b16 %v2383, %v2382
        %v2417 = vpack.c.b16 %v2385, %v2384
        %v2418 = vpack.c.b16 %v2387, %v2386
        %v2419 = vpack.c.b16 %v2389, %v2388
        %v2420 = vpack.c.b16 %v2391, %v2390
        %v2421 = vpack.c.b16 %v2393, %v2392
        %v2422 = vpack.c.b16 %v2395, %v2394
        %v2423 = vpack.c.b16 %v2397, %v2396
        %v2424 = vpack.c.b16 %v2399, %v2398
        %v2425 = vpack.c.b16 %v2401, %v2400
        %2450 = vmatprep.subr.bf16.mxu0 0
        %2451 = vmatpush1.bf16.msra.mxu0 %v2402
        %2452 = vmatprep.subr.bf16.mxu0 0
        %2453 = vmatpush1.bf16.msra.mxu0 %v2403
        %2454 = vmatprep.subr.bf16.mxu0 0
        %2455 = vmatpush1.bf16.msra.mxu0 %v2404
        %2456 = vmatprep.subr.bf16.mxu0 0
        %2457 = vmatpush1.bf16.msra.mxu0 %v2405
        %2458 = vmatprep.subr.bf16.mxu0 0
        %2459 = vmatpush1.bf16.msra.mxu0 %v2406
        %2460 = vmatprep.subr.bf16.mxu0 0
        %2461 = vmatpush1.bf16.msra.mxu0 %v2407
        %2462 = vmatprep.subr.bf16.mxu0 0
        %2463 = vmatpush1.bf16.msra.mxu0 %v2408
        %2464 = vmatprep.subr.bf16.mxu0 0
        %2465 = vmatpush1.bf16.msra.mxu0 %v2409
        %2466 = vmatprep.subr.bf16.mxu0 0
        %2467 = vmatpush1.bf16.msra.mxu0 %v2410
        %2468 = vmatprep.subr.bf16.mxu0 0
        %2469 = vmatpush1.bf16.msra.mxu0 %v2411
        %2470 = vmatprep.subr.bf16.mxu0 0
        %2471 = vmatpush1.bf16.msra.mxu0 %v2412
        %2472 = vmatprep.subr.bf16.mxu0 0
        %2473 = vmatpush1.bf16.msra.mxu0 %v2413
        %2474 = vmatprep.subr.bf16.mxu0 0
        %2475 = vmatpush1.bf16.msra.mxu0 %v2414
        %2476 = vmatprep.subr.bf16.mxu0 0
        %2477 = vmatpush1.bf16.msra.mxu0 %v2415
        %2478 = vmatprep.subr.bf16.mxu0 0
        %2479 = vmatpush1.bf16.msra.mxu0 %v2416
        %2480 = vmatprep.subr.bf16.mxu0 0
        %2481 = vmatpush1.bf16.msra.mxu0 %v2417
        %2482 = vmatprep.mubr.bf16.mxu0 %v2162
        %2483 = vmatmul.mubr.bf16.gmra.mrb[0].mxu0 %v2161
        %v2484 = vpop.f32.mrb[0].mxu0
        %v2485 = vadd.f32 0.0, %v2484
        %v2486 = vpop.f32.mrb[0].mxu0
        %v2487 = vpop.f32.mrb[0].mxu0
        %v2488 = vadd.f32 0.0, %v2487
        %v2489 = vpop.f32.mrb[0].mxu0
        %2490 = vmatprep.mubr.bf16.mxu0 %v2165
        %2491 = vmatmul.mubr.bf16.gmra.mrb[0].mxu0 %v2164
        %v2492 = vpop.f32.mrb[0].mxu0
        %v2493 = vadd.f32 0.0, %v2492
        %v2494 = vpop.f32.mrb[0].mxu0
        %v2495 = vpop.f32.mrb[0].mxu0
        %v2496 = vadd.f32 0.0, %v2495
        %v2497 = vpop.f32.mrb[0].mxu0
        %2498 = vmatprep.mubr.bf16.mxu0 %v2168
        %2499 = vmatmul.mubr.bf16.gmra.mrb[0].mxu0 %v2167
        %v2500 = vpop.f32.mrb[0].mxu0
        %v2501 = vadd.f32 0.0, %v2500
        %v2502 = vpop.f32.mrb[0].mxu0
        %v2503 = vpop.f32.mrb[0].mxu0
        %v2504 = vadd.f32 0.0, %v2503
        %v2505 = vpop.f32.mrb[0].mxu0
        %2506 = vmatprep.mubr.bf16.mxu0 %v2171
        %2507 = vmatmul.mubr.bf16.gmra.mrb[0].mxu0 %v2170
        %v2508 = vpop.f32.mrb[0].mxu0
        %v2509 = vadd.f32 0.0, %v2508
        %v2510 = vpop.f32.mrb[0].mxu0
        %v2511 = vpop.f32.mrb[0].mxu0
        %v2512 = vadd.f32 0.0, %v2511
        %v2513 = vpop.f32.mrb[0].mxu0
        %2514 = vmatprep.mubr.bf16.mxu0 %v2174
        %2515 = vmatmul.mubr.bf16.gmra.mrb[0].mxu0 %v2173
        %v2516 = vpop.f32.mrb[0].mxu0
        %v2517 = vadd.f32 0.0, %v2516
        %v2518 = vpop.f32.mrb[0].mxu0
        %v2519 = vpop.f32.mrb[0].mxu0
        %v2520 = vadd.f32 0.0, %v2519
        %v2521 = vpop.f32.mrb[0].mxu0
        %2522 = vmatprep.mubr.bf16.mxu0 %v2177
        %2523 = vmatmul.mubr.bf16.gmra.mrb[0].mxu0 %v2176
        %v2524 = vpop.f32.mrb[0].mxu0
        %v2525 = vadd.f32 0.0, %v2524
        %v2526 = vpop.f32.mrb[0].mxu0
        %v2527 = vpop.f32.mrb[0].mxu0
        %v2528 = vadd.f32 0.0, %v2527
        %v2529 = vpop.f32.mrb[0].mxu0
        %2530 = vmatprep.mubr.bf16.mxu0 %v2180
        %2531 = vmatmul.mubr.bf16.gmra.mrb[0].mxu0 %v2179
        %v2532 = vpop.f32.mrb[0].mxu0
        %v2533 = vadd.f32 0.0, %v2532
        %v2534 = vpop.f32.mrb[0].mxu0
        %v2535 = vpop.f32.mrb[0].mxu0
        %v2536 = vadd.f32 0.0, %v2535
        %v2537 = vpop.f32.mrb[0].mxu0
        %2538 = vmatprep.mubr.bf16.mxu0 %v2183
        %2539 = vmatmul.mubr.bf16.gmra.mrb[0].mxu0 %v2182
        %v2540 = vpop.f32.mrb[0].mxu0
        %v2541 = vadd.f32 0.0, %v2540
        %v2542 = vpop.f32.mrb[0].mxu0
        %v2543 = vpop.f32.mrb[0].mxu0
        %v2544 = vadd.f32 0.0, %v2543
        %v2545 = vpop.f32.mrb[0].mxu0
        %2546 = vmatprep.mubr.bf16.mxu0 %v2186
        %2547 = vmatmul.mubr.bf16.gmra.mrb[0].mxu0 %v2185
        %v2548 = vpop.f32.mrb[0].mxu0
        %v2549 = vadd.f32 0.0, %v2548
        %v2550 = vpop.f32.mrb[0].mxu0
        %v2551 = vpop.f32.mrb[0].mxu0
        %v2552 = vadd.f32 0.0, %v2551
        %v2553 = vpop.f32.mrb[0].mxu0
        %2554 = vmatprep.mubr.bf16.mxu0 %v2189
        %2555 = vmatmul.mubr.bf16.gmra.mrb[0].mxu0 %v2188
        %v2556 = vpop.f32.mrb[0].mxu0
        %v2557 = vadd.f32 0.0, %v2556
        %v2558 = vpop.f32.mrb[0].mxu0
        %v2559 = vpop.f32.mrb[0].mxu0
        %v2560 = vadd.f32 0.0, %v2559
        %v2561 = vpop.f32.mrb[0].mxu0
        %2562 = vmatprep.mubr.bf16.mxu0 %v2192
        %2563 = vmatmul.mubr.bf16.gmra.mrb[0].mxu0 %v2191
        %v2564 = vpop.f32.mrb[0].mxu0
        %v2565 = vadd.f32 0.0, %v2564
        %v2566 = vpop.f32.mrb[0].mxu0
        %v2567 = vpop.f32.mrb[0].mxu0
        %v2568 = vadd.f32 0.0, %v2567
        %v2569 = vpop.f32.mrb[0].mxu0
        %2570 = vmatprep.mubr.bf16.mxu0 %v2195
        %2571 = vmatmul.mubr.bf16.gmra.mrb[0].mxu0 %v2194
        %v2572 = vpop.f32.mrb[0].mxu0
        %v2573 = vadd.f32 0.0, %v2572
        %v2574 = vpop.f32.mrb[0].mxu0
        %v2575 = vpop.f32.mrb[0].mxu0
        %v2576 = vadd.f32 0.0, %v2575
        %v2577 = vpop.f32.mrb[0].mxu0
        %2578 = vmatprep.mubr.bf16.mxu0 %v2198
        %2579 = vmatmul.mubr.bf16.gmra.mrb[0].mxu0 %v2197
        %v2580 = vpop.f32.mrb[0].mxu0
        %v2581 = vadd.f32 0.0, %v2580
        %v2582 = vpop.f32.mrb[0].mxu0
        %v2583 = vpop.f32.mrb[0].mxu0
        %v2584 = vadd.f32 0.0, %v2583
        %v2585 = vpop.f32.mrb[0].mxu0
        %2586 = vmatprep.mubr.bf16.mxu0 %v2201
        %2587 = vmatmul.mubr.bf16.gmra.mrb[0].mxu0 %v2200
        %v2588 = vpop.f32.mrb[0].mxu0
        %v2589 = vadd.f32 0.0, %v2588
        %v2590 = vpop.f32.mrb[0].mxu0
        %v2591 = vpop.f32.mrb[0].mxu0
        %v2592 = vadd.f32 0.0, %v2591
        %v2593 = vpop.f32.mrb[0].mxu0
        %2594 = vmatprep.mubr.bf16.mxu0 %v2204
        %2595 = vmatmul.mubr.bf16.gmra.mrb[0].mxu0 %v2203
        %v2596 = vpop.f32.mrb[0].mxu0
        %v2597 = vadd.f32 0.0, %v2596
        %v2598 = vpop.f32.mrb[0].mxu0
        %v2599 = vpop.f32.mrb[0].mxu0
        %v2600 = vadd.f32 0.0, %v2599
        %v2601 = vpop.f32.mrb[0].mxu0
        %2602 = vmatprep.mubr.bf16.mxu0 %v2255
        %2603 = vmatmul.mubr.bf16.gmra.mrb[0].mxu0 %v2254
        %v2604 = vpop.f32.mrb[0].mxu0
        %v2605 = vadd.f32 0.0, %v2604
        %v2606 = vpop.f32.mrb[0].mxu0
        %v2607 = vpop.f32.mrb[0].mxu0
        %v2608 = vadd.f32 0.0, %v2607
        %v2609 = vpop.f32.mrb[0].mxu0
        %2610 = vdwg.mxu0
        %2611 = vmatprep.subr.bf16.mxu0 0
        %2612 = vmatpush1.bf16.msra.mxu0 %v2418
        %2613 = vmatprep.subr.bf16.mxu0 0
        %2614 = vmatpush1.bf16.msra.mxu0 %v2419
        %2615 = vmatprep.subr.bf16.mxu0 0
        %2616 = vmatpush1.bf16.msra.mxu0 %v2420
        %2617 = vmatprep.subr.bf16.mxu0 0
        %2618 = vmatpush1.bf16.msra.mxu0 %v2421
        %2619 = vmatprep.subr.bf16.mxu0 0
        %2620 = vmatpush1.bf16.msra.mxu0 %v2422
        %2621 = vmatprep.subr.bf16.mxu0 0
        %2622 = vmatpush1.bf16.msra.mxu0 %v2423
        %2623 = vmatprep.subr.bf16.mxu0 0
        %2624 = vmatpush1.bf16.msra.mxu0 %v2424
        %2625 = vmatprep.subr.bf16.mxu0 0
        %2626 = vmatpush1.bf16.msra.mxu0 %v2425
        %2627 = vmatprep.subr.bf16.mxu0 0
        %2628 = vmatpush1.bf16.msra.mxu0 0
        %2629 = vmatprep.subr.bf16.mxu0 0
        %2630 = vmatpush1.bf16.msra.mxu0 0
        %2631 = vmatprep.subr.bf16.mxu0 0
        %2632 = vmatpush1.bf16.msra.mxu0 0
        %2633 = vmatprep.subr.bf16.mxu0 0
        %2634 = vmatpush1.bf16.msra.mxu0 0
        %2635 = vmatprep.subr.bf16.mxu0 0
        %2636 = vmatpush1.bf16.msra.mxu0 0
        %2637 = vmatprep.subr.bf16.mxu0 0
        %2638 = vmatpush1.bf16.msra.mxu0 0
        %2639 = vmatprep.subr.bf16.mxu0 0
        %2640 = vmatpush1.bf16.msra.mxu0 0
        %2641 = vmatprep.subr.bf16.mxu0 0
        %2642 = vmatpush1.bf16.msra.mxu0 0
        %2643 = vmatprep.mubr.bf16.mxu0 0
        %2644 = vmatmul.mubr.bf16.gmra.mrb[0].mxu0 %v2163
        %v2645 = vpop.f32.mrb[0].mxu0
        %v2646 = vadd.f32 %v2485, %v2645
        %v2647 = vpop.f32.mrb[0].mxu0
        %v2648 = vpop.f32.mrb[0].mxu0
        %v2649 = vadd.f32 %v2488, %v2648
        %v2650 = vpop.f32.mrb[0].mxu0
        %2651 = vmatprep.mubr.bf16.mxu0 0
        %2652 = vmatmul.mubr.bf16.gmra.mrb[0].mxu0 %v2166
        %v2653 = vpop.f32.mrb[0].mxu0
        %v2654 = vadd.f32 %v2493, %v2653
        %v2655 = vpop.f32.mrb[0].mxu0
        %v2656 = vpop.f32.mrb[0].mxu0
        %v2657 = vadd.f32 %v2496, %v2656
        %v2658 = vpop.f32.mrb[0].mxu0
        %2659 = vmatprep.mubr.bf16.mxu0 0
        %2660 = vmatmul.mubr.bf16.gmra.mrb[0].mxu0 %v2169
        %v2661 = vpop.f32.mrb[0].mxu0
        %v2662 = vadd.f32 %v2501, %v2661
        %v2663 = vpop.f32.mrb[0].mxu0
        %v2664 = vpop.f32.mrb[0].mxu0
        %v2665 = vadd.f32 %v2504, %v2664
        %v2666 = vpop.f32.mrb[0].mxu0
        %2667 = vmatprep.mubr.bf16.mxu0 0
        %2668 = vmatmul.mubr.bf16.gmra.mrb[0].mxu0 %v2172
        %v2669 = vpop.f32.mrb[0].mxu0
        %v2670 = vadd.f32 %v2509, %v2669
        %v2671 = vpop.f32.mrb[0].mxu0
        %v2672 = vpop.f32.mrb[0].mxu0
        %v2673 = vadd.f32 %v2512, %v2672
        %v2674 = vpop.f32.mrb[0].mxu0
        %2675 = vmatprep.mubr.bf16.mxu0 0
        %2676 = vmatmul.mubr.bf16.gmra.mrb[0].mxu0 %v2175
        %v2677 = vpop.f32.mrb[0].mxu0
        %v2678 = vadd.f32 %v2517, %v2677
        %v2679 = vpop.f32.mrb[0].mxu0
        %v2680 = vpop.f32.mrb[0].mxu0
        %v2681 = vadd.f32 %v2520, %v2680
        %v2682 = vpop.f32.mrb[0].mxu0
        %2683 = vmatprep.mubr.bf16.mxu0 0
        %2684 = vmatmul.mubr.bf16.gmra.mrb[0].mxu0 %v2178
        %v2685 = vpop.f32.mrb[0].mxu0
        %v2686 = vadd.f32 %v2525, %v2685
        %v2687 = vpop.f32.mrb[0].mxu0
        %v2688 = vpop.f32.mrb[0].mxu0
        %v2689 = vadd.f32 %v2528, %v2688
        %v2690 = vpop.f32.mrb[0].mxu0
        %2691 = vmatprep.mubr.bf16.mxu0 0
        %2692 = vmatmul.mubr.bf16.gmra.mrb[0].mxu0 %v2181
        %v2693 = vpop.f32.mrb[0].mxu0
        %v2694 = vadd.f32 %v2533, %v2693
        %v2695 = vpop.f32.mrb[0].mxu0
        %v2696 = vpop.f32.mrb[0].mxu0
        %v2697 = vadd.f32 %v2536, %v2696
        %v2698 = vpop.f32.mrb[0].mxu0
        %2699 = vmatprep.mubr.bf16.mxu0 0
        %2700 = vmatmul.mubr.bf16.gmra.mrb[0].mxu0 %v2184
        %v2701 = vpop.f32.mrb[0].mxu0
        %v2702 = vadd.f32 %v2541, %v2701
        %v2703 = vpop.f32.mrb[0].mxu0
        %v2704 = vpop.f32.mrb[0].mxu0
        %v2705 = vadd.f32 %v2544, %v2704
        %v2706 = vpop.f32.mrb[0].mxu0
        %2707 = vmatprep.mubr.bf16.mxu0 0
        %2708 = vmatmul.mubr.bf16.gmra.mrb[0].mxu0 %v2187
        %v2709 = vpop.f32.mrb[0].mxu0
        %v2710 = vadd.f32 %v2549, %v2709
        %v2711 = vpop.f32.mrb[0].mxu0
        %v2712 = vpop.f32.mrb[0].mxu0
        %v2713 = vadd.f32 %v2552, %v2712
        %v2714 = vpop.f32.mrb[0].mxu0
        %2715 = vmatprep.mubr.bf16.mxu0 0
        %2716 = vmatmul.mubr.bf16.gmra.mrb[0].mxu0 %v2190
        %v2717 = vpop.f32.mrb[0].mxu0
        %v2718 = vadd.f32 %v2557, %v2717
        %v2719 = vpop.f32.mrb[0].mxu0
        %v2720 = vpop.f32.mrb[0].mxu0
        %v2721 = vadd.f32 %v2560, %v2720
        %v2722 = vpop.f32.mrb[0].mxu0
        %2723 = vmatprep.mubr.bf16.mxu0 0
        %2724 = vmatmul.mubr.bf16.gmra.mrb[0].mxu0 %v2193
        %v2725 = vpop.f32.mrb[0].mxu0
        %v2726 = vadd.f32 %v2565, %v2725
        %v2727 = vpop.f32.mrb[0].mxu0
        %v2728 = vpop.f32.mrb[0].mxu0
        %v2729 = vadd.f32 %v2568, %v2728
        %v2730 = vpop.f32.mrb[0].mxu0
        %2731 = vmatprep.mubr.bf16.mxu0 0
        %2732 = vmatmul.mubr.bf16.gmra.mrb[0].mxu0 %v2196
        %v2733 = vpop.f32.mrb[0].mxu0
        %v2734 = vadd.f32 %v2573, %v2733
        %v2735 = vpop.f32.mrb[0].mxu0
        %v2736 = vpop.f32.mrb[0].mxu0
        %v2737 = vadd.f32 %v2576, %v2736
        %v2738 = vpop.f32.mrb[0].mxu0
        %2739 = vmatprep.mubr.bf16.mxu0 0
        %2740 = vmatmul.mubr.bf16.gmra.mrb[0].mxu0 %v2199
        %v2741 = vpop.f32.mrb[0].mxu0
        %v2742 = vadd.f32 %v2581, %v2741
        %v2743 = vpop.f32.mrb[0].mxu0
        %v2744 = vpop.f32.mrb[0].mxu0
        %v2745 = vadd.f32 %v2584, %v2744
        %v2746 = vpop.f32.mrb[0].mxu0
        %2747 = vmatprep.mubr.bf16.mxu0 0
        %2748 = vmatmul.mubr.bf16.gmra.mrb[0].mxu0 %v2202
        %v2749 = vpop.f32.mrb[0].mxu0
        %v2750 = vadd.f32 %v2589, %v2749
        %v2751 = vpop.f32.mrb[0].mxu0
        %v2752 = vpop.f32.mrb[0].mxu0
        %v2753 = vadd.f32 %v2592, %v2752
        %v2754 = vpop.f32.mrb[0].mxu0
        %2755 = vmatprep.mubr.bf16.mxu0 0
        %2756 = vmatmul.mubr.bf16.gmra.mrb[0].mxu0 %v2205
        %v2757 = vpop.f32.mrb[0].mxu0
        %v2758 = vadd.f32 %v2597, %v2757
        %v2759 = vpop.f32.mrb[0].mxu0
        %v2760 = vpop.f32.mrb[0].mxu0
        %v2761 = vadd.f32 %v2600, %v2760
        %v2762 = vpop.f32.mrb[0].mxu0
        %2763 = vmatprep.mubr.bf16.mxu0 0
        %2764 = vmatmul.mubr.bf16.gmra.mrb[0].mxu0 %v2256
        %v2765 = vpop.f32.mrb[0].mxu0
        %v2766 = vadd.f32 %v2605, %v2765
        %v2767 = vpop.f32.mrb[0].mxu0
        %v2768 = vpop.f32.mrb[0].mxu0
        %v2769 = vadd.f32 %v2608, %v2768
        %v2770 = vpop.f32.mrb[0].mxu0
        %2771 = vdwg.mxu0
        %v2820 = vunpack.c.l.b16 %v2206
        %v2821 = vunpack.c.l.b16 %v2207
        %v2822 = vunpack.c.l.b16 %v2208
        %v2823 = vunpack.c.l.b16 %v2209
        %v2824 = vunpack.c.l.b16 %v2210
        %v2825 = vunpack.c.l.b16 %v2211
        %v2826 = vunpack.c.l.b16 %v2212
        %v2827 = vunpack.c.l.b16 %v2213
        %v2828 = vunpack.c.l.b16 %v2214
        %v2829 = vunpack.c.l.b16 %v2215
        %v2830 = vunpack.c.l.b16 %v2216
        %v2831 = vunpack.c.l.b16 %v2217
        %v2832 = vunpack.c.l.b16 %v2218
        %v2833 = vunpack.c.l.b16 %v2219
        %v2834 = vunpack.c.l.b16 %v2220
        %v2835 = vunpack.c.l.b16 %v2221
        %v2836 = vunpack.c.l.b16 %v2222
        %v2837 = vunpack.c.l.b16 %v2223
        %v2838 = vunpack.c.l.b16 %v2224
        %v2839 = vunpack.c.l.b16 %v2225
        %v2840 = vunpack.c.l.b16 %v2226
        %v2841 = vunpack.c.l.b16 %v2227
        %v2842 = vunpack.c.l.b16 %v2228
        %v2843 = vunpack.c.l.b16 %v2229
        %v2844 = vunpack.c.l.b16 %v2230
        %v2845 = vunpack.c.l.b16 %v2231
        %v2846 = vunpack.c.l.b16 %v2232
        %v2847 = vunpack.c.l.b16 %v2233
        %v2848 = vunpack.c.l.b16 %v2234
        %v2849 = vunpack.c.l.b16 %v2235
        %v2850 = vunpack.c.l.b16 %v2236
        %v2851 = vunpack.c.l.b16 %v2237
        %v2852 = vunpack.c.l.b16 %v2238
        %v2853 = vunpack.c.l.b16 %v2239
        %v2854 = vunpack.c.l.b16 %v2240
        %v2855 = vunpack.c.l.b16 %v2241
        %v2856 = vunpack.c.l.b16 %v2242
        %v2857 = vunpack.c.l.b16 %v2243
        %v2858 = vunpack.c.l.b16 %v2244
        %v2859 = vunpack.c.l.b16 %v2245
        %v2860 = vunpack.c.l.b16 %v2246
        %v2861 = vunpack.c.l.b16 %v2247
        %v2862 = vunpack.c.l.b16 %v2248
        %v2863 = vunpack.c.l.b16 %v2249
        %v2864 = vunpack.c.l.b16 %v2250
        %v2865 = vunpack.c.l.b16 %v2251
        %v2866 = vunpack.c.l.b16 %v2252
        %v2867 = vunpack.c.l.b16 %v2253
        %v2868 = vpack.c.b16 %v2821, %v2820
        %v2869 = vpack.c.b16 %v2823, %v2822
        %v2870 = vpack.c.b16 %v2825, %v2824
        %v2871 = vpack.c.b16 %v2827, %v2826
        %v2872 = vpack.c.b16 %v2829, %v2828
        %v2873 = vpack.c.b16 %v2831, %v2830
        %v2874 = vpack.c.b16 %v2833, %v2832
        %v2875 = vpack.c.b16 %v2835, %v2834
        %v2876 = vpack.c.b16 %v2837, %v2836
        %v2877 = vpack.c.b16 %v2839, %v2838
        %v2878 = vpack.c.b16 %v2841, %v2840
        %v2879 = vpack.c.b16 %v2843, %v2842
        %v2880 = vpack.c.b16 %v2845, %v2844
        %v2881 = vpack.c.b16 %v2847, %v2846
        %v2882 = vpack.c.b16 %v2849, %v2848
        %v2883 = vpack.c.b16 %v2851, %v2850
        %v2884 = vpack.c.b16 %v2853, %v2852
        %v2885 = vpack.c.b16 %v2855, %v2854
        %v2886 = vpack.c.b16 %v2857, %v2856
        %v2887 = vpack.c.b16 %v2859, %v2858
        %v2888 = vpack.c.b16 %v2861, %v2860
        %v2889 = vpack.c.b16 %v2863, %v2862
        %v2890 = vpack.c.b16 %v2865, %v2864
        %v2891 = vpack.c.b16 %v2867, %v2866
        %2916 = vmatprep.subr.bf16.mxu0 0
        %2917 = vmatpush1.bf16.msra.mxu0 %v2868
        %2918 = vmatprep.subr.bf16.mxu0 0
        %2919 = vmatpush1.bf16.msra.mxu0 %v2869
        %2920 = vmatprep.subr.bf16.mxu0 0
        %2921 = vmatpush1.bf16.msra.mxu0 %v2870
        %2922 = vmatprep.subr.bf16.mxu0 0
        %2923 = vmatpush1.bf16.msra.mxu0 %v2871
        %2924 = vmatprep.subr.bf16.mxu0 0
        %2925 = vmatpush1.bf16.msra.mxu0 %v2872
        %2926 = vmatprep.subr.bf16.mxu0 0
        %2927 = vmatpush1.bf16.msra.mxu0 %v2873
        %2928 = vmatprep.subr.bf16.mxu0 0
        %2929 = vmatpush1.bf16.msra.mxu0 %v2874
        %2930 = vmatprep.subr.bf16.mxu0 0
        %2931 = vmatpush1.bf16.msra.mxu0 %v2875
        %2932 = vmatprep.subr.bf16.mxu0 0
        %2933 = vmatpush1.bf16.msra.mxu0 %v2876
        %2934 = vmatprep.subr.bf16.mxu0 0
        %2935 = vmatpush1.bf16.msra.mxu0 %v2877
        %2936 = vmatprep.subr.bf16.mxu0 0
        %2937 = vmatpush1.bf16.msra.mxu0 %v2878
        %2938 = vmatprep.subr.bf16.mxu0 0
        %2939 = vmatpush1.bf16.msra.mxu0 %v2879
        %2940 = vmatprep.subr.bf16.mxu0 0
        %2941 = vmatpush1.bf16.msra.mxu0 %v2880
        %2942 = vmatprep.subr.bf16.mxu0 0
        %2943 = vmatpush1.bf16.msra.mxu0 %v2881
        %2944 = vmatprep.subr.bf16.mxu0 0
        %2945 = vmatpush1.bf16.msra.mxu0 %v2882
        %2946 = vmatprep.subr.bf16.mxu0 0
        %2947 = vmatpush1.bf16.msra.mxu0 %v2883
        %2948 = vmatprep.mubr.bf16.mxu0 %v2159
        %2949 = vmatmul.mubr.bf16.gmra.mrb[0].mxu0 %v2158
        %v2950 = vpop.f32.mrb[0].mxu0
        %v2951 = vadd.f32 %v2646, %v2950
        %v2952 = vpop.f32.mrb[0].mxu0
        %v2953 = vpop.f32.mrb[0].mxu0
        %v2954 = vadd.f32 %v2649, %v2953
        %v2955 = vpop.f32.mrb[0].mxu0
        %2956 = vmatprep.mubr.bf16.mxu0 %v2162
        %2957 = vmatmul.mubr.bf16.gmra.mrb[0].mxu0 %v2161
        %v2958 = vpop.f32.mrb[0].mxu0
        %v2959 = vadd.f32 %v2654, %v2958
        %v2960 = vpop.f32.mrb[0].mxu0
        %v2961 = vpop.f32.mrb[0].mxu0
        %v2962 = vadd.f32 %v2657, %v2961
        %v2963 = vpop.f32.mrb[0].mxu0
        %2964 = vmatprep.mubr.bf16.mxu0 %v2165
        %2965 = vmatmul.mubr.bf16.gmra.mrb[0].mxu0 %v2164
        %v2966 = vpop.f32.mrb[0].mxu0
        %v2967 = vadd.f32 %v2662, %v2966
        %v2968 = vpop.f32.mrb[0].mxu0
        %v2969 = vpop.f32.mrb[0].mxu0
        %v2970 = vadd.f32 %v2665, %v2969
        %v2971 = vpop.f32.mrb[0].mxu0
        %2972 = vmatprep.mubr.bf16.mxu0 %v2168
        %2973 = vmatmul.mubr.bf16.gmra.mrb[0].mxu0 %v2167
        %v2974 = vpop.f32.mrb[0].mxu0
        %v2975 = vadd.f32 %v2670, %v2974
        %v2976 = vpop.f32.mrb[0].mxu0
        %v2977 = vpop.f32.mrb[0].mxu0
        %v2978 = vadd.f32 %v2673, %v2977
        %v2979 = vpop.f32.mrb[0].mxu0
        %2980 = vmatprep.mubr.bf16.mxu0 %v2171
        %2981 = vmatmul.mubr.bf16.gmra.mrb[0].mxu0 %v2170
        %v2982 = vpop.f32.mrb[0].mxu0
        %v2983 = vadd.f32 %v2678, %v2982
        %v2984 = vpop.f32.mrb[0].mxu0
        %v2985 = vpop.f32.mrb[0].mxu0
        %v2986 = vadd.f32 %v2681, %v2985
        %v2987 = vpop.f32.mrb[0].mxu0
        %2988 = vmatprep.mubr.bf16.mxu0 %v2174
        %2989 = vmatmul.mubr.bf16.gmra.mrb[0].mxu0 %v2173
        %v2990 = vpop.f32.mrb[0].mxu0
        %v2991 = vadd.f32 %v2686, %v2990
        %v2992 = vpop.f32.mrb[0].mxu0
        %v2993 = vpop.f32.mrb[0].mxu0
        %v2994 = vadd.f32 %v2689, %v2993
        %v2995 = vpop.f32.mrb[0].mxu0
        %2996 = vmatprep.mubr.bf16.mxu0 %v2177
        %2997 = vmatmul.mubr.bf16.gmra.mrb[0].mxu0 %v2176
        %v2998 = vpop.f32.mrb[0].mxu0
        %v2999 = vadd.f32 %v2694, %v2998
        %v3000 = vpop.f32.mrb[0].mxu0
        %v3001 = vpop.f32.mrb[0].mxu0
        %v3002 = vadd.f32 %v2697, %v3001
        %v3003 = vpop.f32.mrb[0].mxu0
        %3004 = vmatprep.mubr.bf16.mxu0 %v2180
        %3005 = vmatmul.mubr.bf16.gmra.mrb[0].mxu0 %v2179
        %v3006 = vpop.f32.mrb[0].mxu0
        %v3007 = vadd.f32 %v2702, %v3006
        %v3008 = vpop.f32.mrb[0].mxu0
        %v3009 = vpop.f32.mrb[0].mxu0
        %v3010 = vadd.f32 %v2705, %v3009
        %v3011 = vpop.f32.mrb[0].mxu0
        %3012 = vmatprep.mubr.bf16.mxu0 %v2183
        %3013 = vmatmul.mubr.bf16.gmra.mrb[0].mxu0 %v2182
        %v3014 = vpop.f32.mrb[0].mxu0
        %v3015 = vadd.f32 %v2710, %v3014
        %v3016 = vpop.f32.mrb[0].mxu0
        %v3017 = vpop.f32.mrb[0].mxu0
        %v3018 = vadd.f32 %v2713, %v3017
        %v3019 = vpop.f32.mrb[0].mxu0
        %3020 = vmatprep.mubr.bf16.mxu0 %v2186
        %3021 = vmatmul.mubr.bf16.gmra.mrb[0].mxu0 %v2185
        %v3022 = vpop.f32.mrb[0].mxu0
        %v3023 = vadd.f32 %v2718, %v3022
        %v3024 = vpop.f32.mrb[0].mxu0
        %v3025 = vpop.f32.mrb[0].mxu0
        %v3026 = vadd.f32 %v2721, %v3025
        %v3027 = vpop.f32.mrb[0].mxu0
        %3028 = vmatprep.mubr.bf16.mxu0 %v2189
        %3029 = vmatmul.mubr.bf16.gmra.mrb[0].mxu0 %v2188
        %v3030 = vpop.f32.mrb[0].mxu0
        %v3031 = vadd.f32 %v2726, %v3030
        %v3032 = vpop.f32.mrb[0].mxu0
        %v3033 = vpop.f32.mrb[0].mxu0
        %v3034 = vadd.f32 %v2729, %v3033
        %v3035 = vpop.f32.mrb[0].mxu0
        %3036 = vmatprep.mubr.bf16.mxu0 %v2192
        %3037 = vmatmul.mubr.bf16.gmra.mrb[0].mxu0 %v2191
        %v3038 = vpop.f32.mrb[0].mxu0
        %v3039 = vadd.f32 %v2734, %v3038
        %v3040 = vpop.f32.mrb[0].mxu0
        %v3041 = vpop.f32.mrb[0].mxu0
        %v3042 = vadd.f32 %v2737, %v3041
        %v3043 = vpop.f32.mrb[0].mxu0
        %3044 = vmatprep.mubr.bf16.mxu0 %v2195
        %3045 = vmatmul.mubr.bf16.gmra.mrb[0].mxu0 %v2194
        %v3046 = vpop.f32.mrb[0].mxu0
        %v3047 = vadd.f32 %v2742, %v3046
        %v3048 = vpop.f32.mrb[0].mxu0
        %v3049 = vpop.f32.mrb[0].mxu0
        %v3050 = vadd.f32 %v2745, %v3049
        %v3051 = vpop.f32.mrb[0].mxu0
        %3052 = vmatprep.mubr.bf16.mxu0 %v2198
        %3053 = vmatmul.mubr.bf16.gmra.mrb[0].mxu0 %v2197
        %v3054 = vpop.f32.mrb[0].mxu0
        %v3055 = vadd.f32 %v2750, %v3054
        %v3056 = vpop.f32.mrb[0].mxu0
        %v3057 = vpop.f32.mrb[0].mxu0
        %v3058 = vadd.f32 %v2753, %v3057
        %v3059 = vpop.f32.mrb[0].mxu0
        %3060 = vmatprep.mubr.bf16.mxu0 %v2201
        %3061 = vmatmul.mubr.bf16.gmra.mrb[0].mxu0 %v2200
        %v3062 = vpop.f32.mrb[0].mxu0
        %v3063 = vadd.f32 %v2758, %v3062
        %v3064 = vpop.f32.mrb[0].mxu0
        %v3065 = vpop.f32.mrb[0].mxu0
        %v3066 = vadd.f32 %v2761, %v3065
        %v3067 = vpop.f32.mrb[0].mxu0
        %3068 = vmatprep.mubr.bf16.mxu0 %v2204
        %3069 = vmatmul.mubr.bf16.gmra.mrb[0].mxu0 %v2203
        %v3070 = vpop.f32.mrb[0].mxu0
        %v3071 = vadd.f32 %v2766, %v3070
        %v3072 = vpop.f32.mrb[0].mxu0
        %v3073 = vpop.f32.mrb[0].mxu0
        %v3074 = vadd.f32 %v2769, %v3073
        %v3075 = vpop.f32.mrb[0].mxu0
        %3076 = vdwg.mxu0
        %3077 = vmatprep.subr.bf16.mxu0 0
        %3078 = vmatpush1.bf16.msra.mxu0 %v2884
        %3079 = vmatprep.subr.bf16.mxu0 0
        %3080 = vmatpush1.bf16.msra.mxu0 %v2885
        %3081 = vmatprep.subr.bf16.mxu0 0
        %3082 = vmatpush1.bf16.msra.mxu0 %v2886
        %3083 = vmatprep.subr.bf16.mxu0 0
        %3084 = vmatpush1.bf16.msra.mxu0 %v2887
        %3085 = vmatprep.subr.bf16.mxu0 0
        %3086 = vmatpush1.bf16.msra.mxu0 %v2888
        %3087 = vmatprep.subr.bf16.mxu0 0
        %3088 = vmatpush1.bf16.msra.mxu0 %v2889
        %3089 = vmatprep.subr.bf16.mxu0 0
        %3090 = vmatpush1.bf16.msra.mxu0 %v2890
        %3091 = vmatprep.subr.bf16.mxu0 0
        %3092 = vmatpush1.bf16.msra.mxu0 %v2891
        %3093 = vmatprep.subr.bf16.mxu0 0
        %3094 = vmatpush1.bf16.msra.mxu0 0
        %3095 = vmatprep.subr.bf16.mxu0 0
        %3096 = vmatpush1.bf16.msra.mxu0 0
        %3097 = vmatprep.subr.bf16.mxu0 0
        %3098 = vmatpush1.bf16.msra.mxu0 0
        %3099 = vmatprep.subr.bf16.mxu0 0
        %3100 = vmatpush1.bf16.msra.mxu0 0
        %3101 = vmatprep.subr.bf16.mxu0 0
        %3102 = vmatpush1.bf16.msra.mxu0 0
        %3103 = vmatprep.subr.bf16.mxu0 0
        %3104 = vmatpush1.bf16.msra.mxu0 0
        %3105 = vmatprep.subr.bf16.mxu0 0
        %3106 = vmatpush1.bf16.msra.mxu0 0
        %3107 = vmatprep.subr.bf16.mxu0 0
        %3108 = vmatpush1.bf16.msra.mxu0 0
        %3109 = vmatprep.mubr.bf16.mxu0 0
        %3110 = vmatmul.mubr.bf16.gmra.mrb[0].mxu0 %v2160
        %v3111 = vpop.f32.mrb[0].mxu0
        %v3112 = vadd.f32 %v2951, %v3111
        %v3113 = vpop.f32.mrb[0].mxu0
        %v3114 = vpop.f32.mrb[0].mxu0
        %v3115 = vadd.f32 %v2954, %v3114
        %v3116 = vpop.f32.mrb[0].mxu0
        %3117 = vmatprep.mubr.bf16.mxu0 0
        %3118 = vmatmul.mubr.bf16.gmra.mrb[0].mxu0 %v2163
        %v3119 = vpop.f32.mrb[0].mxu0
        %v3120 = vadd.f32 %v2959, %v3119
        %v3121 = vpop.f32.mrb[0].mxu0
        %v3122 = vpop.f32.mrb[0].mxu0
        %v3123 = vadd.f32 %v2962, %v3122
        %v3124 = vpop.f32.mrb[0].mxu0
        %3125 = vmatprep.mubr.bf16.mxu0 0
        %3126 = vmatmul.mubr.bf16.gmra.mrb[0].mxu0 %v2166
        %v3127 = vpop.f32.mrb[0].mxu0
        %v3128 = vadd.f32 %v2967, %v3127
        %v3129 = vpop.f32.mrb[0].mxu0
        %v3130 = vpop.f32.mrb[0].mxu0
        %v3131 = vadd.f32 %v2970, %v3130
        %v3132 = vpop.f32.mrb[0].mxu0
        %3133 = vmatprep.mubr.bf16.mxu0 0
        %3134 = vmatmul.mubr.bf16.gmra.mrb[0].mxu0 %v2169
        %v3135 = vpop.f32.mrb[0].mxu0
        %v3136 = vadd.f32 %v2975, %v3135
        %v3137 = vpop.f32.mrb[0].mxu0
        %v3138 = vpop.f32.mrb[0].mxu0
        %v3139 = vadd.f32 %v2978, %v3138
        %v3140 = vpop.f32.mrb[0].mxu0
        %3141 = vmatprep.mubr.bf16.mxu0 0
        %3142 = vmatmul.mubr.bf16.gmra.mrb[0].mxu0 %v2172
        %v3143 = vpop.f32.mrb[0].mxu0
        %v3144 = vadd.f32 %v2983, %v3143
        %v3145 = vpop.f32.mrb[0].mxu0
        %v3146 = vpop.f32.mrb[0].mxu0
        %v3147 = vadd.f32 %v2986, %v3146
        %v3148 = vpop.f32.mrb[0].mxu0
        %3149 = vmatprep.mubr.bf16.mxu0 0
        %3150 = vmatmul.mubr.bf16.gmra.mrb[0].mxu0 %v2175
        %v3151 = vpop.f32.mrb[0].mxu0
        %v3152 = vadd.f32 %v2991, %v3151
        %v3153 = vpop.f32.mrb[0].mxu0
        %v3154 = vpop.f32.mrb[0].mxu0
        %v3155 = vadd.f32 %v2994, %v3154
        %v3156 = vpop.f32.mrb[0].mxu0
        %3157 = vmatprep.mubr.bf16.mxu0 0
        %3158 = vmatmul.mubr.bf16.gmra.mrb[0].mxu0 %v2178
        %v3159 = vpop.f32.mrb[0].mxu0
        %v3160 = vadd.f32 %v2999, %v3159
        %v3161 = vpop.f32.mrb[0].mxu0
        %v3162 = vpop.f32.mrb[0].mxu0
        %v3163 = vadd.f32 %v3002, %v3162
        %v3164 = vpop.f32.mrb[0].mxu0
        %3165 = vmatprep.mubr.bf16.mxu0 0
        %3166 = vmatmul.mubr.bf16.gmra.mrb[0].mxu0 %v2181
        %v3167 = vpop.f32.mrb[0].mxu0
        %v3168 = vadd.f32 %v3007, %v3167
        %v3169 = vpop.f32.mrb[0].mxu0
        %v3170 = vpop.f32.mrb[0].mxu0
        %v3171 = vadd.f32 %v3010, %v3170
        %v3172 = vpop.f32.mrb[0].mxu0
        %3173 = vmatprep.mubr.bf16.mxu0 0
        %3174 = vmatmul.mubr.bf16.gmra.mrb[0].mxu0 %v2184
        %v3175 = vpop.f32.mrb[0].mxu0
        %v3176 = vadd.f32 %v3015, %v3175
        %v3177 = vpop.f32.mrb[0].mxu0
        %v3178 = vpop.f32.mrb[0].mxu0
        %v3179 = vadd.f32 %v3018, %v3178
        %v3180 = vpop.f32.mrb[0].mxu0
        %3181 = vmatprep.mubr.bf16.mxu0 0
        %3182 = vmatmul.mubr.bf16.gmra.mrb[0].mxu0 %v2187
        %v3183 = vpop.f32.mrb[0].mxu0
        %v3184 = vadd.f32 %v3023, %v3183
        %v3185 = vpop.f32.mrb[0].mxu0
        %v3186 = vpop.f32.mrb[0].mxu0
        %v3187 = vadd.f32 %v3026, %v3186
        %v3188 = vpop.f32.mrb[0].mxu0
        %3189 = vmatprep.mubr.bf16.mxu0 0
        %3190 = vmatmul.mubr.bf16.gmra.mrb[0].mxu0 %v2190
        %v3191 = vpop.f32.mrb[0].mxu0
        %v3192 = vadd.f32 %v3031, %v3191
        %v3193 = vpop.f32.mrb[0].mxu0
        %v3194 = vpop.f32.mrb[0].mxu0
        %v3195 = vadd.f32 %v3034, %v3194
        %v3196 = vpop.f32.mrb[0].mxu0
        %3197 = vmatprep.mubr.bf16.mxu0 0
        %3198 = vmatmul.mubr.bf16.gmra.mrb[0].mxu0 %v2193
        %v3199 = vpop.f32.mrb[0].mxu0
        %v3200 = vadd.f32 %v3039, %v3199
        %v3201 = vpop.f32.mrb[0].mxu0
        %v3202 = vpop.f32.mrb[0].mxu0
        %v3203 = vadd.f32 %v3042, %v3202
        %v3204 = vpop.f32.mrb[0].mxu0
        %3205 = vmatprep.mubr.bf16.mxu0 0
        %3206 = vmatmul.mubr.bf16.gmra.mrb[0].mxu0 %v2196
        %v3207 = vpop.f32.mrb[0].mxu0
        %v3208 = vadd.f32 %v3047, %v3207
        %v3209 = vpop.f32.mrb[0].mxu0
        %v3210 = vpop.f32.mrb[0].mxu0
        %v3211 = vadd.f32 %v3050, %v3210
        %v3212 = vpop.f32.mrb[0].mxu0
        %3213 = vmatprep.mubr.bf16.mxu0 0
        %3214 = vmatmul.mubr.bf16.gmra.mrb[0].mxu0 %v2199
        %v3215 = vpop.f32.mrb[0].mxu0
        %v3216 = vadd.f32 %v3055, %v3215
        %v3217 = vpop.f32.mrb[0].mxu0
        %v3218 = vpop.f32.mrb[0].mxu0
        %v3219 = vadd.f32 %v3058, %v3218
        %v3220 = vpop.f32.mrb[0].mxu0
        %3221 = vmatprep.mubr.bf16.mxu0 0
        %3222 = vmatmul.mubr.bf16.gmra.mrb[0].mxu0 %v2202
        %v3223 = vpop.f32.mrb[0].mxu0
        %v3224 = vadd.f32 %v3063, %v3223
        %v3225 = vpop.f32.mrb[0].mxu0
        %v3226 = vpop.f32.mrb[0].mxu0
        %v3227 = vadd.f32 %v3066, %v3226
        %v3228 = vpop.f32.mrb[0].mxu0
        %3229 = vmatprep.mubr.bf16.mxu0 0
        %3230 = vmatmul.mubr.bf16.gmra.mrb[0].mxu0 %v2205
        %v3231 = vpop.f32.mrb[0].mxu0
        %v3232 = vadd.f32 %v3071, %v3231
        %v3233 = vpop.f32.mrb[0].mxu0
        %v3234 = vpop.f32.mrb[0].mxu0
        %v3235 = vadd.f32 %v3074, %v3234
        %v3236 = vpop.f32.mrb[0].mxu0
        %3237 = vdwg.mxu0
        %v3238 = vld [vmem:[#allocation2 + $0x30] sm:$0xff]
        %v3239 = vld [vmem:[#allocation2 + $0x38] sm:$0xff]
        %v3240 = vld [vmem:[#allocation2 + $0x40] sm:$0xff]
        %v3241 = vld [vmem:[#allocation2 + $0x48] sm:$0xff]
        %v3242 = vld [vmem:[#allocation2 + $0x50] sm:$0xff]
        %v3243 = vld [vmem:[#allocation2 + $0x58] sm:$0xff]
        %v3244 = vld [vmem:[#allocation2 + $0x60] sm:$0xff]
        %v3245 = vld [vmem:[#allocation2 + $0x68] sm:$0xff]
        %v3246 = vld [vmem:[#allocation2 + $0x70] sm:$0xff]
        %v3247 = vld [vmem:[#allocation2 + $0x78] sm:$0xff]
        %v3248 = vld [vmem:[#allocation2 + $0x80] sm:$0xff]
        %v3249 = vld [vmem:[#allocation2 + $0x88] sm:$0xff]
        %v3250 = vld [vmem:[#allocation2 + $0x90] sm:$0xff]
        %v3251 = vld [vmem:[#allocation2 + $0x98] sm:$0xff]
        %v3252 = vld [vmem:[#allocation2 + $0xa0] sm:$0xff]
        %v3253 = vld [vmem:[#allocation2 + $0xa8] sm:$0xff]
        %v3254 = vld [vmem:[#allocation2 + $0xb0] sm:$0xff]
        %v3255 = vld [vmem:[#allocation2 + $0xb8] sm:$0xff]
        %v3256 = vld [vmem:[#allocation2 + $0xc0] sm:$0xff]
        %v3257 = vld [vmem:[#allocation2 + $0xc8] sm:$0xff]
        %v3258 = vld [vmem:[#allocation2 + $0xd0] sm:$0xff]
        %v3259 = vld [vmem:[#allocation2 + $0xd8] sm:$0xff]
        %v3260 = vld [vmem:[#allocation2 + $0xe0] sm:$0xff]
        %v3261 = vld [vmem:[#allocation2 + $0xe8] sm:$0xff]
        %v3262 = vld [vmem:[#allocation2 + $0xf0] sm:$0xff]
        %v3263 = vld [vmem:[#allocation2 + $0xf8] sm:$0xff]
        %v3264 = vld [vmem:[#allocation2 + $0x100] sm:$0xff]
        %v3265 = vld [vmem:[#allocation2 + $0x108] sm:$0xff]
        %v3266 = vld [vmem:[#allocation2 + $0x110] sm:$0xff]
        %v3267 = vld [vmem:[#allocation2 + $0x118] sm:$0xff]
        %v3268 = vld [vmem:[#allocation2 + $0x120] sm:$0xff]
        %v3269 = vld [vmem:[#allocation2 + $0x128] sm:$0xff]
        %v3270 = vld [vmem:[#allocation2 + $0x130] sm:$0xff]
        %v3271 = vld [vmem:[#allocation2 + $0x138] sm:$0xff]
        %v3272 = vld [vmem:[#allocation2 + $0x140] sm:$0xff]
        %v3273 = vld [vmem:[#allocation2 + $0x148] sm:$0xff]
        %v3274 = vld [vmem:[#allocation2 + $0x150] sm:$0xff]
        %v3275 = vld [vmem:[#allocation2 + $0x158] sm:$0xff]
        %v3276 = vld [vmem:[#allocation2 + $0x160] sm:$0xff]
        %v3277 = vld [vmem:[#allocation2 + $0x168] sm:$0xff]
        %v3278 = vld [vmem:[#allocation2 + $0x170] sm:$0xff]
        %v3279 = vld [vmem:[#allocation2 + $0x178] sm:$0xff]
        %v3280 = vld [vmem:[#allocation2 + $0x180] sm:$0xff]
        %v3281 = vld [vmem:[#allocation2 + $0x188] sm:$0xff]
        %v3282 = vld [vmem:[#allocation2 + $0x190] sm:$0xff]
        %v3283 = vld [vmem:[#allocation2 + $0x198] sm:$0xff]
        %v3284 = vld [vmem:[#allocation2 + $0x1a0] sm:$0xff]
        %v3285 = vld [vmem:[#allocation2 + $0x1a8] sm:$0xff]
        %s3286 = scalar_lea.vmem [#allocation8], 384
        %v3287 = vld [vmem:[%s3286] sm:$0xf]
        %v3288 = vld [vmem:[%s3286 + $0x4] sm:$0xf]
        %v3289 = vld [vmem:[%s3286 + $0x8] sm:$0xf]
        %v3290 = vld [vmem:[%s3286 + $0xc] sm:$0xf]
        %v3291 = vld [vmem:[%s3286 + $0x10] sm:$0xf]
        %v3292 = vld [vmem:[%s3286 + $0x14] sm:$0xf]
        %v3293 = vld [vmem:[%s3286 + $0x18] sm:$0xf]
        %v3294 = vld [vmem:[%s3286 + $0x1c] sm:$0xf]
        %v3295 = vld [vmem:[%s3286 + $0x20] sm:$0xf]
        %v3296 = vld [vmem:[%s3286 + $0x24] sm:$0xf]
        %v3297 = vld [vmem:[%s3286 + $0x28] sm:$0xf]
        %v3298 = vld [vmem:[%s3286 + $0x2c] sm:$0xf]
        %v3299 = vld [vmem:[%s3286 + $0x30] sm:$0xf]
        %v3300 = vld [vmem:[%s3286 + $0x34] sm:$0xf]
        %v3301 = vld [vmem:[%s3286 + $0x38] sm:$0xf]
        %v3302 = vld [vmem:[%s3286 + $0x3c] sm:$0xf]
        %v3303 = vld [vmem:[%s3286 + $0x40] sm:$0xf]
        %v3304 = vld [vmem:[%s3286 + $0x44] sm:$0xf]
        %v3305 = vld [vmem:[%s3286 + $0x48] sm:$0xf]
        %v3306 = vld [vmem:[%s3286 + $0x4c] sm:$0xf]
        %v3307 = vld [vmem:[%s3286 + $0x50] sm:$0xf]
        %v3308 = vld [vmem:[%s3286 + $0x54] sm:$0xf]
        %v3309 = vld [vmem:[%s3286 + $0x58] sm:$0xf]
        %v3310 = vld [vmem:[%s3286 + $0x5c] sm:$0xf]
        %v3311 = vld [vmem:[%s3286 + $0x60] sm:$0xf]
        %v3312 = vld [vmem:[%s3286 + $0x64] sm:$0xf]
        %v3313 = vld [vmem:[%s3286 + $0x68] sm:$0xf]
        %v3314 = vld [vmem:[%s3286 + $0x6c] sm:$0xf]
        %v3315 = vld [vmem:[%s3286 + $0x70] sm:$0xf]
        %v3316 = vld [vmem:[%s3286 + $0x74] sm:$0xf]
        %v3317 = vld [vmem:[%s3286 + $0x78] sm:$0xf]
        %v3318 = vld [vmem:[%s3286 + $0x7c] sm:$0xf]
        %v3319 = vld [vmem:[%s3286 + $0x80] sm:$0xf]
        %v3320 = vld [vmem:[%s3286 + $0x84] sm:$0xf]
        %v3321 = vld [vmem:[%s3286 + $0x88] sm:$0xf]
        %v3322 = vld [vmem:[%s3286 + $0x8c] sm:$0xf]
        %v3323 = vld [vmem:[%s3286 + $0x90] sm:$0xf]
        %v3324 = vld [vmem:[%s3286 + $0x94] sm:$0xf]
        %v3325 = vld [vmem:[%s3286 + $0x98] sm:$0xf]
        %v3326 = vld [vmem:[%s3286 + $0x9c] sm:$0xf]
        %v3327 = vld [vmem:[%s3286 + $0xa0] sm:$0xf]
        %v3328 = vld [vmem:[%s3286 + $0xa4] sm:$0xf]
        %v3329 = vld [vmem:[%s3286 + $0xa8] sm:$0xf]
        %v3330 = vld [vmem:[%s3286 + $0xac] sm:$0xf]
        %v3331 = vld [vmem:[%s3286 + $0xb0] sm:$0xf]
        %v3332 = vld [vmem:[%s3286 + $0xb4] sm:$0xf]
        %v3333 = vld [vmem:[%s3286 + $0xb8] sm:$0xf]
        %v3334 = vld [vmem:[%s3286 + $0xbc] sm:$0xf]
        %v3383 = vunpack.c.l.b16 %v3287
        %v3384 = vunpack.c.l.b16 %v3288
        %v3385 = vunpack.c.l.b16 %v3289
        %v3386 = vunpack.c.l.b16 %v3290
        %v3387 = vunpack.c.l.b16 %v3291
        %v3388 = vunpack.c.l.b16 %v3292
        %v3389 = vunpack.c.l.b16 %v3293
        %v3390 = vunpack.c.l.b16 %v3294
        %v3391 = vunpack.c.l.b16 %v3295
        %v3392 = vunpack.c.l.b16 %v3296
        %v3393 = vunpack.c.l.b16 %v3297
        %v3394 = vunpack.c.l.b16 %v3298
        %v3395 = vunpack.c.l.b16 %v3299
        %v3396 = vunpack.c.l.b16 %v3300
        %v3397 = vunpack.c.l.b16 %v3301
        %v3398 = vunpack.c.l.b16 %v3302
        %v3399 = vunpack.c.l.b16 %v3303
        %v3400 = vunpack.c.l.b16 %v3304
        %v3401 = vunpack.c.l.b16 %v3305
        %v3402 = vunpack.c.l.b16 %v3306
        %v3403 = vunpack.c.l.b16 %v3307
        %v3404 = vunpack.c.l.b16 %v3308
        %v3405 = vunpack.c.l.b16 %v3309
        %v3406 = vunpack.c.l.b16 %v3310
        %v3407 = vunpack.c.l.b16 %v3311
        %v3408 = vunpack.c.l.b16 %v3312
        %v3409 = vunpack.c.l.b16 %v3313
        %v3410 = vunpack.c.l.b16 %v3314
        %v3411 = vunpack.c.l.b16 %v3315
        %v3412 = vunpack.c.l.b16 %v3316
        %v3413 = vunpack.c.l.b16 %v3317
        %v3414 = vunpack.c.l.b16 %v3318
        %v3415 = vunpack.c.l.b16 %v3319
        %v3416 = vunpack.c.l.b16 %v3320
        %v3417 = vunpack.c.l.b16 %v3321
        %v3418 = vunpack.c.l.b16 %v3322
        %v3419 = vunpack.c.l.b16 %v3323
        %v3420 = vunpack.c.l.b16 %v3324
        %v3421 = vunpack.c.l.b16 %v3325
        %v3422 = vunpack.c.l.b16 %v3326
        %v3423 = vunpack.c.l.b16 %v3327
        %v3424 = vunpack.c.l.b16 %v3328
        %v3425 = vunpack.c.l.b16 %v3329
        %v3426 = vunpack.c.l.b16 %v3330
        %v3427 = vunpack.c.l.b16 %v3331
        %v3428 = vunpack.c.l.b16 %v3332
        %v3429 = vunpack.c.l.b16 %v3333
        %v3430 = vunpack.c.l.b16 %v3334
        %v3431 = vpack.c.b16 %v3384, %v3383
        %v3432 = vpack.c.b16 %v3386, %v3385
        %v3433 = vpack.c.b16 %v3388, %v3387
        %v3434 = vpack.c.b16 %v3390, %v3389
        %v3435 = vpack.c.b16 %v3392, %v3391
        %v3436 = vpack.c.b16 %v3394, %v3393
        %v3437 = vpack.c.b16 %v3396, %v3395
        %v3438 = vpack.c.b16 %v3398, %v3397
        %v3439 = vpack.c.b16 %v3400, %v3399
        %v3440 = vpack.c.b16 %v3402, %v3401
        %v3441 = vpack.c.b16 %v3404, %v3403
        %v3442 = vpack.c.b16 %v3406, %v3405
        %v3443 = vpack.c.b16 %v3408, %v3407
        %v3444 = vpack.c.b16 %v3410, %v3409
        %v3445 = vpack.c.b16 %v3412, %v3411
        %v3446 = vpack.c.b16 %v3414, %v3413
        %v3447 = vpack.c.b16 %v3416, %v3415
        %v3448 = vpack.c.b16 %v3418, %v3417
        %v3449 = vpack.c.b16 %v3420, %v3419
        %v3450 = vpack.c.b16 %v3422, %v3421
        %v3451 = vpack.c.b16 %v3424, %v3423
        %v3452 = vpack.c.b16 %v3426, %v3425
        %v3453 = vpack.c.b16 %v3428, %v3427
        %v3454 = vpack.c.b16 %v3430, %v3429
        %3479 = vmatprep.subr.bf16.mxu0 0
        %3480 = vmatpush1.bf16.msra.mxu0 %v3431
        %3481 = vmatprep.subr.bf16.mxu0 0
        %3482 = vmatpush1.bf16.msra.mxu0 %v3432
        %3483 = vmatprep.subr.bf16.mxu0 0
        %3484 = vmatpush1.bf16.msra.mxu0 %v3433
        %3485 = vmatprep.subr.bf16.mxu0 0
        %3486 = vmatpush1.bf16.msra.mxu0 %v3434
        %3487 = vmatprep.subr.bf16.mxu0 0
        %3488 = vmatpush1.bf16.msra.mxu0 %v3435
        %3489 = vmatprep.subr.bf16.mxu0 0
        %3490 = vmatpush1.bf16.msra.mxu0 %v3436
        %3491 = vmatprep.subr.bf16.mxu0 0
        %3492 = vmatpush1.bf16.msra.mxu0 %v3437
        %3493 = vmatprep.subr.bf16.mxu0 0
        %3494 = vmatpush1.bf16.msra.mxu0 %v3438
        %3495 = vmatprep.subr.bf16.mxu0 0
        %3496 = vmatpush1.bf16.msra.mxu0 %v3439
        %3497 = vmatprep.subr.bf16.mxu0 0
        %3498 = vmatpush1.bf16.msra.mxu0 %v3440
        %3499 = vmatprep.subr.bf16.mxu0 0
        %3500 = vmatpush1.bf16.msra.mxu0 %v3441
        %3501 = vmatprep.subr.bf16.mxu0 0
        %3502 = vmatpush1.bf16.msra.mxu0 %v3442
        %3503 = vmatprep.subr.bf16.mxu0 0
        %3504 = vmatpush1.bf16.msra.mxu0 %v3443
        %3505 = vmatprep.subr.bf16.mxu0 0
        %3506 = vmatpush1.bf16.msra.mxu0 %v3444
        %3507 = vmatprep.subr.bf16.mxu0 0
        %3508 = vmatpush1.bf16.msra.mxu0 %v3445
        %3509 = vmatprep.subr.bf16.mxu0 0
        %3510 = vmatpush1.bf16.msra.mxu0 %v3446
        %3511 = vmatprep.mubr.bf16.mxu0 %v3239
        %3512 = vmatmul.mubr.bf16.gmra.mrb[0].mxu0 %v3238
        %v3513 = vpop.f32.mrb[0].mxu0
        %v3514 = vadd.f32 0.0, %v3513
        %v3515 = vpop.f32.mrb[0].mxu0
        %v3516 = vpop.f32.mrb[0].mxu0
        %v3517 = vadd.f32 0.0, %v3516
        %v3518 = vpop.f32.mrb[0].mxu0
        %3519 = vmatprep.mubr.bf16.mxu0 %v3242
        %3520 = vmatmul.mubr.bf16.gmra.mrb[0].mxu0 %v3241
        %v3521 = vpop.f32.mrb[0].mxu0
        %v3522 = vadd.f32 0.0, %v3521
        %v3523 = vpop.f32.mrb[0].mxu0
        %v3524 = vpop.f32.mrb[0].mxu0
        %v3525 = vadd.f32 0.0, %v3524
        %v3526 = vpop.f32.mrb[0].mxu0
        %3527 = vmatprep.mubr.bf16.mxu0 %v3245
        %3528 = vmatmul.mubr.bf16.gmra.mrb[0].mxu0 %v3244
        %v3529 = vpop.f32.mrb[0].mxu0
        %v3530 = vadd.f32 0.0, %v3529
        %v3531 = vpop.f32.mrb[0].mxu0
        %v3532 = vpop.f32.mrb[0].mxu0
        %v3533 = vadd.f32 0.0, %v3532
        %v3534 = vpop.f32.mrb[0].mxu0
        %3535 = vmatprep.mubr.bf16.mxu0 %v3248
        %3536 = vmatmul.mubr.bf16.gmra.mrb[0].mxu0 %v3247
        %v3537 = vpop.f32.mrb[0].mxu0
        %v3538 = vadd.f32 0.0, %v3537
        %v3539 = vpop.f32.mrb[0].mxu0
        %v3540 = vpop.f32.mrb[0].mxu0
        %v3541 = vadd.f32 0.0, %v3540
        %v3542 = vpop.f32.mrb[0].mxu0
        %3543 = vmatprep.mubr.bf16.mxu0 %v3251
        %3544 = vmatmul.mubr.bf16.gmra.mrb[0].mxu0 %v3250
        %v3545 = vpop.f32.mrb[0].mxu0
        %v3546 = vadd.f32 0.0, %v3545
        %v3547 = vpop.f32.mrb[0].mxu0
        %v3548 = vpop.f32.mrb[0].mxu0
        %v3549 = vadd.f32 0.0, %v3548
        %v3550 = vpop.f32.mrb[0].mxu0
        %3551 = vmatprep.mubr.bf16.mxu0 %v3254
        %3552 = vmatmul.mubr.bf16.gmra.mrb[0].mxu0 %v3253
        %v3553 = vpop.f32.mrb[0].mxu0
        %v3554 = vadd.f32 0.0, %v3553
        %v3555 = vpop.f32.mrb[0].mxu0
        %v3556 = vpop.f32.mrb[0].mxu0
        %v3557 = vadd.f32 0.0, %v3556
        %v3558 = vpop.f32.mrb[0].mxu0
        %3559 = vmatprep.mubr.bf16.mxu0 %v3257
        %3560 = vmatmul.mubr.bf16.gmra.mrb[0].mxu0 %v3256
        %v3561 = vpop.f32.mrb[0].mxu0
        %v3562 = vadd.f32 0.0, %v3561
        %v3563 = vpop.f32.mrb[0].mxu0
        %v3564 = vpop.f32.mrb[0].mxu0
        %v3565 = vadd.f32 0.0, %v3564
        %v3566 = vpop.f32.mrb[0].mxu0
        %3567 = vmatprep.mubr.bf16.mxu0 %v3260
        %3568 = vmatmul.mubr.bf16.gmra.mrb[0].mxu0 %v3259
        %v3569 = vpop.f32.mrb[0].mxu0
        %v3570 = vadd.f32 0.0, %v3569
        %v3571 = vpop.f32.mrb[0].mxu0
        %v3572 = vpop.f32.mrb[0].mxu0
        %v3573 = vadd.f32 0.0, %v3572
        %v3574 = vpop.f32.mrb[0].mxu0
        %3575 = vmatprep.mubr.bf16.mxu0 %v3263
        %3576 = vmatmul.mubr.bf16.gmra.mrb[0].mxu0 %v3262
        %v3577 = vpop.f32.mrb[0].mxu0
        %v3578 = vadd.f32 0.0, %v3577
        %v3579 = vpop.f32.mrb[0].mxu0
        %v3580 = vpop.f32.mrb[0].mxu0
        %v3581 = vadd.f32 0.0, %v3580
        %v3582 = vpop.f32.mrb[0].mxu0
        %3583 = vmatprep.mubr.bf16.mxu0 %v3266
        %3584 = vmatmul.mubr.bf16.gmra.mrb[0].mxu0 %v3265
        %v3585 = vpop.f32.mrb[0].mxu0
        %v3586 = vadd.f32 0.0, %v3585
        %v3587 = vpop.f32.mrb[0].mxu0
        %v3588 = vpop.f32.mrb[0].mxu0
        %v3589 = vadd.f32 0.0, %v3588
        %v3590 = vpop.f32.mrb[0].mxu0
        %3591 = vmatprep.mubr.bf16.mxu0 %v3269
        %3592 = vmatmul.mubr.bf16.gmra.mrb[0].mxu0 %v3268
        %v3593 = vpop.f32.mrb[0].mxu0
        %v3594 = vadd.f32 0.0, %v3593
        %v3595 = vpop.f32.mrb[0].mxu0
        %v3596 = vpop.f32.mrb[0].mxu0
        %v3597 = vadd.f32 0.0, %v3596
        %v3598 = vpop.f32.mrb[0].mxu0
        %3599 = vmatprep.mubr.bf16.mxu0 %v3272
        %3600 = vmatmul.mubr.bf16.gmra.mrb[0].mxu0 %v3271
        %v3601 = vpop.f32.mrb[0].mxu0
        %v3602 = vadd.f32 0.0, %v3601
        %v3603 = vpop.f32.mrb[0].mxu0
        %v3604 = vpop.f32.mrb[0].mxu0
        %v3605 = vadd.f32 0.0, %v3604
        %v3606 = vpop.f32.mrb[0].mxu0
        %3607 = vmatprep.mubr.bf16.mxu0 %v3275
        %3608 = vmatmul.mubr.bf16.gmra.mrb[0].mxu0 %v3274
        %v3609 = vpop.f32.mrb[0].mxu0
        %v3610 = vadd.f32 0.0, %v3609
        %v3611 = vpop.f32.mrb[0].mxu0
        %v3612 = vpop.f32.mrb[0].mxu0
        %v3613 = vadd.f32 0.0, %v3612
        %v3614 = vpop.f32.mrb[0].mxu0
        %3615 = vmatprep.mubr.bf16.mxu0 %v3278
        %3616 = vmatmul.mubr.bf16.gmra.mrb[0].mxu0 %v3277
        %v3617 = vpop.f32.mrb[0].mxu0
        %v3618 = vadd.f32 0.0, %v3617
        %v3619 = vpop.f32.mrb[0].mxu0
        %v3620 = vpop.f32.mrb[0].mxu0
        %v3621 = vadd.f32 0.0, %v3620
        %v3622 = vpop.f32.mrb[0].mxu0
        %3623 = vmatprep.mubr.bf16.mxu0 %v3281
        %3624 = vmatmul.mubr.bf16.gmra.mrb[0].mxu0 %v3280
        %v3625 = vpop.f32.mrb[0].mxu0
        %v3626 = vadd.f32 0.0, %v3625
        %v3627 = vpop.f32.mrb[0].mxu0
        %v3628 = vpop.f32.mrb[0].mxu0
        %v3629 = vadd.f32 0.0, %v3628
        %v3630 = vpop.f32.mrb[0].mxu0
        %3631 = vmatprep.mubr.bf16.mxu0 %v3284
        %3632 = vmatmul.mubr.bf16.gmra.mrb[0].mxu0 %v3283
        %v3633 = vpop.f32.mrb[0].mxu0
        %v3634 = vadd.f32 0.0, %v3633
        %v3635 = vpop.f32.mrb[0].mxu0
        %v3636 = vpop.f32.mrb[0].mxu0
        %v3637 = vadd.f32 0.0, %v3636
        %v3638 = vpop.f32.mrb[0].mxu0
        %3639 = vdwg.mxu0
        %3640 = vmatprep.subr.bf16.mxu0 0
        %3641 = vmatpush1.bf16.msra.mxu0 %v3447
        %3642 = vmatprep.subr.bf16.mxu0 0
        %3643 = vmatpush1.bf16.msra.mxu0 %v3448
        %3644 = vmatprep.subr.bf16.mxu0 0
        %3645 = vmatpush1.bf16.msra.mxu0 %v3449
        %3646 = vmatprep.subr.bf16.mxu0 0
        %3647 = vmatpush1.bf16.msra.mxu0 %v3450
        %3648 = vmatprep.subr.bf16.mxu0 0
        %3649 = vmatpush1.bf16.msra.mxu0 %v3451
        %3650 = vmatprep.subr.bf16.mxu0 0
        %3651 = vmatpush1.bf16.msra.mxu0 %v3452
        %3652 = vmatprep.subr.bf16.mxu0 0
        %3653 = vmatpush1.bf16.msra.mxu0 %v3453
        %3654 = vmatprep.subr.bf16.mxu0 0
        %3655 = vmatpush1.bf16.msra.mxu0 %v3454
        %3656 = vmatprep.subr.bf16.mxu0 0
        %3657 = vmatpush1.bf16.msra.mxu0 0
        %3658 = vmatprep.subr.bf16.mxu0 0
        %3659 = vmatpush1.bf16.msra.mxu0 0
        %3660 = vmatprep.subr.bf16.mxu0 0
        %3661 = vmatpush1.bf16.msra.mxu0 0
        %3662 = vmatprep.subr.bf16.mxu0 0
        %3663 = vmatpush1.bf16.msra.mxu0 0
        %3664 = vmatprep.subr.bf16.mxu0 0
        %3665 = vmatpush1.bf16.msra.mxu0 0
        %3666 = vmatprep.subr.bf16.mxu0 0
        %3667 = vmatpush1.bf16.msra.mxu0 0
        %3668 = vmatprep.subr.bf16.mxu0 0
        %3669 = vmatpush1.bf16.msra.mxu0 0
        %3670 = vmatprep.subr.bf16.mxu0 0
        %3671 = vmatpush1.bf16.msra.mxu0 0
        %3672 = vmatprep.mubr.bf16.mxu0 0
        %3673 = vmatmul.mubr.bf16.gmra.mrb[0].mxu0 %v3240
        %v3674 = vpop.f32.mrb[0].mxu0
        %v3675 = vadd.f32 %v3514, %v3674
        %v3676 = vpop.f32.mrb[0].mxu0
        %v3677 = vpop.f32.mrb[0].mxu0
        %v3678 = vadd.f32 %v3517, %v3677
        %v3679 = vpop.f32.mrb[0].mxu0
        %3680 = vmatprep.mubr.bf16.mxu0 0
        %3681 = vmatmul.mubr.bf16.gmra.mrb[0].mxu0 %v3243
        %v3682 = vpop.f32.mrb[0].mxu0
        %v3683 = vadd.f32 %v3522, %v3682
        %v3684 = vpop.f32.mrb[0].mxu0
        %v3685 = vpop.f32.mrb[0].mxu0
        %v3686 = vadd.f32 %v3525, %v3685
        %v3687 = vpop.f32.mrb[0].mxu0
        %3688 = vmatprep.mubr.bf16.mxu0 0
        %3689 = vmatmul.mubr.bf16.gmra.mrb[0].mxu0 %v3246
        %v3690 = vpop.f32.mrb[0].mxu0
        %v3691 = vadd.f32 %v3530, %v3690
        %v3692 = vpop.f32.mrb[0].mxu0
        %v3693 = vpop.f32.mrb[0].mxu0
        %v3694 = vadd.f32 %v3533, %v3693
        %v3695 = vpop.f32.mrb[0].mxu0
        %3696 = vmatprep.mubr.bf16.mxu0 0
        %3697 = vmatmul.mubr.bf16.gmra.mrb[0].mxu0 %v3249
        %v3698 = vpop.f32.mrb[0].mxu0
        %v3699 = vadd.f32 %v3538, %v3698
        %v3700 = vpop.f32.mrb[0].mxu0
        %v3701 = vpop.f32.mrb[0].mxu0
        %v3702 = vadd.f32 %v3541, %v3701
        %v3703 = vpop.f32.mrb[0].mxu0
        %3704 = vmatprep.mubr.bf16.mxu0 0
        %3705 = vmatmul.mubr.bf16.gmra.mrb[0].mxu0 %v3252
        %v3706 = vpop.f32.mrb[0].mxu0
        %v3707 = vadd.f32 %v3546, %v3706
        %v3708 = vpop.f32.mrb[0].mxu0
        %v3709 = vpop.f32.mrb[0].mxu0
        %v3710 = vadd.f32 %v3549, %v3709
        %v3711 = vpop.f32.mrb[0].mxu0
        %3712 = vmatprep.mubr.bf16.mxu0 0
        %3713 = vmatmul.mubr.bf16.gmra.mrb[0].mxu0 %v3255
        %v3714 = vpop.f32.mrb[0].mxu0
        %v3715 = vadd.f32 %v3554, %v3714
        %v3716 = vpop.f32.mrb[0].mxu0
        %v3717 = vpop.f32.mrb[0].mxu0
        %v3718 = vadd.f32 %v3557, %v3717
        %v3719 = vpop.f32.mrb[0].mxu0
        %3720 = vmatprep.mubr.bf16.mxu0 0
        %3721 = vmatmul.mubr.bf16.gmra.mrb[0].mxu0 %v3258
        %v3722 = vpop.f32.mrb[0].mxu0
        %v3723 = vadd.f32 %v3562, %v3722
        %v3724 = vpop.f32.mrb[0].mxu0
        %v3725 = vpop.f32.mrb[0].mxu0
        %v3726 = vadd.f32 %v3565, %v3725
        %v3727 = vpop.f32.mrb[0].mxu0
        %3728 = vmatprep.mubr.bf16.mxu0 0
        %3729 = vmatmul.mubr.bf16.gmra.mrb[0].mxu0 %v3261
        %v3730 = vpop.f32.mrb[0].mxu0
        %v3731 = vadd.f32 %v3570, %v3730
        %v3732 = vpop.f32.mrb[0].mxu0
        %v3733 = vpop.f32.mrb[0].mxu0
        %v3734 = vadd.f32 %v3573, %v3733
        %v3735 = vpop.f32.mrb[0].mxu0
        %3736 = vmatprep.mubr.bf16.mxu0 0
        %3737 = vmatmul.mubr.bf16.gmra.mrb[0].mxu0 %v3264
        %v3738 = vpop.f32.mrb[0].mxu0
        %v3739 = vadd.f32 %v3578, %v3738
        %v3740 = vpop.f32.mrb[0].mxu0
        %v3741 = vpop.f32.mrb[0].mxu0
        %v3742 = vadd.f32 %v3581, %v3741
        %v3743 = vpop.f32.mrb[0].mxu0
        %3744 = vmatprep.mubr.bf16.mxu0 0
        %3745 = vmatmul.mubr.bf16.gmra.mrb[0].mxu0 %v3267
        %v3746 = vpop.f32.mrb[0].mxu0
        %v3747 = vadd.f32 %v3586, %v3746
        %v3748 = vpop.f32.mrb[0].mxu0
        %v3749 = vpop.f32.mrb[0].mxu0
        %v3750 = vadd.f32 %v3589, %v3749
        %v3751 = vpop.f32.mrb[0].mxu0
        %3752 = vmatprep.mubr.bf16.mxu0 0
        %3753 = vmatmul.mubr.bf16.gmra.mrb[0].mxu0 %v3270
        %v3754 = vpop.f32.mrb[0].mxu0
        %v3755 = vadd.f32 %v3594, %v3754
        %v3756 = vpop.f32.mrb[0].mxu0
        %v3757 = vpop.f32.mrb[0].mxu0
        %v3758 = vadd.f32 %v3597, %v3757
        %v3759 = vpop.f32.mrb[0].mxu0
        %3760 = vmatprep.mubr.bf16.mxu0 0
        %3761 = vmatmul.mubr.bf16.gmra.mrb[0].mxu0 %v3273
        %v3762 = vpop.f32.mrb[0].mxu0
        %v3763 = vadd.f32 %v3602, %v3762
        %v3764 = vpop.f32.mrb[0].mxu0
        %v3765 = vpop.f32.mrb[0].mxu0
        %v3766 = vadd.f32 %v3605, %v3765
        %v3767 = vpop.f32.mrb[0].mxu0
        %3768 = vmatprep.mubr.bf16.mxu0 0
        %3769 = vmatmul.mubr.bf16.gmra.mrb[0].mxu0 %v3276
        %v3770 = vpop.f32.mrb[0].mxu0
        %v3771 = vadd.f32 %v3610, %v3770
        %v3772 = vpop.f32.mrb[0].mxu0
        %v3773 = vpop.f32.mrb[0].mxu0
        %v3774 = vadd.f32 %v3613, %v3773
        %v3775 = vpop.f32.mrb[0].mxu0
        %3776 = vmatprep.mubr.bf16.mxu0 0
        %3777 = vmatmul.mubr.bf16.gmra.mrb[0].mxu0 %v3279
        %v3778 = vpop.f32.mrb[0].mxu0
        %v3779 = vadd.f32 %v3618, %v3778
        %v3780 = vpop.f32.mrb[0].mxu0
        %v3781 = vpop.f32.mrb[0].mxu0
        %v3782 = vadd.f32 %v3621, %v3781
        %v3783 = vpop.f32.mrb[0].mxu0
        %3784 = vmatprep.mubr.bf16.mxu0 0
        %3785 = vmatmul.mubr.bf16.gmra.mrb[0].mxu0 %v3282
        %v3786 = vpop.f32.mrb[0].mxu0
        %v3787 = vadd.f32 %v3626, %v3786
        %v3788 = vpop.f32.mrb[0].mxu0
        %v3789 = vpop.f32.mrb[0].mxu0
        %v3790 = vadd.f32 %v3629, %v3789
        %v3791 = vpop.f32.mrb[0].mxu0
        %3792 = vmatprep.mubr.bf16.mxu0 0
        %3793 = vmatmul.mubr.bf16.gmra.mrb[0].mxu0 %v3285
        %v3794 = vpop.f32.mrb[0].mxu0
        %v3795 = vadd.f32 %v3634, %v3794
        %v3796 = vpop.f32.mrb[0].mxu0
        %v3797 = vpop.f32.mrb[0].mxu0
        %v3798 = vadd.f32 %v3637, %v3797
        %v3799 = vpop.f32.mrb[0].mxu0
        %3800 = vdwg.mxu0
        %v3801 = vadd.f32 %v3112, %v3675
        %v3802 = vadd.f32 %v3115, %v3678
        %v3803 = vadd.f32 %v3120, %v3683
        %v3804 = vadd.f32 %v3123, %v3686
        %v3805 = vadd.f32 %v3128, %v3691
        %v3806 = vadd.f32 %v3131, %v3694
        %v3807 = vadd.f32 %v3136, %v3699
        %v3808 = vadd.f32 %v3139, %v3702
        %v3809 = vadd.f32 %v3144, %v3707
        %v3810 = vadd.f32 %v3147, %v3710
        %v3811 = vadd.f32 %v3152, %v3715
        %v3812 = vadd.f32 %v3155, %v3718
        %v3813 = vadd.f32 %v3160, %v3723
        %v3814 = vadd.f32 %v3163, %v3726
        %v3815 = vadd.f32 %v3168, %v3731
        %v3816 = vadd.f32 %v3171, %v3734
        %v3817 = vadd.f32 %v3176, %v3739
        %v3818 = vadd.f32 %v3179, %v3742
        %v3819 = vadd.f32 %v3184, %v3747
        %v3820 = vadd.f32 %v3187, %v3750
        %v3821 = vadd.f32 %v3192, %v3755
        %v3822 = vadd.f32 %v3195, %v3758
        %v3823 = vadd.f32 %v3200, %v3763
        %v3824 = vadd.f32 %v3203, %v3766
        %v3825 = vadd.f32 %v3208, %v3771
        %v3826 = vadd.f32 %v3211, %v3774
        %v3827 = vadd.f32 %v3216, %v3779
        %v3828 = vadd.f32 %v3219, %v3782
        %v3829 = vadd.f32 %v3224, %v3787
        %v3830 = vadd.f32 %v3227, %v3790
        %v3831 = vadd.f32 %v3232, %v3795
        %v3832 = vadd.f32 %v3235, %v3798
        %v3833 = vld [vmem:[%s4] sm:$0x1]
        %v3835 = vlaneseq
        %v3836 = vshrl.u32 %v3835, 7
        %v3837 = vsub.s32 0, %v3836
        %v3838 = vrot.slane %v3833, %v3837
        %v3840 = vadd.f32 %v3801, %v3838
        %v3841 = vadd.f32 %v3802, %v3838
        %v3842 = vadd.f32 %v3803, %v3838
        %v3843 = vadd.f32 %v3804, %v3838
        %v3844 = vadd.f32 %v3805, %v3838
        %v3845 = vadd.f32 %v3806, %v3838
        %v3846 = vadd.f32 %v3807, %v3838
        %v3847 = vadd.f32 %v3808, %v3838
        %v3848 = vadd.f32 %v3809, %v3838
        %v3849 = vadd.f32 %v3810, %v3838
        %v3850 = vadd.f32 %v3811, %v3838
        %v3851 = vadd.f32 %v3812, %v3838
        %v3852 = vadd.f32 %v3813, %v3838
        %v3853 = vadd.f32 %v3814, %v3838
        %v3854 = vadd.f32 %v3815, %v3838
        %v3855 = vadd.f32 %v3816, %v3838
        %v3856 = vadd.f32 %v3817, %v3838
        %v3857 = vadd.f32 %v3818, %v3838
        %v3858 = vadd.f32 %v3819, %v3838
        %v3859 = vadd.f32 %v3820, %v3838
        %v3860 = vadd.f32 %v3821, %v3838
        %v3861 = vadd.f32 %v3822, %v3838
        %v3862 = vadd.f32 %v3823, %v3838
        %v3863 = vadd.f32 %v3824, %v3838
        %v3864 = vadd.f32 %v3825, %v3838
        %v3865 = vadd.f32 %v3826, %v3838
        %v3866 = vadd.f32 %v3827, %v3838
        %v3867 = vadd.f32 %v3828, %v3838
        %v3868 = vadd.f32 %v3829, %v3838
        %v3869 = vadd.f32 %v3830, %v3838
        %v3870 = vadd.f32 %v3831, %v3838
        %v3871 = vadd.f32 %v3832, %v3838
        %v3872 = vmax.f32 %v3840, 0.0
        %v3873 = vmax.f32 %v3841, 0.0
        %v3874 = vmax.f32 %v3842, 0.0
        %v3875 = vmax.f32 %v3843, 0.0
        %v3876 = vmax.f32 %v3844, 0.0
        %v3877 = vmax.f32 %v3845, 0.0
        %v3878 = vmax.f32 %v3846, 0.0
        %v3879 = vmax.f32 %v3847, 0.0
        %v3880 = vmax.f32 %v3848, 0.0
        %v3881 = vmax.f32 %v3849, 0.0
        %v3882 = vmax.f32 %v3850, 0.0
        %v3883 = vmax.f32 %v3851, 0.0
        %v3884 = vmax.f32 %v3852, 0.0
        %v3885 = vmax.f32 %v3853, 0.0
        %v3886 = vmax.f32 %v3854, 0.0
        %v3887 = vmax.f32 %v3855, 0.0
        %v3888 = vmax.f32 %v3856, 0.0
        %v3889 = vmax.f32 %v3857, 0.0
        %v3890 = vmax.f32 %v3858, 0.0
        %v3891 = vmax.f32 %v3859, 0.0
        %v3892 = vmax.f32 %v3860, 0.0
        %v3893 = vmax.f32 %v3861, 0.0
        %v3894 = vmax.f32 %v3862, 0.0
        %v3895 = vmax.f32 %v3863, 0.0
        %v3896 = vmax.f32 %v3864, 0.0
        %v3897 = vmax.f32 %v3865, 0.0
        %v3898 = vmax.f32 %v3866, 0.0
        %v3899 = vmax.f32 %v3867, 0.0
        %v3900 = vmax.f32 %v3868, 0.0
        %v3901 = vmax.f32 %v3869, 0.0
        %v3902 = vmax.f32 %v3870, 0.0
        %v3903 = vmax.f32 %v3871, 0.0
        %v3904 = vpack.c.bf16 %v3873, %v3872
        %v3905 = vpack.c.bf16 %v3875, %v3874
        %v3906 = vpack.c.bf16 %v3877, %v3876
        %v3907 = vpack.c.bf16 %v3879, %v3878
        %v3908 = vpack.c.bf16 %v3881, %v3880
        %v3909 = vpack.c.bf16 %v3883, %v3882
        %v3910 = vpack.c.bf16 %v3885, %v3884
        %v3911 = vpack.c.bf16 %v3887, %v3886
        %v3912 = vpack.c.bf16 %v3889, %v3888
        %v3913 = vpack.c.bf16 %v3891, %v3890
        %v3914 = vpack.c.bf16 %v3893, %v3892
        %v3915 = vpack.c.bf16 %v3895, %v3894
        %v3916 = vpack.c.bf16 %v3897, %v3896
        %v3917 = vpack.c.bf16 %v3899, %v3898
        %v3918 = vpack.c.bf16 %v3901, %v3900
        %v3919 = vpack.c.bf16 %v3903, %v3902
        %v3920 = vld [vmem:[#allocation9] sm:$0xf]
        %v3921 = vld [vmem:[#allocation9 + $0x4] sm:$0xf]
        %v3922 = vld [vmem:[#allocation9 + $0x8] sm:$0xf]
        %v3923 = vld [vmem:[#allocation9 + $0xc] sm:$0xf]
        %v3924 = vld [vmem:[#allocation9 + $0x10] sm:$0xf]
        %v3925 = vld [vmem:[#allocation9 + $0x14] sm:$0xf]
        %v3926 = vld [vmem:[#allocation9 + $0x18] sm:$0xf]
        %v3927 = vld [vmem:[#allocation9 + $0x1c] sm:$0xf]
        %v3928 = vld [vmem:[#allocation9 + $0x20] sm:$0xf]
        %v3929 = vld [vmem:[#allocation9 + $0x24] sm:$0xf]
        %v3930 = vld [vmem:[#allocation9 + $0x28] sm:$0xf]
        %v3931 = vld [vmem:[#allocation9 + $0x2c] sm:$0xf]
        %v3932 = vld [vmem:[#allocation9 + $0x30] sm:$0xf]
        %v3933 = vld [vmem:[#allocation9 + $0x34] sm:$0xf]
        %v3934 = vld [vmem:[#allocation9 + $0x38] sm:$0xf]
        %v3935 = vld [vmem:[#allocation9 + $0x3c] sm:$0xf]
        %v3936 = vld [vmem:[%s340] sm:$0xff]
        %v3937 = vld [vmem:[%s340 + $0x8] sm:$0xff]
        %v3938 = vld [vmem:[%s340 + $0x10] sm:$0xff]
        %v3939 = vld [vmem:[%s340 + $0x18] sm:$0xff]
        %v3940 = vld [vmem:[%s340 + $0x20] sm:$0xff]
        %v3941 = vld [vmem:[%s340 + $0x28] sm:$0xff]
        %v3942 = vld [vmem:[%s340 + $0x30] sm:$0xff]
        %v3943 = vld [vmem:[%s340 + $0x38] sm:$0xff]
        %v3944 = vld [vmem:[%s340 + $0x40] sm:$0xff]
        %v3945 = vld [vmem:[%s340 + $0x48] sm:$0xff]
        %v3946 = vld [vmem:[%s340 + $0x50] sm:$0xff]
        %v3947 = vld [vmem:[%s340 + $0x58] sm:$0xff]
        %v3948 = vld [vmem:[%s340 + $0x60] sm:$0xff]
        %v3949 = vld [vmem:[%s340 + $0x68] sm:$0xff]
        %v3950 = vld [vmem:[%s340 + $0x70] sm:$0xff]
        %v3951 = vld [vmem:[%s340 + $0x78] sm:$0xff]
        %v3952 = vld [vmem:[%s340 + $0x80] sm:$0xff]
        %v3953 = vld [vmem:[%s340 + $0x88] sm:$0xff]
        %v3954 = vld [vmem:[%s340 + $0x90] sm:$0xff]
        %v3955 = vld [vmem:[%s340 + $0x98] sm:$0xff]
        %v3956 = vld [vmem:[%s340 + $0xa0] sm:$0xff]
        %v3957 = vld [vmem:[%s340 + $0xa8] sm:$0xff]
        %v3958 = vld [vmem:[%s340 + $0xb0] sm:$0xff]
        %v3959 = vld [vmem:[%s340 + $0xb8] sm:$0xff]
        %v3960 = vld [vmem:[%s340 + $0xc0] sm:$0xff]
        %v3961 = vld [vmem:[%s340 + $0xc8] sm:$0xff]
        %v3962 = vld [vmem:[%s340 + $0xd0] sm:$0xff]
        %v3963 = vld [vmem:[%s340 + $0xd8] sm:$0xff]
        %v3964 = vld [vmem:[%s340 + $0xe0] sm:$0xff]
        %v3965 = vld [vmem:[%s340 + $0xe8] sm:$0xff]
        %v3966 = vld [vmem:[%s340 + $0xf0] sm:$0xff]
        %v3967 = vld [vmem:[%s340 + $0xf8] sm:$0xff]
        %v3984 = vunpack.c.l.b16 %v3920
        %v3985 = vunpack.c.l.b16 %v3921
        %v3986 = vunpack.c.l.b16 %v3922
        %v3987 = vunpack.c.l.b16 %v3923
        %v3988 = vunpack.c.l.b16 %v3924
        %v3989 = vunpack.c.l.b16 %v3925
        %v3990 = vunpack.c.l.b16 %v3926
        %v3991 = vunpack.c.l.b16 %v3927
        %v3992 = vunpack.c.l.b16 %v3928
        %v3993 = vunpack.c.l.b16 %v3929
        %v3994 = vunpack.c.l.b16 %v3930
        %v3995 = vunpack.c.l.b16 %v3931
        %v3996 = vunpack.c.l.b16 %v3932
        %v3997 = vunpack.c.l.b16 %v3933
        %v3998 = vunpack.c.l.b16 %v3934
        %v3999 = vunpack.c.l.b16 %v3935
        %v4000 = vpack.c.b16 %v3985, %v3984
        %v4001 = vpack.c.b16 %v3987, %v3986
        %v4002 = vpack.c.b16 %v3989, %v3988
        %v4003 = vpack.c.b16 %v3991, %v3990
        %v4004 = vpack.c.b16 %v3993, %v3992
        %v4005 = vpack.c.b16 %v3995, %v3994
        %v4006 = vpack.c.b16 %v3997, %v3996
        %v4007 = vpack.c.b16 %v3999, %v3998
        %4016 = vmatprep.subr.bf16.mxu0 0
        %4017 = vmatpush1.bf16.msra.mxu0 %v4000
        %4018 = vmatprep.subr.bf16.mxu0 0
        %4019 = vmatpush1.bf16.msra.mxu0 %v4001
        %4020 = vmatprep.subr.bf16.mxu0 0
        %4021 = vmatpush1.bf16.msra.mxu0 %v4002
        %4022 = vmatprep.subr.bf16.mxu0 0
        %4023 = vmatpush1.bf16.msra.mxu0 %v4003
        %4024 = vmatprep.subr.bf16.mxu0 0
        %4025 = vmatpush1.bf16.msra.mxu0 %v4004
        %4026 = vmatprep.subr.bf16.mxu0 0
        %4027 = vmatpush1.bf16.msra.mxu0 %v4005
        %4028 = vmatprep.subr.bf16.mxu0 0
        %4029 = vmatpush1.bf16.msra.mxu0 %v4006
        %4030 = vmatprep.subr.bf16.mxu0 0
        %4031 = vmatpush1.bf16.msra.mxu0 %v4007
        %4032 = vmatprep.subr.bf16.mxu0 0
        %4033 = vmatpush1.bf16.msra.mxu0 0
        %4034 = vmatprep.subr.bf16.mxu0 0
        %4035 = vmatpush1.bf16.msra.mxu0 0
        %4036 = vmatprep.subr.bf16.mxu0 0
        %4037 = vmatpush1.bf16.msra.mxu0 0
        %4038 = vmatprep.subr.bf16.mxu0 0
        %4039 = vmatpush1.bf16.msra.mxu0 0
        %4040 = vmatprep.subr.bf16.mxu0 0
        %4041 = vmatpush1.bf16.msra.mxu0 0
        %4042 = vmatprep.subr.bf16.mxu0 0
        %4043 = vmatpush1.bf16.msra.mxu0 0
        %4044 = vmatprep.subr.bf16.mxu0 0
        %4045 = vmatpush1.bf16.msra.mxu0 0
        %4046 = vmatprep.subr.bf16.mxu0 0
        %4047 = vmatpush1.bf16.msra.mxu0 0
        %4048 = vmatprep.mubr.bf16.mxu0 0
        %4049 = vmatmul.mubr.bf16.gmra.mrb[0].mxu0 %v3904
        %v4050 = vpop.f32.mrb[0].mxu0
        %v4051 = vadd.f32 %v3936, %v4050
        %v4052 = vpop.f32.mrb[0].mxu0
        %v4053 = vpop.f32.mrb[0].mxu0
        %v4054 = vadd.f32 %v3937, %v4053
        %v4055 = vpop.f32.mrb[0].mxu0
        %4056 = vmatprep.mubr.bf16.mxu0 0
        %4057 = vmatmul.mubr.bf16.gmra.mrb[0].mxu0 %v3905
        %v4058 = vpop.f32.mrb[0].mxu0
        %v4059 = vadd.f32 %v3938, %v4058
        %v4060 = vpop.f32.mrb[0].mxu0
        %v4061 = vpop.f32.mrb[0].mxu0
        %v4062 = vadd.f32 %v3939, %v4061
        %v4063 = vpop.f32.mrb[0].mxu0
        %4064 = vmatprep.mubr.bf16.mxu0 0
        %4065 = vmatmul.mubr.bf16.gmra.mrb[0].mxu0 %v3906
        %v4066 = vpop.f32.mrb[0].mxu0
        %v4067 = vadd.f32 %v3940, %v4066
        %v4068 = vpop.f32.mrb[0].mxu0
        %v4069 = vpop.f32.mrb[0].mxu0
        %v4070 = vadd.f32 %v3941, %v4069
        %v4071 = vpop.f32.mrb[0].mxu0
        %4072 = vmatprep.mubr.bf16.mxu0 0
        %4073 = vmatmul.mubr.bf16.gmra.mrb[0].mxu0 %v3907
        %v4074 = vpop.f32.mrb[0].mxu0
        %v4075 = vadd.f32 %v3942, %v4074
        %v4076 = vpop.f32.mrb[0].mxu0
        %v4077 = vpop.f32.mrb[0].mxu0
        %v4078 = vadd.f32 %v3943, %v4077
        %v4079 = vpop.f32.mrb[0].mxu0
        %4080 = vmatprep.mubr.bf16.mxu0 0
        %4081 = vmatmul.mubr.bf16.gmra.mrb[0].mxu0 %v3908
        %v4082 = vpop.f32.mrb[0].mxu0
        %v4083 = vadd.f32 %v3944, %v4082
        %v4084 = vpop.f32.mrb[0].mxu0
        %v4085 = vpop.f32.mrb[0].mxu0
        %v4086 = vadd.f32 %v3945, %v4085
        %v4087 = vpop.f32.mrb[0].mxu0
        %4088 = vmatprep.mubr.bf16.mxu0 0
        %4089 = vmatmul.mubr.bf16.gmra.mrb[0].mxu0 %v3909
        %v4090 = vpop.f32.mrb[0].mxu0
        %v4091 = vadd.f32 %v3946, %v4090
        %v4092 = vpop.f32.mrb[0].mxu0
        %v4093 = vpop.f32.mrb[0].mxu0
        %v4094 = vadd.f32 %v3947, %v4093
        %v4095 = vpop.f32.mrb[0].mxu0
        %4096 = vmatprep.mubr.bf16.mxu0 0
        %4097 = vmatmul.mubr.bf16.gmra.mrb[0].mxu0 %v3910
        %v4098 = vpop.f32.mrb[0].mxu0
        %v4099 = vadd.f32 %v3948, %v4098
        %v4100 = vpop.f32.mrb[0].mxu0
        %v4101 = vpop.f32.mrb[0].mxu0
        %v4102 = vadd.f32 %v3949, %v4101
        %v4103 = vpop.f32.mrb[0].mxu0
        %4104 = vmatprep.mubr.bf16.mxu0 0
        %4105 = vmatmul.mubr.bf16.gmra.mrb[0].mxu0 %v3911
        %v4106 = vpop.f32.mrb[0].mxu0
        %v4107 = vadd.f32 %v3950, %v4106
        %v4108 = vpop.f32.mrb[0].mxu0
        %v4109 = vpop.f32.mrb[0].mxu0
        %v4110 = vadd.f32 %v3951, %v4109
        %v4111 = vpop.f32.mrb[0].mxu0
        %4112 = vmatprep.mubr.bf16.mxu0 0
        %4113 = vmatmul.mubr.bf16.gmra.mrb[0].mxu0 %v3912
        %v4114 = vpop.f32.mrb[0].mxu0
        %v4115 = vadd.f32 %v3952, %v4114
        %v4116 = vpop.f32.mrb[0].mxu0
        %v4117 = vpop.f32.mrb[0].mxu0
        %v4118 = vadd.f32 %v3953, %v4117
        %v4119 = vpop.f32.mrb[0].mxu0
        %4120 = vmatprep.mubr.bf16.mxu0 0
        %4121 = vmatmul.mubr.bf16.gmra.mrb[0].mxu0 %v3913
        %v4122 = vpop.f32.mrb[0].mxu0
        %v4123 = vadd.f32 %v3954, %v4122
        %v4124 = vpop.f32.mrb[0].mxu0
        %v4125 = vpop.f32.mrb[0].mxu0
        %v4126 = vadd.f32 %v3955, %v4125
        %v4127 = vpop.f32.mrb[0].mxu0
        %4128 = vmatprep.mubr.bf16.mxu0 0
        %4129 = vmatmul.mubr.bf16.gmra.mrb[0].mxu0 %v3914
        %v4130 = vpop.f32.mrb[0].mxu0
        %v4131 = vadd.f32 %v3956, %v4130
        %v4132 = vpop.f32.mrb[0].mxu0
        %v4133 = vpop.f32.mrb[0].mxu0
        %v4134 = vadd.f32 %v3957, %v4133
        %v4135 = vpop.f32.mrb[0].mxu0
        %4136 = vmatprep.mubr.bf16.mxu0 0
        %4137 = vmatmul.mubr.bf16.gmra.mrb[0].mxu0 %v3915
        %v4138 = vpop.f32.mrb[0].mxu0
        %v4139 = vadd.f32 %v3958, %v4138
        %v4140 = vpop.f32.mrb[0].mxu0
        %v4141 = vpop.f32.mrb[0].mxu0
        %v4142 = vadd.f32 %v3959, %v4141
        %v4143 = vpop.f32.mrb[0].mxu0
        %4144 = vmatprep.mubr.bf16.mxu0 0
        %4145 = vmatmul.mubr.bf16.gmra.mrb[0].mxu0 %v3916
        %v4146 = vpop.f32.mrb[0].mxu0
        %v4147 = vadd.f32 %v3960, %v4146
        %v4148 = vpop.f32.mrb[0].mxu0
        %v4149 = vpop.f32.mrb[0].mxu0
        %v4150 = vadd.f32 %v3961, %v4149
        %v4151 = vpop.f32.mrb[0].mxu0
        %4152 = vmatprep.mubr.bf16.mxu0 0
        %4153 = vmatmul.mubr.bf16.gmra.mrb[0].mxu0 %v3917
        %v4154 = vpop.f32.mrb[0].mxu0
        %v4155 = vadd.f32 %v3962, %v4154
        %v4156 = vpop.f32.mrb[0].mxu0
        %v4157 = vpop.f32.mrb[0].mxu0
        %v4158 = vadd.f32 %v3963, %v4157
        %v4159 = vpop.f32.mrb[0].mxu0
        %4160 = vmatprep.mubr.bf16.mxu0 0
        %4161 = vmatmul.mubr.bf16.gmra.mrb[0].mxu0 %v3918
        %v4162 = vpop.f32.mrb[0].mxu0
        %v4163 = vadd.f32 %v3964, %v4162
        %v4164 = vpop.f32.mrb[0].mxu0
        %v4165 = vpop.f32.mrb[0].mxu0
        %v4166 = vadd.f32 %v3965, %v4165
        %v4167 = vpop.f32.mrb[0].mxu0
        %4168 = vmatprep.mubr.bf16.mxu0 0
        %4169 = vmatmul.mubr.bf16.gmra.mrb[0].mxu0 %v3919
        %v4170 = vpop.f32.mrb[0].mxu0
        %v4171 = vadd.f32 %v3966, %v4170
        %v4172 = vpop.f32.mrb[0].mxu0
        %v4173 = vpop.f32.mrb[0].mxu0
        %v4174 = vadd.f32 %v3967, %v4173
        %v4175 = vpop.f32.mrb[0].mxu0
        %4176 = vdwg.mxu0
        %v4177 = vld [vmem:[%s6] sm:$0x1]
        %v4179 = vlaneseq
        %v4180 = vshrl.u32 %v4179, 7
        %v4181 = vsub.s32 0, %v4180
        %v4182 = vrot.slane %v4177, %v4181
        %v4184 = vadd.f32 %v4051, %v4182
        %v4185 = vadd.f32 %v4054, %v4182
        %v4186 = vadd.f32 %v4059, %v4182
        %v4187 = vadd.f32 %v4062, %v4182
        %v4188 = vadd.f32 %v4067, %v4182
        %v4189 = vadd.f32 %v4070, %v4182
        %v4190 = vadd.f32 %v4075, %v4182
        %v4191 = vadd.f32 %v4078, %v4182
        %v4192 = vadd.f32 %v4083, %v4182
        %v4193 = vadd.f32 %v4086, %v4182
        %v4194 = vadd.f32 %v4091, %v4182
        %v4195 = vadd.f32 %v4094, %v4182
        %v4196 = vadd.f32 %v4099, %v4182
        %v4197 = vadd.f32 %v4102, %v4182
        %v4198 = vadd.f32 %v4107, %v4182
        %v4199 = vadd.f32 %v4110, %v4182
        %v4200 = vadd.f32 %v4115, %v4182
        %v4201 = vadd.f32 %v4118, %v4182
        %v4202 = vadd.f32 %v4123, %v4182
        %v4203 = vadd.f32 %v4126, %v4182
        %v4204 = vadd.f32 %v4131, %v4182
        %v4205 = vadd.f32 %v4134, %v4182
        %v4206 = vadd.f32 %v4139, %v4182
        %v4207 = vadd.f32 %v4142, %v4182
        %v4208 = vadd.f32 %v4147, %v4182
        %v4209 = vadd.f32 %v4150, %v4182
        %v4210 = vadd.f32 %v4155, %v4182
        %v4211 = vadd.f32 %v4158, %v4182
        %v4212 = vadd.f32 %v4163, %v4182
        %v4213 = vadd.f32 %v4166, %v4182
        %v4214 = vadd.f32 %v4171, %v4182
        %v4215 = vadd.f32 %v4174, %v4182
        %v4216 = vmax.f32 %v4184, 0.0
        %v4217 = vmax.f32 %v4185, 0.0
        %v4218 = vmax.f32 %v4186, 0.0
        %v4219 = vmax.f32 %v4187, 0.0
        %v4220 = vmax.f32 %v4188, 0.0
        %v4221 = vmax.f32 %v4189, 0.0
        %v4222 = vmax.f32 %v4190, 0.0
        %v4223 = vmax.f32 %v4191, 0.0
        %v4224 = vmax.f32 %v4192, 0.0
        %v4225 = vmax.f32 %v4193, 0.0
        %v4226 = vmax.f32 %v4194, 0.0
        %v4227 = vmax.f32 %v4195, 0.0
        %v4228 = vmax.f32 %v4196, 0.0
        %v4229 = vmax.f32 %v4197, 0.0
        %v4230 = vmax.f32 %v4198, 0.0
        %v4231 = vmax.f32 %v4199, 0.0
        %v4232 = vmax.f32 %v4200, 0.0
        %v4233 = vmax.f32 %v4201, 0.0
        %v4234 = vmax.f32 %v4202, 0.0
        %v4235 = vmax.f32 %v4203, 0.0
        %v4236 = vmax.f32 %v4204, 0.0
        %v4237 = vmax.f32 %v4205, 0.0
        %v4238 = vmax.f32 %v4206, 0.0
        %v4239 = vmax.f32 %v4207, 0.0
        %v4240 = vmax.f32 %v4208, 0.0
        %v4241 = vmax.f32 %v4209, 0.0
        %v4242 = vmax.f32 %v4210, 0.0
        %v4243 = vmax.f32 %v4211, 0.0
        %v4244 = vmax.f32 %v4212, 0.0
        %v4245 = vmax.f32 %v4213, 0.0
        %v4246 = vmax.f32 %v4214, 0.0
        %v4247 = vmax.f32 %v4215, 0.0
        %4248 = vst [vmem:[%s340] sm:$0xff] %v4216
        %4249 = vst [vmem:[%s340 + $0x8] sm:$0xff] %v4217
        %4250 = vst [vmem:[%s340 + $0x10] sm:$0xff] %v4218
        %4251 = vst [vmem:[%s340 + $0x18] sm:$0xff] %v4219
        %4252 = vst [vmem:[%s340 + $0x20] sm:$0xff] %v4220
        %4253 = vst [vmem:[%s340 + $0x28] sm:$0xff] %v4221
        %4254 = vst [vmem:[%s340 + $0x30] sm:$0xff] %v4222
        %4255 = vst [vmem:[%s340 + $0x38] sm:$0xff] %v4223
        %4256 = vst [vmem:[%s340 + $0x40] sm:$0xff] %v4224
        %4257 = vst [vmem:[%s340 + $0x48] sm:$0xff] %v4225
        %4258 = vst [vmem:[%s340 + $0x50] sm:$0xff] %v4226
        %4259 = vst [vmem:[%s340 + $0x58] sm:$0xff] %v4227
        %4260 = vst [vmem:[%s340 + $0x60] sm:$0xff] %v4228
        %4261 = vst [vmem:[%s340 + $0x68] sm:$0xff] %v4229
        %4262 = vst [vmem:[%s340 + $0x70] sm:$0xff] %v4230
        %4263 = vst [vmem:[%s340 + $0x78] sm:$0xff] %v4231
        %4264 = vst [vmem:[%s340 + $0x80] sm:$0xff] %v4232
        %4265 = vst [vmem:[%s340 + $0x88] sm:$0xff] %v4233
        %4266 = vst [vmem:[%s340 + $0x90] sm:$0xff] %v4234
        %4267 = vst [vmem:[%s340 + $0x98] sm:$0xff] %v4235
        %4268 = vst [vmem:[%s340 + $0xa0] sm:$0xff] %v4236
        %4269 = vst [vmem:[%s340 + $0xa8] sm:$0xff] %v4237
        %4270 = vst [vmem:[%s340 + $0xb0] sm:$0xff] %v4238
        %4271 = vst [vmem:[%s340 + $0xb8] sm:$0xff] %v4239
        %4272 = vst [vmem:[%s340 + $0xc0] sm:$0xff] %v4240
        %4273 = vst [vmem:[%s340 + $0xc8] sm:$0xff] %v4241
        %4274 = vst [vmem:[%s340 + $0xd0] sm:$0xff] %v4242
        %4275 = vst [vmem:[%s340 + $0xd8] sm:$0xff] %v4243
        %4276 = vst [vmem:[%s340 + $0xe0] sm:$0xff] %v4244
        %4277 = vst [vmem:[%s340 + $0xe8] sm:$0xff] %v4245
        %4278 = vst [vmem:[%s340 + $0xf0] sm:$0xff] %v4246
        %4279 = vst [vmem:[%s340 + $0xf8] sm:$0xff] %v4247
        %s4280 = sand.u32 %s186, 1
        %s4281 = scalar_lea.sflag [#allocation5], %s4280
        %s4282 = sand.u32 %s186, 1
        %s4283 = smul.addr %s4282, 256
        %s4284 = scalar_lea.vmem [#allocation11], %s4283
        // Predicated region
        $region65: #{tpu_custom_call.1} parent=47 // pred_check
          %p4285 = pneg %p196
        $region66: #{tpu_custom_call.1} parent=47 // pred_check_branch
          %4287 = sbr.rel (%p4285) target = $region68
        $region67: #{tpu_custom_call.1} parent=47 // pred_region
          %s4289 = ssub.s32 4096, 4096
          %4290 = vsyncadd %s4281, %s4289
          %s4291 = smul.addr %s26, 32
          %s4292 = smul.addr %s4291, 128
          %s4293 = scalar_lea.hbm %s7, %s4292
          %s4294 = sshll.u32 %s4284, 4
          %s4295 = int_to_ptr.vmem [resolvable:$true] %s4294
          %4300 = dma.vmem_to_hbm [thread:$0]  %s4295, 4096, %s4293, %s4281, 128, 128, 8
        $region68: #{tpu_custom_call.1} parent=47 // pred_fallthru
          _
      $region48: #{tpu_custom_call.1} parent=5 // pred_fallthru
        _
      %p4301 = scmp.le.s32.totalorder 2, %s21
      // Predicated region
      $region69: #{tpu_custom_call.1} parent=5 // pred_check
        %p4302 = pneg %p4301
      $region70: #{tpu_custom_call.1} parent=5 // pred_check_branch
        %4304 = sbr.rel (%p4302) target = $region72
      $region71: #{tpu_custom_call.1} parent=5 // pred_region
        %s4305 = ssub.s32 %s21, 2
        // Predicated region
        $region73: #{tpu_custom_call.1} parent=71 // pred_check
          %p4306 = pneg %p202
        $region74: #{tpu_custom_call.1} parent=71 // pred_check_branch
          %4308 = sbr.rel (%p4306) target = $region76
        $region75: #{tpu_custom_call.1} parent=71 // pred_region
          %s4309 = sand.u32 %s187, 1
          %s4310 = scalar_lea.sflag [#allocation5], %s4309
          %s4311 = sand.u32 %s187, 1
          %s4312 = smul.addr %s4311, 256
          %s4313 = scalar_lea.vmem [#allocation11], %s4312
          %4314 = dma.done %s4310, 4096
        $region76: #{tpu_custom_call.1} parent=71 // pred_fallthru
          _
      $region72: #{tpu_custom_call.1} parent=5 // pred_fallthru
        _
    $region6: #{tpu_custom_call.1} parent=1 // loop_footer
      %s25 = sadd.s32 1, %s21
    $region7: #{tpu_custom_call.1} parent=1 // loop_footer_branch
      %20 = sbr.rel target = $region3
    $region8: #{tpu_custom_call.1} parent=1 // loop_exit
      _
    %4315 = vsyncpa [#allocation4], 1
    %s4316 = scalar_lea.sflag [#allocation4], 1
    %4317 = vsyncpa %s4316, 1
    %4318 = vsyncpa [#allocation7], 1
    %4319 = vsyncpa [#allocation10], 1
    %4320 = vsyncpa [#allocation5], 1
    %s4321 = scalar_lea.sflag [#allocation5], 1
    %4322 = vsyncpa %s4321, 1

</llo_original>
